<compile_context>
chip_gen: v6e
topology: v6e:2x2x1
jax: 0.10.0
libtpu: 0.0.40
codegen_flags: <defaults>
</compile_context>

<pallas_src>
import functools

import jax
import jax.numpy as jnp
from jax.experimental import pallas as pl
from jax.experimental.pallas import tpu as pltpu

BN_EPS = 1e-5


def _vmem_capacity_bytes():
    try:
        return int(pltpu.get_tpu_info().vmem_capacity_bytes)
    except Exception:
        return 128 * 1024 * 1024


def _pick_pool_tiles(N, C, HW, itemsize, target_bytes):
    """(c_tile, hw_tile): lane-dense, divide C/HW, streamed buffer ~= target_bytes."""
    c_opts = sorted({d for d in range(128, C, 128) if C % d == 0} | {C})
    hw_opts = sorted({d for d in range(128, HW, 128) if HW % d == 0} | {HW})

    def score(ch):
        c_t, hw_t = ch
        b = N * c_t * hw_t * itemsize
        fits = b <= target_bytes
        # prefer tiles that fit the budget, then the fattest tile (fewer, fatter DMAs),
        # then fewer reduction steps / more parallel C blocks (v7x dual-TC).
        return (fits, b if fits else -b, hw_t)

    return max(((c, h) for c in c_opts for h in hw_opts), key=score)


def _pick_k_tile(E, K, itemsize, target_bytes):
    opts = sorted({d for d in range(128, K, 128) if K % d == 0} | {K})
    fitting = [k for k in opts if E * k * itemsize <= target_bytes]
    return fitting[-1] if fitting else opts[0]


def _pool_kernel(feat_ref, pooled_ref, *, inv_hw):
    """Grid: (C blocks ['parallel'], HW blocks ['arbitrary' reduction]).

    feat_ref  : (N, c_tile, hw_tile) backbone dtype -- native NCHW-flattened layout
    pooled_ref: (N, c_tile) f32      -- resident accumulator across the HW axis
    """
    hi = pl.program_id(1)

    @pl.when(hi == 0)
    def _init():
        pooled_ref[...] = jnp.zeros_like(pooled_ref)

    # Pool over the lane (HW) axis; fp32 accumulation without materialising a
    # separate fp32 copy of the streamed tile.
    pooled_ref[...] += jnp.sum(feat_ref[...], axis=-1, dtype=jnp.float32)

    @pl.when(hi == pl.num_programs(1) - 1)
    def _finalize():
        pooled_ref[...] *= inv_hw                      # global average pool


def _epilogue_kernel(pooled_ref, wconv_ref, gamma_ref, wcls_ref,
                     bn_ref, mean_ref, var_ref, logits_ref, bn_bf16_ref):
    """Grid: (K blocks,). Bottleneck + BN once (k==0); classifier streamed over K.

    pooled_ref : (N, C) f32        wconv_ref: (C, E) bf16    gamma_ref: (1, E) f32
    wcls_ref   : (E, k_tile) bf16  (streamed, double-buffered)
    bn_ref     : (N, E) f32        mean_ref/var_ref: (1, E) f32
    logits_ref : (N, k_tile) f32
    bn_bf16_ref: (N, E) bf16 VMEM scratch -- classifier LHS resident across K tiles
    """
    k = pl.program_id(0)

    @pl.when(k == 0)
    def _bottleneck_bn():
        # 1x1 conv (no bias) == MXU matmul; bf16 operands, fp32 accumulation.
        emb = jnp.dot(pooled_ref[...].astype(jnp.bfloat16), wconv_ref[...],
                      preferred_element_type=jnp.float32)              # (N, E)
        # BatchNorm1d, training mode: batch statistics over the full batch.
        # bias_freeze => beta == 0 (dropped); gamma stays a learnable parameter.
        mu = jnp.mean(emb, axis=0, keepdims=True)
        var = jnp.mean((emb - mu) ** 2, axis=0, keepdims=True)         # biased
        bn = (emb - mu) * (gamma_ref[...] * jax.lax.rsqrt(var + BN_EPS))
        bn_ref[...] = bn
        mean_ref[...] = mu
        var_ref[...] = var
        bn_bf16_ref[...] = bn.astype(jnp.bfloat16)

    # Bias-free linear classifier, one K tile per grid step: the next wcls tile's DMA
    # overlaps this matmul. MXU-underfilled on M=N, but latency-bound and cheap.
    logits_ref[...] = jnp.dot(bn_bf16_ref[...], wcls_ref[...],
                              preferred_element_type=jnp.float32)


def head_forward(features_nchw, w_conv, gamma, w_cls, *,
                 c_tile=None, hw_tile=None, k_tile=None,
                 running_mean=None, running_var=None, momentum=0.1):
    """features_nchw: (N, C, H, W) in the backbone's dtype/layout (no copy is made).
    w_conv: (C, E) 1x1-conv weight (pre-transposed), gamma: (E,), w_cls: (E, K)."""
    N, C, H, W = features_nchw.shape
    HW = H * W
    E = w_conv.shape[1]
    K = w_cls.shape[1]
    assert C % 128 == 0 and E % 128 == 0 and K % 128 == 0, \
        "pad C/E/K to multiples of 128 for full-lane stores and full MXU tiles"

    # NCHW -> (N, C, HW) is a contiguous reshape: no transpose, no extra HBM pass.
    feat = features_nchw.reshape(N, C, HW)
    feat_itemsize = feat.dtype.itemsize

    w_conv = w_conv.astype(jnp.bfloat16)
    w_cls = w_cls.astype(jnp.bfloat16)
    gamma = jnp.asarray(gamma, jnp.float32).reshape(1, E)

    vmem_cap = _vmem_capacity_bytes()                       # 128 MiB v5e/v6e, 64 MiB v7x
    vmem_limit = min(vmem_cap * 3 // 4, 128 * 1024 * 1024)  # keep headroom per generation

    if c_tile is None or hw_tile is None:
        auto_c, auto_hw = _pick_pool_tiles(N, C, HW, feat_itemsize, target_bytes=2 << 20)
        c_tile = c_tile or auto_c
        hw_tile = hw_tile or auto_hw
    assert C % c_tile == 0 and c_tile % 128 == 0
    assert HW % hw_tile == 0 and (hw_tile % 128 == 0 or hw_tile == HW)

    if k_tile is None:
        k_tile = _pick_k_tile(E, K, 2, target_bytes=2 << 20)
    assert K % k_tile == 0 and k_tile % 128 == 0

    # ---------------- Kernel 1: streamed global average pooling over HW ------------
    pool_cost = pl.CostEstimate(
        flops=int(N * C * HW),
        transcendentals=0,
        bytes_accessed=int(N * C * HW * feat_itemsize + N * C * 4))

    pooled = pl.pallas_call(
        functools.partial(_pool_kernel, inv_hw=float(1.0 / HW)),
        out_shape=jax.ShapeDtypeStruct((N, C), jnp.float32),
        grid_spec=pltpu.PrefetchScalarGridSpec(
            num_scalar_prefetch=0,
            grid=(C // c_tile, HW // hw_tile),
            in_specs=[pl.BlockSpec((N, c_tile, hw_tile), lambda ci, hi: (0, ci, hi))],
            out_specs=pl.BlockSpec((N, c_tile), lambda ci, hi: (0, ci)),
        ),
        compiler_params=pltpu.CompilerParams(
            # C blocks are independent (v7x: split across both TensorCores);
            # HW is the pooling reduction with a resident output accumulator.
            dimension_semantics=("parallel", "arbitrary"),
            vmem_limit_bytes=vmem_limit),
        cost_estimate=pool_cost,
    )(feat)

    # ------------- Kernel 2: bottleneck 1x1 conv + BN + classifier (K-tiled) -------
    epi_cost = pl.CostEstimate(
        flops=int(2 * N * C * E + 2 * N * E * K + 8 * N * E),
        transcendentals=int(E),
        bytes_accessed=int(N * C * 4 + C * E * 2 + E * K * 2
                           + (N * E + N * K + 2 * E) * 4))

    bn_feat, batch_mean, batch_var, logits = pl.pallas_call(
        _epilogue_kernel,
        out_shape=(
            jax.ShapeDtypeStruct((N, E), jnp.float32),   # bn_feat (eval-mode return)
            jax.ShapeDtypeStruct((1, E), jnp.float32),   # batch mean
            jax.ShapeDtypeStruct((1, E), jnp.float32),   # batch var (biased)
            jax.ShapeDtypeStruct((N, K), jnp.float32),   # cls logits
        ),
        grid_spec=pltpu.PrefetchScalarGridSpec(
            num_scalar_prefetch=0,
            grid=(K // k_tile,),
            in_specs=[
                pl.BlockSpec((N, C), lambda k: (0, 0)),         # pooled, resident
                pl.BlockSpec((C, E), lambda k: (0, 0)),         # conv weight, resident
                pl.BlockSpec((1, E), lambda k: (0, 0)),         # BN gamma
                pl.BlockSpec((E, k_tile), lambda k: (0, k)),    # classifier, streamed
            ],
            out_specs=[
                pl.BlockSpec((N, E), lambda k: (0, 0)),
                pl.BlockSpec((1, E), lambda k: (0, 0)),
                pl.BlockSpec((1, E), lambda k: (0, 0)),
                pl.BlockSpec((N, k_tile), lambda k: (0, k)),
            ],
            scratch_shapes=[pltpu.VMEM((N, E), jnp.bfloat16)],
        ),
        compiler_params=pltpu.CompilerParams(
            dimension_semantics=("arbitrary",),   # k==0 computes the shared BN scratch
            vmem_limit_bytes=vmem_limit),
        cost_estimate=epi_cost,
    )(pooled, w_conv, gamma, w_cls)

    out = {
        "cls_outputs": logits,           # Linear classifier output
        "pred_class_logits": logits,     # same matmul for cls_type='linear'
        "features": pooled,              # neck_feat='before' -> pooled pre-bottleneck
        "bn_feat": bn_feat,              # what eval mode would return
        "batch_mean": batch_mean.reshape(E),
        "batch_var": batch_var.reshape(E),  # biased var, as used for normalization
    }
    if running_mean is not None and running_var is not None:
        # PyTorch training-mode BN side effect: momentum update of running stats
        # (running_var uses the unbiased batch variance).
        unbiased = out["batch_var"] * (N / max(N - 1, 1))
        out["new_running_mean"] = (1.0 - momentum) * running_mean + momentum * out["batch_mean"]
        out["new_running_var"] = (1.0 - momentum) * running_var + momentum * unbiased
    return out


def head_forward_ref(features_nchw, w_conv, gamma, w_cls,
                     running_mean=None, running_var=None, momentum=0.1):
    """Pure-JAX reference with matching dtype choices (bf16 MXU inputs, f32 accum)."""
    N, C, H, W = features_nchw.shape
    x = features_nchw.astype(jnp.float32).reshape(N, C, H * W)
    pooled = jnp.mean(x, axis=-1)                                     # (N, C)
    emb = jnp.dot(pooled.astype(jnp.bfloat16), w_conv.astype(jnp.bfloat16),
                  preferred_element_type=jnp.float32)                 # (N, E)
    mu = jnp.mean(emb, axis=0, keepdims=True)
    var = jnp.mean((emb - mu) ** 2, axis=0, keepdims=True)
    bn = (emb - mu) * (jnp.asarray(gamma, jnp.float32).reshape(1, -1)
                       * jax.lax.rsqrt(var + BN_EPS))
    logits = jnp.dot(bn.astype(jnp.bfloat16), w_cls.astype(jnp.bfloat16),
                     preferred_element_type=jnp.float32)
    out = {"cls_outputs": logits, "pred_class_logits": logits,
           "features": pooled, "bn_feat": bn,
           "batch_mean": mu[0], "batch_var": var[0]}
    if running_mean is not None and running_var is not None:
        unbiased = var[0] * (N / max(N - 1, 1))
        out["new_running_mean"] = (1.0 - momentum) * running_mean + momentum * mu[0]
        out["new_running_var"] = (1.0 - momentum) * running_var + momentum * unbiased
    return out


if __name__ == "__main__":
    # Small synthetic config; C/E/K kept at multiples of 128 for lane-dense stores.
    # HW=1024 -> auto tiles give a 2-step HW reduction; k_tile=128 -> 3 classifier tiles.
    N, C, H, W = 16, 128, 32, 32   # batch, feat_dim, spatial
    E = 128                        # embedding_dim
    K = 384                        # num_classes

    key = jax.random.PRNGKey(0)
    k_feat, k_conv, k_gamma, k_cls = jax.random.split(key, 4)

    # Backbone hands over bf16 NCHW; the wrapper does NOT transpose or cast it.
    # TODO(synk): other pool_type / cls_type variants (gempool, arcSoftmax, ...) of the
    # original Head are not implemented in this config.
    features = jax.random.normal(k_feat, (N, C, H, W),
                                 dtype=jnp.float32).astype(jnp.bfloat16)

    # Conv2d(feat_dim, embedding_dim, 1, bias=False): weight (E, C, 1, 1), kaiming-ish,
    # pre-transposed to (C, E).
    w_conv = (jax.random.normal(k_conv, (E, C), dtype=jnp.float32)
              * jnp.sqrt(2.0 / C)).T
    # BN gamma is learnable under bias_freeze (only beta is frozen); non-trivial values.
    gamma = 1.0 + 0.1 * jax.random.normal(k_gamma, (E,), dtype=jnp.float32)
    # Linear(embedding_dim, num_classes, bias=False): weight (K, E), normal(std=0.001),
    # pre-transposed to (E, K).
    w_cls = (jax.random.normal(k_cls, (K, E), dtype=jnp.float32) * 0.001).T

    running_mean = jnp.zeros((E,), jnp.float32)
    running_var = jnp.ones((E,), jnp.float32)

    out = head_forward(features, w_conv, gamma, w_cls, k_tile=128,
                       running_mean=running_mean, running_var=running_var)
    jax.block_until_ready(out)

    ref = head_forward_ref(features, w_conv, gamma, w_cls,
                           running_mean=running_mean, running_var=running_var)
    for name in ("cls_outputs", "pred_class_logits", "features", "bn_feat",
                 "batch_mean", "batch_var", "new_running_mean", "new_running_var"):
        assert jnp.allclose(out[name], ref[name], atol=1e-3, rtol=1e-3), name

    print("KERNEL_OK")
</pallas_src>

<mosaic_0001>
module attributes {stable_mosaic.version = 11 : i64} {
  func.func @_pool_kernel(%arg0: i32, %arg1: i32, %arg2: memref<16x128x512xbf16, #tpu.memory_space<vmem>>, %arg3: memref<16x128xf32, #tpu.memory_space<vmem>>) attributes {dimension_semantics = [#tpu.dimension_semantics<parallel>, #tpu.dimension_semantics<arbitrary>], iteration_bounds = array<i64: 1, 2>, scalar_prefetch = 0 : i64, scratch_operands = 0 : i64, tpu.core_type = #tpu.core_type<tc>, window_params = [{transform_indices = @transform_0, window_bounds = array<i64: 16, 128, 512>}, {transform_indices = @transform_1, window_bounds = array<i64: 16, 128>}]} {
    %c0_i32 = arith.constant 0 : i32
    %0 = arith.cmpi eq, %arg1, %c0_i32 : i32
    %1 = arith.extui %0 : i1 to i32
    %c0_i32_0 = arith.constant 0 : i32
    %2 = arith.cmpi ne, %1, %c0_i32_0 : i32
    scf.if %2 {
      %cst_8 = arith.constant 0.000000e+00 : f32
      %12 = vector.broadcast %cst_8 : f32 to vector<16x128xf32>
      %c0_9 = arith.constant 0 : index
      %c0_10 = arith.constant 0 : index
      %13 = vector.load %arg3[%c0_9, %c0_10] : memref<16x128xf32, #tpu.memory_space<vmem>>, vector<16x128xf32>
      tpu.vector_store %arg3[%c0_9, %c0_10], %12 {strides = array<i32>} : memref<16x128xf32, #tpu.memory_space<vmem>>, vector<16x128xf32>,
    } else {
    }
    %c0 = arith.constant 0 : index
    %c0_1 = arith.constant 0 : index
    %3 = vector.load %arg3[%c0, %c0_1] : memref<16x128xf32, #tpu.memory_space<vmem>>, vector<16x128xf32>
    %c0_2 = arith.constant 0 : index
    %c0_3 = arith.constant 0 : index
    %c0_4 = arith.constant 0 : index
    %4 = vector.load %arg2[%c0_2, %c0_3, %c0_4] : memref<16x128x512xbf16, #tpu.memory_space<vmem>>, vector<16x128x512xbf16>
    %5 = arith.extf %4 : vector<16x128x512xbf16> to vector<16x128x512xf32>
    %cst = arith.constant dense<0.000000e+00> : vector<16x128xf32>
    %6 = vector.multi_reduction <add>, %5, %cst [2] : vector<16x128x512xf32> to vector<16x128xf32>
    %7 = arith.addf %3, %6 : vector<16x128xf32>
    %c0_5 = arith.constant 0 : index
    %c0_6 = arith.constant 0 : index
    %8 = vector.load %arg3[%c0_5, %c0_6] : memref<16x128xf32, #tpu.memory_space<vmem>>, vector<16x128xf32>
    tpu.vector_store %arg3[%c0_5, %c0_6], %7 {strides = array<i32>} : memref<16x128xf32, #tpu.memory_space<vmem>>, vector<16x128xf32>,
    %c1_i32 = arith.constant 1 : i32
    %9 = arith.cmpi eq, %arg1, %c1_i32 : i32
    %10 = arith.extui %9 : i1 to i32
    %c0_i32_7 = arith.constant 0 : i32
    %11 = arith.cmpi ne, %10, %c0_i32_7 : i32
    scf.if %11 {
      %c0_8 = arith.constant 0 : index
      %c0_9 = arith.constant 0 : index
      %12 = vector.load %arg3[%c0_8, %c0_9] : memref<16x128xf32, #tpu.memory_space<vmem>>, vector<16x128xf32>
      %cst_10 = arith.constant 9.765625E-4 : f32
      %13 = vector.broadcast %cst_10 : f32 to vector<16x128xf32>
      %14 = arith.mulf %12, %13 : vector<16x128xf32>
      %c0_11 = arith.constant 0 : index
      %c0_12 = arith.constant 0 : index
      %15 = vector.load %arg3[%c0_11, %c0_12] : memref<16x128xf32, #tpu.memory_space<vmem>>, vector<16x128xf32>
      tpu.vector_store %arg3[%c0_11, %c0_12], %14 {strides = array<i32>} : memref<16x128xf32, #tpu.memory_space<vmem>>, vector<16x128xf32>,
    } else {
    }
    return
  }
  func.func @transform_0(%arg0: i32, %arg1: i32) -> (i32, i32, i32) {
    %c0_i32 = arith.constant 0 : i32
    %c0_i32_0 = arith.constant 0 : i32
    return %c0_i32, %arg0, %arg1 : i32, i32, i32
  }
  func.func @transform_1(%arg0: i32, %arg1: i32) -> (i32, i32) {
    %c0_i32 = arith.constant 0 : i32
    %c0_i32_0 = arith.constant 0 : i32
    return %c0_i32, %arg0 : i32, i32
  }
}

</mosaic_0001>

<llo_original>
// kernel: tpu_custom_call.1
$region0: #{tpu_custom_call.1}
  #allocation0 [shape = 'u32[]', space=smem, size = 0x4, offset = 0x4, fixed_abs, tag = 'smem constant byte address 0x4 - core index']
  #allocation1 [shape = 'u32[144,128]{1,0:T(1,128)}', space=vmem, size = 0x12000, scoped, tag = 'internal scratch']
  %s0 = inlined_call_operand.hbm [shape: bf16[16,128,1024], index: 0, kind: input, shape index: {}]
  %s1 = inlined_call_operand.hbm [shape: f32[16,128], index: 1, kind: output, shape index: {}]
  %s2 = sld [smem:[#allocation0]]
  $region49: #{tpu_custom_call.1} parent=0
    _
  %s4 = ssub.s32 1, %s2
  %s5 = scalar_select 0, %s4, %s2
  $region1: #{tpu_custom_call.1} parent=0
    #allocation2 [shape = 'u8[4194304]{0}', space=vmem, size = 0x400000, scoped, tag = 'input window, operand 0']
    #allocation3 [shape = 's32[2]{0}', space=sflag, size = 0x8, scoped, tag = 'scoped memory for tpu_custom_call.1']
    #allocation4 [shape = 's32[2]{0}', space=sflag, size = 0x8, scoped, tag = 'scoped memory for tpu_custom_call.1']
    #allocation5 [shape = 'u8[8192]{0}', space=vmem, size = 0x2000, scoped, tag = 'output window, operand 0, single buffered']
    %6 = vsyncpa [#allocation3], 0
    %s7 = scalar_lea.sflag [#allocation3], 1
    %8 = vsyncpa %s7, 0
    %9 = vsyncpa [#allocation4], 0
    loop: start=0, step=1, limit=4
    $region2: #{tpu_custom_call.1} parent=1 // loop_pre_header
      _
    $region3: #{tpu_custom_call.1} parent=1 // loop_header
      %s11 = sphi 0, %s15
      %p12 = scmp.ge.s32.totalorder %s11, 4
      %s18 = sphi 0, %s30
      %s19 = sphi 0, %s26
      %s20 = sphi 0, %s18
      %s21 = sphi 0, %s19
      %s22 = sphi 0, %s20
      %s23 = sphi 0, %s21
      %s35 = sphi 0, %s37
      %s38 = sphi 0, %s35
      %s39 = sphi 0, %s38
      %s55 = sphi 0, %s39
      %s61 = sphi 0, %s63
      %s64 = sphi 0, %s61
      %s65 = sphi 0, %s64
      %s81 = sphi 0, %s65
    $region4: #{tpu_custom_call.1} parent=1 // loop_header_branch
      %14 = sbr.rel (%p12) target = $region8
    $region5: #{tpu_custom_call.1} parent=1 // loop_body
      %s16 = ssub.s32 %s11, 1
      %s17 = ssub.s32 %s11, 2
      %s24 = sadd.s32 1, %s19
      %p25 = scmp.ge.s32.totalorder %s24, 2
      %s26 = scalar_select %p25, 0, %s24
      %s27 = sadd.s32 1, %s18
      %s28 = scalar_select %p25, %s27, %s18
      %p29 = scmp.ge.s32.totalorder %s28, 1
      %s30 = scalar_select %p29, 0, %s28
      %s31 = ssub.s32 %s18, %s30
      %s32 = ssub.s32 %s19, %s26
      %s33 = sor.u32 %s31, %s32
      %p34 = scmp.eq.s32.totalorder %s33, 0
      %s36 = sadd.s32 %s35, 1
      %s37 = scalar_select %p34, %s35, %s36
      %p40 = pneg %p34
      %p41 = scmp.eq.s32.totalorder %s11, 1
      %p42 = por %p40, %p41
      %p43 = scmp.ne.s32.totalorder %s35, %s38
      %p44 = scmp.eq.s32.totalorder %s11, 0
      %p45 = por %p43, %p44
      %p46 = scmp.ne.s32.totalorder %s35, %s38
      %p47 = scmp.eq.s32.totalorder %s16, 1
      %p48 = por %p46, %p47
      %p49 = scmp.ne.s32.totalorder %s38, %s39
      %p50 = scmp.eq.s32.totalorder %s16, 0
      %p51 = por %p49, %p50
      %p52 = scmp.ne.s32.totalorder %s38, %s39
      %p53 = scmp.eq.s32.totalorder %s17, 1
      %p54 = por %p52, %p53
      %p56 = scmp.ne.s32.totalorder %s39, %s55
      %p57 = scmp.eq.s32.totalorder %s17, 0
      %p58 = por %p56, %p57
      %s59 = ssub.s32 %s18, %s30
      %p60 = scmp.eq.s32.totalorder %s59, 0
      %s62 = sadd.s32 %s61, 1
      %s63 = scalar_select %p60, %s61, %s62
      %p66 = pneg %p60
      %p67 = scmp.eq.s32.totalorder %s11, 1
      %p68 = por %p66, %p67
      %p69 = scmp.ne.s32.totalorder %s61, %s64
      %p70 = scmp.eq.s32.totalorder %s11, 0
      %p71 = por %p69, %p70
      %p72 = scmp.ne.s32.totalorder %s61, %s64
      %p73 = scmp.eq.s32.totalorder %s16, 1
      %p74 = por %p72, %p73
      %p75 = scmp.ne.s32.totalorder %s64, %s65
      %p76 = scmp.eq.s32.totalorder %s16, 0
      %p77 = por %p75, %p76
      %p78 = scmp.ne.s32.totalorder %s64, %s65
      %p79 = scmp.eq.s32.totalorder %s17, 1
      %p80 = por %p78, %p79
      %p82 = scmp.ne.s32.totalorder %s65, %s81
      %p83 = scmp.eq.s32.totalorder %s17, 0
      %p84 = por %p82, %p83
      %p85 = scmp.le.s32.totalorder 1, %s11
      %p86 = scmp.lt.s32.totalorder %s11, 3
      %p87 = pnand %p85, %p86
      %p88 = pneg %p87
      // Predicated region
      $region9: #{tpu_custom_call.1} parent=5 // pred_check
        _
      $region10: #{tpu_custom_call.1} parent=5 // pred_check_branch
        %90 = sbr.rel (%p87) target = $region12
      $region11: #{tpu_custom_call.1} parent=5 // pred_region
        %s91 = ssub.s32 %s11, 1
      $region12: #{tpu_custom_call.1} parent=5 // pred_fallthru
        _
      %p92 = scmp.lt.s32.totalorder %s11, 2
      // Predicated region
      $region13: #{tpu_custom_call.1} parent=5 // pred_check
        %p93 = pneg %p92
      $region14: #{tpu_custom_call.1} parent=5 // pred_check_branch
        %95 = sbr.rel (%p93) target = $region16
      $region15: #{tpu_custom_call.1} parent=5 // pred_region
        // Predicated region
        $region17: #{tpu_custom_call.1} parent=15 // pred_check
          %p96 = pneg %p45
        $region18: #{tpu_custom_call.1} parent=15 // pred_check_branch
          %98 = sbr.rel (%p96) target = $region20
        $region19: #{tpu_custom_call.1} parent=15 // pred_region
          %s99 = sand.u32 %s35, 1
          %s100 = scalar_lea.sflag [#allocation3], %s99
          %s101 = sand.u32 %s35, 1
          %s102 = smul.addr %s101, 4096
          %s103 = scalar_lea.vmem [#allocation2], %s102
          %s104 = smul.u32 16, %s18
          %s105 = smul.u32 4, %s19
          %s107 = ssub.s32 65536, 65536
          %108 = vsyncadd %s100, %s107
          %s109 = smul.addr %s104, 8
          %s110 = sadd.s32 %s105, %s109
          %s111 = smul.addr %s110, 64
          %s112 = scalar_lea.hbm %s0, %s111
          %s113 = sshll.u32 %s103, 4
          %s114 = int_to_ptr.vmem [resolvable:$true] %s113
          %119 = dma.hbm_to_vmem [thread:$0]  %s112, 65536, %s114, %s100, 512, 256, 16
        $region20: #{tpu_custom_call.1} parent=15 // pred_fallthru
          _
      $region16: #{tpu_custom_call.1} parent=5 // pred_fallthru
        _
      %p120 = scmp.le.s32.totalorder 1, %s11
      %p121 = scmp.lt.s32.totalorder %s11, 3
      %p122 = pnand %p120, %p121
      %p123 = pneg %p122
      // Predicated region
      $region21: #{tpu_custom_call.1} parent=5 // pred_check
        _
      $region22: #{tpu_custom_call.1} parent=5 // pred_check_branch
        %125 = sbr.rel (%p122) target = $region24
      $region23: #{tpu_custom_call.1} parent=5 // pred_region
        %s126 = ssub.s32 %s11, 1
        %s127 = sand.u32 %s38, 1
        %s128 = scalar_lea.sflag [#allocation3], %s127
        %s129 = sand.u32 %s38, 1
        %s130 = smul.addr %s129, 4096
        %s131 = scalar_lea.vmem [#allocation2], %s130
        // Predicated region
        $region25: #{tpu_custom_call.1} parent=23 // pred_check
          %p132 = pneg %p51
        $region26: #{tpu_custom_call.1} parent=23 // pred_check_branch
          %134 = sbr.rel (%p132) target = $region28
        $region27: #{tpu_custom_call.1} parent=23 // pred_region
          %135 = dma.done %s128, 65536
        $region28: #{tpu_custom_call.1} parent=23 // pred_fallthru
          _
        %s136 = sand.u32 %s38, 1
        %s137 = scalar_lea.sflag [#allocation3], %s136
        %s138 = sand.u32 %s38, 1
        %s139 = smul.addr %s138, 4096
        %s140 = scalar_lea.vmem [#allocation2], %s139
        %p141 = pneg %p51
        %p142 = pneg %p48
        %p143 = pneg %p77
        %p144 = pneg %p74
        %s145 = smul.u32 16, %s20
        %s146 = smul.u32 4, %s21
        %p147 = scmp.eq.s32.totalorder %s21, 0
        // Predicated region
        $region29: #{tpu_custom_call.1} parent=23 // pred_check
          %p148 = pneg %p147
        $region30: #{tpu_custom_call.1} parent=23 // pred_check_branch
          %150 = sbr.rel (%p148) target = $region32
        $region31: #{tpu_custom_call.1} parent=23 // pred_region
          %151 = vst [vmem:[#allocation5] sm:$0xff] 0.0
          %152 = vst [vmem:[#allocation5 + $0x8] sm:$0xff] 0.0
        $region32: #{tpu_custom_call.1} parent=23 // pred_fallthru
          _
        %v153 = vld [vmem:[#allocation5] sm:$0xff]
        %v154 = vld [vmem:[#allocation5 + $0x8] sm:$0xff]
        %v155 = vld [vmem:[%s131] sm:$0xff]
        %v156 = vld [vmem:[%s131 + $0x8] sm:$0xff]
        %v157 = vld [vmem:[%s131 + $0x10] sm:$0xff]
        %v158 = vld [vmem:[%s131 + $0x18] sm:$0xff]
        %v159 = vld [vmem:[%s131 + $0x20] sm:$0xff]
        %v160 = vld [vmem:[%s131 + $0x28] sm:$0xff]
        %v161 = vld [vmem:[%s131 + $0x30] sm:$0xff]
        %v162 = vld [vmem:[%s131 + $0x38] sm:$0xff]
        %v163 = vld [vmem:[%s131 + $0x40] sm:$0xff]
        %v164 = vld [vmem:[%s131 + $0x48] sm:$0xff]
        %v165 = vld [vmem:[%s131 + $0x50] sm:$0xff]
        %v166 = vld [vmem:[%s131 + $0x58] sm:$0xff]
        %v167 = vld [vmem:[%s131 + $0x60] sm:$0xff]
        %v168 = vld [vmem:[%s131 + $0x68] sm:$0xff]
        %v169 = vld [vmem:[%s131 + $0x70] sm:$0xff]
        %v170 = vld [vmem:[%s131 + $0x78] sm:$0xff]
        %v171 = vld [vmem:[%s131 + $0x80] sm:$0xff]
        %v172 = vld [vmem:[%s131 + $0x88] sm:$0xff]
        %v173 = vld [vmem:[%s131 + $0x90] sm:$0xff]
        %v174 = vld [vmem:[%s131 + $0x98] sm:$0xff]
        %v175 = vld [vmem:[%s131 + $0xa0] sm:$0xff]
        %v176 = vld [vmem:[%s131 + $0xa8] sm:$0xff]
        %v177 = vld [vmem:[%s131 + $0xb0] sm:$0xff]
        %v178 = vld [vmem:[%s131 + $0xb8] sm:$0xff]
        %v179 = vld [vmem:[%s131 + $0xc0] sm:$0xff]
        %v180 = vld [vmem:[%s131 + $0xc8] sm:$0xff]
        %v181 = vld [vmem:[%s131 + $0xd0] sm:$0xff]
        %v182 = vld [vmem:[%s131 + $0xd8] sm:$0xff]
        %v183 = vld [vmem:[%s131 + $0xe0] sm:$0xff]
        %v184 = vld [vmem:[%s131 + $0xe8] sm:$0xff]
        %v185 = vld [vmem:[%s131 + $0xf0] sm:$0xff]
        %v186 = vld [vmem:[%s131 + $0xf8] sm:$0xff]
        %v187 = vld [vmem:[%s131 + $0x100] sm:$0xff]
        %v188 = vld [vmem:[%s131 + $0x108] sm:$0xff]
        %v189 = vld [vmem:[%s131 + $0x110] sm:$0xff]
        %v190 = vld [vmem:[%s131 + $0x118] sm:$0xff]
        %v191 = vld [vmem:[%s131 + $0x120] sm:$0xff]
        %v192 = vld [vmem:[%s131 + $0x128] sm:$0xff]
        %v193 = vld [vmem:[%s131 + $0x130] sm:$0xff]
        %v194 = vld [vmem:[%s131 + $0x138] sm:$0xff]
        %v195 = vld [vmem:[%s131 + $0x140] sm:$0xff]
        %v196 = vld [vmem:[%s131 + $0x148] sm:$0xff]
        %v197 = vld [vmem:[%s131 + $0x150] sm:$0xff]
        %v198 = vld [vmem:[%s131 + $0x158] sm:$0xff]
        %v199 = vld [vmem:[%s131 + $0x160] sm:$0xff]
        %v200 = vld [vmem:[%s131 + $0x168] sm:$0xff]
        %v201 = vld [vmem:[%s131 + $0x170] sm:$0xff]
        %v202 = vld [vmem:[%s131 + $0x178] sm:$0xff]
        %v203 = vld [vmem:[%s131 + $0x180] sm:$0xff]
        %v204 = vld [vmem:[%s131 + $0x188] sm:$0xff]
        %v205 = vld [vmem:[%s131 + $0x190] sm:$0xff]
        %v206 = vld [vmem:[%s131 + $0x198] sm:$0xff]
        %v207 = vld [vmem:[%s131 + $0x1a0] sm:$0xff]
        %v208 = vld [vmem:[%s131 + $0x1a8] sm:$0xff]
        %v209 = vld [vmem:[%s131 + $0x1b0] sm:$0xff]
        %v210 = vld [vmem:[%s131 + $0x1b8] sm:$0xff]
        %v211 = vld [vmem:[%s131 + $0x1c0] sm:$0xff]
        %v212 = vld [vmem:[%s131 + $0x1c8] sm:$0xff]
        %v213 = vld [vmem:[%s131 + $0x1d0] sm:$0xff]
        %v214 = vld [vmem:[%s131 + $0x1d8] sm:$0xff]
        %v215 = vld [vmem:[%s131 + $0x1e0] sm:$0xff]
        %v216 = vld [vmem:[%s131 + $0x1e8] sm:$0xff]
        %v217 = vld [vmem:[%s131 + $0x1f0] sm:$0xff]
        %v218 = vld [vmem:[%s131 + $0x1f8] sm:$0xff]
        %v219 = vld [vmem:[%s131 + $0x200] sm:$0xff]
        %v220 = vld [vmem:[%s131 + $0x208] sm:$0xff]
        %v221 = vld [vmem:[%s131 + $0x210] sm:$0xff]
        %v222 = vld [vmem:[%s131 + $0x218] sm:$0xff]
        %v223 = vld [vmem:[%s131 + $0x220] sm:$0xff]
        %v224 = vld [vmem:[%s131 + $0x228] sm:$0xff]
        %v225 = vld [vmem:[%s131 + $0x230] sm:$0xff]
        %v226 = vld [vmem:[%s131 + $0x238] sm:$0xff]
        %v227 = vld [vmem:[%s131 + $0x240] sm:$0xff]
        %v228 = vld [vmem:[%s131 + $0x248] sm:$0xff]
        %v229 = vld [vmem:[%s131 + $0x250] sm:$0xff]
        %v230 = vld [vmem:[%s131 + $0x258] sm:$0xff]
        %v231 = vld [vmem:[%s131 + $0x260] sm:$0xff]
        %v232 = vld [vmem:[%s131 + $0x268] sm:$0xff]
        %v233 = vld [vmem:[%s131 + $0x270] sm:$0xff]
        %v234 = vld [vmem:[%s131 + $0x278] sm:$0xff]
        %v235 = vld [vmem:[%s131 + $0x280] sm:$0xff]
        %v236 = vld [vmem:[%s131 + $0x288] sm:$0xff]
        %v237 = vld [vmem:[%s131 + $0x290] sm:$0xff]
        %v238 = vld [vmem:[%s131 + $0x298] sm:$0xff]
        %v239 = vld [vmem:[%s131 + $0x2a0] sm:$0xff]
        %v240 = vld [vmem:[%s131 + $0x2a8] sm:$0xff]
        %v241 = vld [vmem:[%s131 + $0x2b0] sm:$0xff]
        %v242 = vld [vmem:[%s131 + $0x2b8] sm:$0xff]
        %v243 = vld [vmem:[%s131 + $0x2c0] sm:$0xff]
        %v244 = vld [vmem:[%s131 + $0x2c8] sm:$0xff]
        %v245 = vld [vmem:[%s131 + $0x2d0] sm:$0xff]
        %v246 = vld [vmem:[%s131 + $0x2d8] sm:$0xff]
        %v247 = vld [vmem:[%s131 + $0x2e0] sm:$0xff]
        %v248 = vld [vmem:[%s131 + $0x2e8] sm:$0xff]
        %v249 = vld [vmem:[%s131 + $0x2f0] sm:$0xff]
        %v250 = vld [vmem:[%s131 + $0x2f8] sm:$0xff]
        %v251 = vld [vmem:[%s131 + $0x300] sm:$0xff]
        %v252 = vld [vmem:[%s131 + $0x308] sm:$0xff]
        %v253 = vld [vmem:[%s131 + $0x310] sm:$0xff]
        %v254 = vld [vmem:[%s131 + $0x318] sm:$0xff]
        %v255 = vld [vmem:[%s131 + $0x320] sm:$0xff]
        %v256 = vld [vmem:[%s131 + $0x328] sm:$0xff]
        %v257 = vld [vmem:[%s131 + $0x330] sm:$0xff]
        %v258 = vld [vmem:[%s131 + $0x338] sm:$0xff]
        %v259 = vld [vmem:[%s131 + $0x340] sm:$0xff]
        %v260 = vld [vmem:[%s131 + $0x348] sm:$0xff]
        %v261 = vld [vmem:[%s131 + $0x350] sm:$0xff]
        %v262 = vld [vmem:[%s131 + $0x358] sm:$0xff]
        %v263 = vld [vmem:[%s131 + $0x360] sm:$0xff]
        %v264 = vld [vmem:[%s131 + $0x368] sm:$0xff]
        %v265 = vld [vmem:[%s131 + $0x370] sm:$0xff]
        %v266 = vld [vmem:[%s131 + $0x378] sm:$0xff]
        %v267 = vld [vmem:[%s131 + $0x380] sm:$0xff]
        %v268 = vld [vmem:[%s131 + $0x388] sm:$0xff]
        %v269 = vld [vmem:[%s131 + $0x390] sm:$0xff]
        %v270 = vld [vmem:[%s131 + $0x398] sm:$0xff]
        %v271 = vld [vmem:[%s131 + $0x3a0] sm:$0xff]
        %v272 = vld [vmem:[%s131 + $0x3a8] sm:$0xff]
        %v273 = vld [vmem:[%s131 + $0x3b0] sm:$0xff]
        %v274 = vld [vmem:[%s131 + $0x3b8] sm:$0xff]
        %v275 = vld [vmem:[%s131 + $0x3c0] sm:$0xff]
        %v276 = vld [vmem:[%s131 + $0x3c8] sm:$0xff]
        %v277 = vld [vmem:[%s131 + $0x3d0] sm:$0xff]
        %v278 = vld [vmem:[%s131 + $0x3d8] sm:$0xff]
        %v279 = vld [vmem:[%s131 + $0x3e0] sm:$0xff]
        %v280 = vld [vmem:[%s131 + $0x3e8] sm:$0xff]
        %v281 = vld [vmem:[%s131 + $0x3f0] sm:$0xff]
        %v282 = vld [vmem:[%s131 + $0x3f8] sm:$0xff]
        %v283 = vld [vmem:[%s131 + $0x400] sm:$0xff]
        %v284 = vld [vmem:[%s131 + $0x408] sm:$0xff]
        %v285 = vld [vmem:[%s131 + $0x410] sm:$0xff]
        %v286 = vld [vmem:[%s131 + $0x418] sm:$0xff]
        %v287 = vld [vmem:[%s131 + $0x420] sm:$0xff]
        %v288 = vld [vmem:[%s131 + $0x428] sm:$0xff]
        %v289 = vld [vmem:[%s131 + $0x430] sm:$0xff]
        %v290 = vld [vmem:[%s131 + $0x438] sm:$0xff]
        %v291 = vld [vmem:[%s131 + $0x440] sm:$0xff]
        %v292 = vld [vmem:[%s131 + $0x448] sm:$0xff]
        %v293 = vld [vmem:[%s131 + $0x450] sm:$0xff]
        %v294 = vld [vmem:[%s131 + $0x458] sm:$0xff]
        %v295 = vld [vmem:[%s131 + $0x460] sm:$0xff]
        %v296 = vld [vmem:[%s131 + $0x468] sm:$0xff]
        %v297 = vld [vmem:[%s131 + $0x470] sm:$0xff]
        %v298 = vld [vmem:[%s131 + $0x478] sm:$0xff]
        %v299 = vld [vmem:[%s131 + $0x480] sm:$0xff]
        %v300 = vld [vmem:[%s131 + $0x488] sm:$0xff]
        %v301 = vld [vmem:[%s131 + $0x490] sm:$0xff]
        %v302 = vld [vmem:[%s131 + $0x498] sm:$0xff]
        %v303 = vld [vmem:[%s131 + $0x4a0] sm:$0xff]
        %v304 = vld [vmem:[%s131 + $0x4a8] sm:$0xff]
        %v305 = vld [vmem:[%s131 + $0x4b0] sm:$0xff]
        %v306 = vld [vmem:[%s131 + $0x4b8] sm:$0xff]
        %v307 = vld [vmem:[%s131 + $0x4c0] sm:$0xff]
        %v308 = vld [vmem:[%s131 + $0x4c8] sm:$0xff]
        %v309 = vld [vmem:[%s131 + $0x4d0] sm:$0xff]
        %v310 = vld [vmem:[%s131 + $0x4d8] sm:$0xff]
        %v311 = vld [vmem:[%s131 + $0x4e0] sm:$0xff]
        %v312 = vld [vmem:[%s131 + $0x4e8] sm:$0xff]
        %v313 = vld [vmem:[%s131 + $0x4f0] sm:$0xff]
        %v314 = vld [vmem:[%s131 + $0x4f8] sm:$0xff]
        %v315 = vld [vmem:[%s131 + $0x500] sm:$0xff]
        %v316 = vld [vmem:[%s131 + $0x508] sm:$0xff]
        %v317 = vld [vmem:[%s131 + $0x510] sm:$0xff]
        %v318 = vld [vmem:[%s131 + $0x518] sm:$0xff]
        %v319 = vld [vmem:[%s131 + $0x520] sm:$0xff]
        %v320 = vld [vmem:[%s131 + $0x528] sm:$0xff]
        %v321 = vld [vmem:[%s131 + $0x530] sm:$0xff]
        %v322 = vld [vmem:[%s131 + $0x538] sm:$0xff]
        %v323 = vld [vmem:[%s131 + $0x540] sm:$0xff]
        %v324 = vld [vmem:[%s131 + $0x548] sm:$0xff]
        %v325 = vld [vmem:[%s131 + $0x550] sm:$0xff]
        %v326 = vld [vmem:[%s131 + $0x558] sm:$0xff]
        %v327 = vld [vmem:[%s131 + $0x560] sm:$0xff]
        %v328 = vld [vmem:[%s131 + $0x568] sm:$0xff]
        %v329 = vld [vmem:[%s131 + $0x570] sm:$0xff]
        %v330 = vld [vmem:[%s131 + $0x578] sm:$0xff]
        %v331 = vld [vmem:[%s131 + $0x580] sm:$0xff]
        %v332 = vld [vmem:[%s131 + $0x588] sm:$0xff]
        %v333 = vld [vmem:[%s131 + $0x590] sm:$0xff]
        %v334 = vld [vmem:[%s131 + $0x598] sm:$0xff]
        %v335 = vld [vmem:[%s131 + $0x5a0] sm:$0xff]
        %v336 = vld [vmem:[%s131 + $0x5a8] sm:$0xff]
        %v337 = vld [vmem:[%s131 + $0x5b0] sm:$0xff]
        %v338 = vld [vmem:[%s131 + $0x5b8] sm:$0xff]
        %v339 = vld [vmem:[%s131 + $0x5c0] sm:$0xff]
        %v340 = vld [vmem:[%s131 + $0x5c8] sm:$0xff]
        %v341 = vld [vmem:[%s131 + $0x5d0] sm:$0xff]
        %v342 = vld [vmem:[%s131 + $0x5d8] sm:$0xff]
        %v343 = vld [vmem:[%s131 + $0x5e0] sm:$0xff]
        %v344 = vld [vmem:[%s131 + $0x5e8] sm:$0xff]
        %v345 = vld [vmem:[%s131 + $0x5f0] sm:$0xff]
        %v346 = vld [vmem:[%s131 + $0x5f8] sm:$0xff]
        %v347 = vld [vmem:[%s131 + $0x600] sm:$0xff]
        %v348 = vld [vmem:[%s131 + $0x608] sm:$0xff]
        %v349 = vld [vmem:[%s131 + $0x610] sm:$0xff]
        %v350 = vld [vmem:[%s131 + $0x618] sm:$0xff]
        %v351 = vld [vmem:[%s131 + $0x620] sm:$0xff]
        %v352 = vld [vmem:[%s131 + $0x628] sm:$0xff]
        %v353 = vld [vmem:[%s131 + $0x630] sm:$0xff]
        %v354 = vld [vmem:[%s131 + $0x638] sm:$0xff]
        %v355 = vld [vmem:[%s131 + $0x640] sm:$0xff]
        %v356 = vld [vmem:[%s131 + $0x648] sm:$0xff]
        %v357 = vld [vmem:[%s131 + $0x650] sm:$0xff]
        %v358 = vld [vmem:[%s131 + $0x658] sm:$0xff]
        %v359 = vld [vmem:[%s131 + $0x660] sm:$0xff]
        %v360 = vld [vmem:[%s131 + $0x668] sm:$0xff]
        %v361 = vld [vmem:[%s131 + $0x670] sm:$0xff]
        %v362 = vld [vmem:[%s131 + $0x678] sm:$0xff]
        %v363 = vld [vmem:[%s131 + $0x680] sm:$0xff]
        %v364 = vld [vmem:[%s131 + $0x688] sm:$0xff]
        %v365 = vld [vmem:[%s131 + $0x690] sm:$0xff]
        %v366 = vld [vmem:[%s131 + $0x698] sm:$0xff]
        %v367 = vld [vmem:[%s131 + $0x6a0] sm:$0xff]
        %v368 = vld [vmem:[%s131 + $0x6a8] sm:$0xff]
        %v369 = vld [vmem:[%s131 + $0x6b0] sm:$0xff]
        %v370 = vld [vmem:[%s131 + $0x6b8] sm:$0xff]
        %v371 = vld [vmem:[%s131 + $0x6c0] sm:$0xff]
        %v372 = vld [vmem:[%s131 + $0x6c8] sm:$0xff]
        %v373 = vld [vmem:[%s131 + $0x6d0] sm:$0xff]
        %v374 = vld [vmem:[%s131 + $0x6d8] sm:$0xff]
        %v375 = vld [vmem:[%s131 + $0x6e0] sm:$0xff]
        %v376 = vld [vmem:[%s131 + $0x6e8] sm:$0xff]
        %v377 = vld [vmem:[%s131 + $0x6f0] sm:$0xff]
        %v378 = vld [vmem:[%s131 + $0x6f8] sm:$0xff]
        %v379 = vld [vmem:[%s131 + $0x700] sm:$0xff]
        %v380 = vld [vmem:[%s131 + $0x708] sm:$0xff]
        %v381 = vld [vmem:[%s131 + $0x710] sm:$0xff]
        %v382 = vld [vmem:[%s131 + $0x718] sm:$0xff]
        %v383 = vld [vmem:[%s131 + $0x720] sm:$0xff]
        %v384 = vld [vmem:[%s131 + $0x728] sm:$0xff]
        %v385 = vld [vmem:[%s131 + $0x730] sm:$0xff]
        %v386 = vld [vmem:[%s131 + $0x738] sm:$0xff]
        %v387 = vld [vmem:[%s131 + $0x740] sm:$0xff]
        %v388 = vld [vmem:[%s131 + $0x748] sm:$0xff]
        %v389 = vld [vmem:[%s131 + $0x750] sm:$0xff]
        %v390 = vld [vmem:[%s131 + $0x758] sm:$0xff]
        %v391 = vld [vmem:[%s131 + $0x760] sm:$0xff]
        %v392 = vld [vmem:[%s131 + $0x768] sm:$0xff]
        %v393 = vld [vmem:[%s131 + $0x770] sm:$0xff]
        %v394 = vld [vmem:[%s131 + $0x778] sm:$0xff]
        %v395 = vld [vmem:[%s131 + $0x780] sm:$0xff]
        %v396 = vld [vmem:[%s131 + $0x788] sm:$0xff]
        %v397 = vld [vmem:[%s131 + $0x790] sm:$0xff]
        %v398 = vld [vmem:[%s131 + $0x798] sm:$0xff]
        %v399 = vld [vmem:[%s131 + $0x7a0] sm:$0xff]
        %v400 = vld [vmem:[%s131 + $0x7a8] sm:$0xff]
        %v401 = vld [vmem:[%s131 + $0x7b0] sm:$0xff]
        %v402 = vld [vmem:[%s131 + $0x7b8] sm:$0xff]
        %v403 = vld [vmem:[%s131 + $0x7c0] sm:$0xff]
        %v404 = vld [vmem:[%s131 + $0x7c8] sm:$0xff]
        %v405 = vld [vmem:[%s131 + $0x7d0] sm:$0xff]
        %v406 = vld [vmem:[%s131 + $0x7d8] sm:$0xff]
        %v407 = vld [vmem:[%s131 + $0x7e0] sm:$0xff]
        %v408 = vld [vmem:[%s131 + $0x7e8] sm:$0xff]
        %v409 = vld [vmem:[%s131 + $0x7f0] sm:$0xff]
        %v410 = vld [vmem:[%s131 + $0x7f8] sm:$0xff]
        %v411 = vld [vmem:[%s131 + $0x800] sm:$0xff]
        %v412 = vld [vmem:[%s131 + $0x808] sm:$0xff]
        %v413 = vld [vmem:[%s131 + $0x810] sm:$0xff]
        %v414 = vld [vmem:[%s131 + $0x818] sm:$0xff]
        %v415 = vld [vmem:[%s131 + $0x820] sm:$0xff]
        %v416 = vld [vmem:[%s131 + $0x828] sm:$0xff]
        %v417 = vld [vmem:[%s131 + $0x830] sm:$0xff]
        %v418 = vld [vmem:[%s131 + $0x838] sm:$0xff]
        %v419 = vld [vmem:[%s131 + $0x840] sm:$0xff]
        %v420 = vld [vmem:[%s131 + $0x848] sm:$0xff]
        %v421 = vld [vmem:[%s131 + $0x850] sm:$0xff]
        %v422 = vld [vmem:[%s131 + $0x858] sm:$0xff]
        %v423 = vld [vmem:[%s131 + $0x860] sm:$0xff]
        %v424 = vld [vmem:[%s131 + $0x868] sm:$0xff]
        %v425 = vld [vmem:[%s131 + $0x870] sm:$0xff]
        %v426 = vld [vmem:[%s131 + $0x878] sm:$0xff]
        %v427 = vld [vmem:[%s131 + $0x880] sm:$0xff]
        %v428 = vld [vmem:[%s131 + $0x888] sm:$0xff]
        %v429 = vld [vmem:[%s131 + $0x890] sm:$0xff]
        %v430 = vld [vmem:[%s131 + $0x898] sm:$0xff]
        %v431 = vld [vmem:[%s131 + $0x8a0] sm:$0xff]
        %v432 = vld [vmem:[%s131 + $0x8a8] sm:$0xff]
        %v433 = vld [vmem:[%s131 + $0x8b0] sm:$0xff]
        %v434 = vld [vmem:[%s131 + $0x8b8] sm:$0xff]
        %v435 = vld [vmem:[%s131 + $0x8c0] sm:$0xff]
        %v436 = vld [vmem:[%s131 + $0x8c8] sm:$0xff]
        %v437 = vld [vmem:[%s131 + $0x8d0] sm:$0xff]
        %v438 = vld [vmem:[%s131 + $0x8d8] sm:$0xff]
        %v439 = vld [vmem:[%s131 + $0x8e0] sm:$0xff]
        %v440 = vld [vmem:[%s131 + $0x8e8] sm:$0xff]
        %v441 = vld [vmem:[%s131 + $0x8f0] sm:$0xff]
        %v442 = vld [vmem:[%s131 + $0x8f8] sm:$0xff]
        %v443 = vld [vmem:[%s131 + $0x900] sm:$0xff]
        %v444 = vld [vmem:[%s131 + $0x908] sm:$0xff]
        %v445 = vld [vmem:[%s131 + $0x910] sm:$0xff]
        %v446 = vld [vmem:[%s131 + $0x918] sm:$0xff]
        %v447 = vld [vmem:[%s131 + $0x920] sm:$0xff]
        %v448 = vld [vmem:[%s131 + $0x928] sm:$0xff]
        %v449 = vld [vmem:[%s131 + $0x930] sm:$0xff]
        %v450 = vld [vmem:[%s131 + $0x938] sm:$0xff]
        %v451 = vld [vmem:[%s131 + $0x940] sm:$0xff]
        %v452 = vld [vmem:[%s131 + $0x948] sm:$0xff]
        %v453 = vld [vmem:[%s131 + $0x950] sm:$0xff]
        %v454 = vld [vmem:[%s131 + $0x958] sm:$0xff]
        %v455 = vld [vmem:[%s131 + $0x960] sm:$0xff]
        %v456 = vld [vmem:[%s131 + $0x968] sm:$0xff]
        %v457 = vld [vmem:[%s131 + $0x970] sm:$0xff]
        %v458 = vld [vmem:[%s131 + $0x978] sm:$0xff]
        %v459 = vld [vmem:[%s131 + $0x980] sm:$0xff]
        %v460 = vld [vmem:[%s131 + $0x988] sm:$0xff]
        %v461 = vld [vmem:[%s131 + $0x990] sm:$0xff]
        %v462 = vld [vmem:[%s131 + $0x998] sm:$0xff]
        %v463 = vld [vmem:[%s131 + $0x9a0] sm:$0xff]
        %v464 = vld [vmem:[%s131 + $0x9a8] sm:$0xff]
        %v465 = vld [vmem:[%s131 + $0x9b0] sm:$0xff]
        %v466 = vld [vmem:[%s131 + $0x9b8] sm:$0xff]
        %v467 = vld [vmem:[%s131 + $0x9c0] sm:$0xff]
        %v468 = vld [vmem:[%s131 + $0x9c8] sm:$0xff]
        %v469 = vld [vmem:[%s131 + $0x9d0] sm:$0xff]
        %v470 = vld [vmem:[%s131 + $0x9d8] sm:$0xff]
        %v471 = vld [vmem:[%s131 + $0x9e0] sm:$0xff]
        %v472 = vld [vmem:[%s131 + $0x9e8] sm:$0xff]
        %v473 = vld [vmem:[%s131 + $0x9f0] sm:$0xff]
        %v474 = vld [vmem:[%s131 + $0x9f8] sm:$0xff]
        %v475 = vld [vmem:[%s131 + $0xa00] sm:$0xff]
        %v476 = vld [vmem:[%s131 + $0xa08] sm:$0xff]
        %v477 = vld [vmem:[%s131 + $0xa10] sm:$0xff]
        %v478 = vld [vmem:[%s131 + $0xa18] sm:$0xff]
        %v479 = vld [vmem:[%s131 + $0xa20] sm:$0xff]
        %v480 = vld [vmem:[%s131 + $0xa28] sm:$0xff]
        %v481 = vld [vmem:[%s131 + $0xa30] sm:$0xff]
        %v482 = vld [vmem:[%s131 + $0xa38] sm:$0xff]
        %v483 = vld [vmem:[%s131 + $0xa40] sm:$0xff]
        %v484 = vld [vmem:[%s131 + $0xa48] sm:$0xff]
        %v485 = vld [vmem:[%s131 + $0xa50] sm:$0xff]
        %v486 = vld [vmem:[%s131 + $0xa58] sm:$0xff]
        %v487 = vld [vmem:[%s131 + $0xa60] sm:$0xff]
        %v488 = vld [vmem:[%s131 + $0xa68] sm:$0xff]
        %v489 = vld [vmem:[%s131 + $0xa70] sm:$0xff]
        %v490 = vld [vmem:[%s131 + $0xa78] sm:$0xff]
        %v491 = vld [vmem:[%s131 + $0xa80] sm:$0xff]
        %v492 = vld [vmem:[%s131 + $0xa88] sm:$0xff]
        %v493 = vld [vmem:[%s131 + $0xa90] sm:$0xff]
        %v494 = vld [vmem:[%s131 + $0xa98] sm:$0xff]
        %v495 = vld [vmem:[%s131 + $0xaa0] sm:$0xff]
        %v496 = vld [vmem:[%s131 + $0xaa8] sm:$0xff]
        %v497 = vld [vmem:[%s131 + $0xab0] sm:$0xff]
        %v498 = vld [vmem:[%s131 + $0xab8] sm:$0xff]
        %v499 = vld [vmem:[%s131 + $0xac0] sm:$0xff]
        %v500 = vld [vmem:[%s131 + $0xac8] sm:$0xff]
        %v501 = vld [vmem:[%s131 + $0xad0] sm:$0xff]
        %v502 = vld [vmem:[%s131 + $0xad8] sm:$0xff]
        %v503 = vld [vmem:[%s131 + $0xae0] sm:$0xff]
        %v504 = vld [vmem:[%s131 + $0xae8] sm:$0xff]
        %v505 = vld [vmem:[%s131 + $0xaf0] sm:$0xff]
        %v506 = vld [vmem:[%s131 + $0xaf8] sm:$0xff]
        %v507 = vld [vmem:[%s131 + $0xb00] sm:$0xff]
        %v508 = vld [vmem:[%s131 + $0xb08] sm:$0xff]
        %v509 = vld [vmem:[%s131 + $0xb10] sm:$0xff]
        %v510 = vld [vmem:[%s131 + $0xb18] sm:$0xff]
        %v511 = vld [vmem:[%s131 + $0xb20] sm:$0xff]
        %v512 = vld [vmem:[%s131 + $0xb28] sm:$0xff]
        %v513 = vld [vmem:[%s131 + $0xb30] sm:$0xff]
        %v514 = vld [vmem:[%s131 + $0xb38] sm:$0xff]
        %v515 = vld [vmem:[%s131 + $0xb40] sm:$0xff]
        %v516 = vld [vmem:[%s131 + $0xb48] sm:$0xff]
        %v517 = vld [vmem:[%s131 + $0xb50] sm:$0xff]
        %v518 = vld [vmem:[%s131 + $0xb58] sm:$0xff]
        %v519 = vld [vmem:[%s131 + $0xb60] sm:$0xff]
        %v520 = vld [vmem:[%s131 + $0xb68] sm:$0xff]
        %v521 = vld [vmem:[%s131 + $0xb70] sm:$0xff]
        %v522 = vld [vmem:[%s131 + $0xb78] sm:$0xff]
        %v523 = vld [vmem:[%s131 + $0xb80] sm:$0xff]
        %v524 = vld [vmem:[%s131 + $0xb88] sm:$0xff]
        %v525 = vld [vmem:[%s131 + $0xb90] sm:$0xff]
        %v526 = vld [vmem:[%s131 + $0xb98] sm:$0xff]
        %v527 = vld [vmem:[%s131 + $0xba0] sm:$0xff]
        %v528 = vld [vmem:[%s131 + $0xba8] sm:$0xff]
        %v529 = vld [vmem:[%s131 + $0xbb0] sm:$0xff]
        %v530 = vld [vmem:[%s131 + $0xbb8] sm:$0xff]
        %v531 = vld [vmem:[%s131 + $0xbc0] sm:$0xff]
        %v532 = vld [vmem:[%s131 + $0xbc8] sm:$0xff]
        %v533 = vld [vmem:[%s131 + $0xbd0] sm:$0xff]
        %v534 = vld [vmem:[%s131 + $0xbd8] sm:$0xff]
        %v535 = vld [vmem:[%s131 + $0xbe0] sm:$0xff]
        %v536 = vld [vmem:[%s131 + $0xbe8] sm:$0xff]
        %v537 = vld [vmem:[%s131 + $0xbf0] sm:$0xff]
        %v538 = vld [vmem:[%s131 + $0xbf8] sm:$0xff]
        %v539 = vld [vmem:[%s131 + $0xc00] sm:$0xff]
        %v540 = vld [vmem:[%s131 + $0xc08] sm:$0xff]
        %v541 = vld [vmem:[%s131 + $0xc10] sm:$0xff]
        %v542 = vld [vmem:[%s131 + $0xc18] sm:$0xff]
        %v543 = vld [vmem:[%s131 + $0xc20] sm:$0xff]
        %v544 = vld [vmem:[%s131 + $0xc28] sm:$0xff]
        %v545 = vld [vmem:[%s131 + $0xc30] sm:$0xff]
        %v546 = vld [vmem:[%s131 + $0xc38] sm:$0xff]
        %v547 = vld [vmem:[%s131 + $0xc40] sm:$0xff]
        %v548 = vld [vmem:[%s131 + $0xc48] sm:$0xff]
        %v549 = vld [vmem:[%s131 + $0xc50] sm:$0xff]
        %v550 = vld [vmem:[%s131 + $0xc58] sm:$0xff]
        %v551 = vld [vmem:[%s131 + $0xc60] sm:$0xff]
        %v552 = vld [vmem:[%s131 + $0xc68] sm:$0xff]
        %v553 = vld [vmem:[%s131 + $0xc70] sm:$0xff]
        %v554 = vld [vmem:[%s131 + $0xc78] sm:$0xff]
        %v555 = vld [vmem:[%s131 + $0xc80] sm:$0xff]
        %v556 = vld [vmem:[%s131 + $0xc88] sm:$0xff]
        %v557 = vld [vmem:[%s131 + $0xc90] sm:$0xff]
        %v558 = vld [vmem:[%s131 + $0xc98] sm:$0xff]
        %v559 = vld [vmem:[%s131 + $0xca0] sm:$0xff]
        %v560 = vld [vmem:[%s131 + $0xca8] sm:$0xff]
        %v561 = vld [vmem:[%s131 + $0xcb0] sm:$0xff]
        %v562 = vld [vmem:[%s131 + $0xcb8] sm:$0xff]
        %v563 = vld [vmem:[%s131 + $0xcc0] sm:$0xff]
        %v564 = vld [vmem:[%s131 + $0xcc8] sm:$0xff]
        %v565 = vld [vmem:[%s131 + $0xcd0] sm:$0xff]
        %v566 = vld [vmem:[%s131 + $0xcd8] sm:$0xff]
        %v567 = vld [vmem:[%s131 + $0xce0] sm:$0xff]
        %v568 = vld [vmem:[%s131 + $0xce8] sm:$0xff]
        %v569 = vld [vmem:[%s131 + $0xcf0] sm:$0xff]
        %v570 = vld [vmem:[%s131 + $0xcf8] sm:$0xff]
        %v571 = vld [vmem:[%s131 + $0xd00] sm:$0xff]
        %v572 = vld [vmem:[%s131 + $0xd08] sm:$0xff]
        %v573 = vld [vmem:[%s131 + $0xd10] sm:$0xff]
        %v574 = vld [vmem:[%s131 + $0xd18] sm:$0xff]
        %v575 = vld [vmem:[%s131 + $0xd20] sm:$0xff]
        %v576 = vld [vmem:[%s131 + $0xd28] sm:$0xff]
        %v577 = vld [vmem:[%s131 + $0xd30] sm:$0xff]
        %v578 = vld [vmem:[%s131 + $0xd38] sm:$0xff]
        %v579 = vld [vmem:[%s131 + $0xd40] sm:$0xff]
        %v580 = vld [vmem:[%s131 + $0xd48] sm:$0xff]
        %v581 = vld [vmem:[%s131 + $0xd50] sm:$0xff]
        %v582 = vld [vmem:[%s131 + $0xd58] sm:$0xff]
        %v583 = vld [vmem:[%s131 + $0xd60] sm:$0xff]
        %v584 = vld [vmem:[%s131 + $0xd68] sm:$0xff]
        %v585 = vld [vmem:[%s131 + $0xd70] sm:$0xff]
        %v586 = vld [vmem:[%s131 + $0xd78] sm:$0xff]
        %v587 = vld [vmem:[%s131 + $0xd80] sm:$0xff]
        %v588 = vld [vmem:[%s131 + $0xd88] sm:$0xff]
        %v589 = vld [vmem:[%s131 + $0xd90] sm:$0xff]
        %v590 = vld [vmem:[%s131 + $0xd98] sm:$0xff]
        %v591 = vld [vmem:[%s131 + $0xda0] sm:$0xff]
        %v592 = vld [vmem:[%s131 + $0xda8] sm:$0xff]
        %v593 = vld [vmem:[%s131 + $0xdb0] sm:$0xff]
        %v594 = vld [vmem:[%s131 + $0xdb8] sm:$0xff]
        %v595 = vld [vmem:[%s131 + $0xdc0] sm:$0xff]
        %v596 = vld [vmem:[%s131 + $0xdc8] sm:$0xff]
        %v597 = vld [vmem:[%s131 + $0xdd0] sm:$0xff]
        %v598 = vld [vmem:[%s131 + $0xdd8] sm:$0xff]
        %v599 = vld [vmem:[%s131 + $0xde0] sm:$0xff]
        %v600 = vld [vmem:[%s131 + $0xde8] sm:$0xff]
        %v601 = vld [vmem:[%s131 + $0xdf0] sm:$0xff]
        %v602 = vld [vmem:[%s131 + $0xdf8] sm:$0xff]
        %v603 = vld [vmem:[%s131 + $0xe00] sm:$0xff]
        %v604 = vld [vmem:[%s131 + $0xe08] sm:$0xff]
        %v605 = vld [vmem:[%s131 + $0xe10] sm:$0xff]
        %v606 = vld [vmem:[%s131 + $0xe18] sm:$0xff]
        %v607 = vld [vmem:[%s131 + $0xe20] sm:$0xff]
        %v608 = vld [vmem:[%s131 + $0xe28] sm:$0xff]
        %v609 = vld [vmem:[%s131 + $0xe30] sm:$0xff]
        %v610 = vld [vmem:[%s131 + $0xe38] sm:$0xff]
        %v611 = vld [vmem:[%s131 + $0xe40] sm:$0xff]
        %v612 = vld [vmem:[%s131 + $0xe48] sm:$0xff]
        %v613 = vld [vmem:[%s131 + $0xe50] sm:$0xff]
        %v614 = vld [vmem:[%s131 + $0xe58] sm:$0xff]
        %v615 = vld [vmem:[%s131 + $0xe60] sm:$0xff]
        %v616 = vld [vmem:[%s131 + $0xe68] sm:$0xff]
        %v617 = vld [vmem:[%s131 + $0xe70] sm:$0xff]
        %v618 = vld [vmem:[%s131 + $0xe78] sm:$0xff]
        %v619 = vld [vmem:[%s131 + $0xe80] sm:$0xff]
        %v620 = vld [vmem:[%s131 + $0xe88] sm:$0xff]
        %v621 = vld [vmem:[%s131 + $0xe90] sm:$0xff]
        %v622 = vld [vmem:[%s131 + $0xe98] sm:$0xff]
        %v623 = vld [vmem:[%s131 + $0xea0] sm:$0xff]
        %v624 = vld [vmem:[%s131 + $0xea8] sm:$0xff]
        %v625 = vld [vmem:[%s131 + $0xeb0] sm:$0xff]
        %v626 = vld [vmem:[%s131 + $0xeb8] sm:$0xff]
        %v627 = vld [vmem:[%s131 + $0xec0] sm:$0xff]
        %v628 = vld [vmem:[%s131 + $0xec8] sm:$0xff]
        %v629 = vld [vmem:[%s131 + $0xed0] sm:$0xff]
        %v630 = vld [vmem:[%s131 + $0xed8] sm:$0xff]
        %v631 = vld [vmem:[%s131 + $0xee0] sm:$0xff]
        %v632 = vld [vmem:[%s131 + $0xee8] sm:$0xff]
        %v633 = vld [vmem:[%s131 + $0xef0] sm:$0xff]
        %v634 = vld [vmem:[%s131 + $0xef8] sm:$0xff]
        %v635 = vld [vmem:[%s131 + $0xf00] sm:$0xff]
        %v636 = vld [vmem:[%s131 + $0xf08] sm:$0xff]
        %v637 = vld [vmem:[%s131 + $0xf10] sm:$0xff]
        %v638 = vld [vmem:[%s131 + $0xf18] sm:$0xff]
        %v639 = vld [vmem:[%s131 + $0xf20] sm:$0xff]
        %v640 = vld [vmem:[%s131 + $0xf28] sm:$0xff]
        %v641 = vld [vmem:[%s131 + $0xf30] sm:$0xff]
        %v642 = vld [vmem:[%s131 + $0xf38] sm:$0xff]
        %v643 = vld [vmem:[%s131 + $0xf40] sm:$0xff]
        %v644 = vld [vmem:[%s131 + $0xf48] sm:$0xff]
        %v645 = vld [vmem:[%s131 + $0xf50] sm:$0xff]
        %v646 = vld [vmem:[%s131 + $0xf58] sm:$0xff]
        %v647 = vld [vmem:[%s131 + $0xf60] sm:$0xff]
        %v648 = vld [vmem:[%s131 + $0xf68] sm:$0xff]
        %v649 = vld [vmem:[%s131 + $0xf70] sm:$0xff]
        %v650 = vld [vmem:[%s131 + $0xf78] sm:$0xff]
        %v651 = vld [vmem:[%s131 + $0xf80] sm:$0xff]
        %v652 = vld [vmem:[%s131 + $0xf88] sm:$0xff]
        %v653 = vld [vmem:[%s131 + $0xf90] sm:$0xff]
        %v654 = vld [vmem:[%s131 + $0xf98] sm:$0xff]
        %v655 = vld [vmem:[%s131 + $0xfa0] sm:$0xff]
        %v656 = vld [vmem:[%s131 + $0xfa8] sm:$0xff]
        %v657 = vld [vmem:[%s131 + $0xfb0] sm:$0xff]
        %v658 = vld [vmem:[%s131 + $0xfb8] sm:$0xff]
        %v659 = vld [vmem:[%s131 + $0xfc0] sm:$0xff]
        %v660 = vld [vmem:[%s131 + $0xfc8] sm:$0xff]
        %v661 = vld [vmem:[%s131 + $0xfd0] sm:$0xff]
        %v662 = vld [vmem:[%s131 + $0xfd8] sm:$0xff]
        %v663 = vld [vmem:[%s131 + $0xfe0] sm:$0xff]
        %v664 = vld [vmem:[%s131 + $0xfe8] sm:$0xff]
        %v665 = vld [vmem:[%s131 + $0xff0] sm:$0xff]
        %v666 = vld [vmem:[%s131 + $0xff8] sm:$0xff]
        %v667 = vunpack.c.l.bf16 %v155
        %v668 = vunpack.c.h.bf16 %v155
        %v669 = vunpack.c.l.bf16 %v156
        %v670 = vunpack.c.h.bf16 %v156
        %v671 = vunpack.c.l.bf16 %v157
        %v672 = vunpack.c.h.bf16 %v157
        %v673 = vunpack.c.l.bf16 %v158
        %v674 = vunpack.c.h.bf16 %v158
        %v675 = vunpack.c.l.bf16 %v159
        %v676 = vunpack.c.h.bf16 %v159
        %v677 = vunpack.c.l.bf16 %v160
        %v678 = vunpack.c.h.bf16 %v160
        %v679 = vunpack.c.l.bf16 %v161
        %v680 = vunpack.c.h.bf16 %v161
        %v681 = vunpack.c.l.bf16 %v162
        %v682 = vunpack.c.h.bf16 %v162
        %v683 = vunpack.c.l.bf16 %v163
        %v684 = vunpack.c.h.bf16 %v163
        %v685 = vunpack.c.l.bf16 %v164
        %v686 = vunpack.c.h.bf16 %v164
        %v687 = vunpack.c.l.bf16 %v165
        %v688 = vunpack.c.h.bf16 %v165
        %v689 = vunpack.c.l.bf16 %v166
        %v690 = vunpack.c.h.bf16 %v166
        %v691 = vunpack.c.l.bf16 %v167
        %v692 = vunpack.c.h.bf16 %v167
        %v693 = vunpack.c.l.bf16 %v168
        %v694 = vunpack.c.h.bf16 %v168
        %v695 = vunpack.c.l.bf16 %v169
        %v696 = vunpack.c.h.bf16 %v169
        %v697 = vunpack.c.l.bf16 %v170
        %v698 = vunpack.c.h.bf16 %v170
        %v699 = vunpack.c.l.bf16 %v171
        %v700 = vunpack.c.h.bf16 %v171
        %v701 = vunpack.c.l.bf16 %v172
        %v702 = vunpack.c.h.bf16 %v172
        %v703 = vunpack.c.l.bf16 %v173
        %v704 = vunpack.c.h.bf16 %v173
        %v705 = vunpack.c.l.bf16 %v174
        %v706 = vunpack.c.h.bf16 %v174
        %v707 = vunpack.c.l.bf16 %v175
        %v708 = vunpack.c.h.bf16 %v175
        %v709 = vunpack.c.l.bf16 %v176
        %v710 = vunpack.c.h.bf16 %v176
        %v711 = vunpack.c.l.bf16 %v177
        %v712 = vunpack.c.h.bf16 %v177
        %v713 = vunpack.c.l.bf16 %v178
        %v714 = vunpack.c.h.bf16 %v178
        %v715 = vunpack.c.l.bf16 %v179
        %v716 = vunpack.c.h.bf16 %v179
        %v717 = vunpack.c.l.bf16 %v180
        %v718 = vunpack.c.h.bf16 %v180
        %v719 = vunpack.c.l.bf16 %v181
        %v720 = vunpack.c.h.bf16 %v181
        %v721 = vunpack.c.l.bf16 %v182
        %v722 = vunpack.c.h.bf16 %v182
        %v723 = vunpack.c.l.bf16 %v183
        %v724 = vunpack.c.h.bf16 %v183
        %v725 = vunpack.c.l.bf16 %v184
        %v726 = vunpack.c.h.bf16 %v184
        %v727 = vunpack.c.l.bf16 %v185
        %v728 = vunpack.c.h.bf16 %v185
        %v729 = vunpack.c.l.bf16 %v186
        %v730 = vunpack.c.h.bf16 %v186
        %v731 = vunpack.c.l.bf16 %v187
        %v732 = vunpack.c.h.bf16 %v187
        %v733 = vunpack.c.l.bf16 %v188
        %v734 = vunpack.c.h.bf16 %v188
        %v735 = vunpack.c.l.bf16 %v189
        %v736 = vunpack.c.h.bf16 %v189
        %v737 = vunpack.c.l.bf16 %v190
        %v738 = vunpack.c.h.bf16 %v190
        %v739 = vunpack.c.l.bf16 %v191
        %v740 = vunpack.c.h.bf16 %v191
        %v741 = vunpack.c.l.bf16 %v192
        %v742 = vunpack.c.h.bf16 %v192
        %v743 = vunpack.c.l.bf16 %v193
        %v744 = vunpack.c.h.bf16 %v193
        %v745 = vunpack.c.l.bf16 %v194
        %v746 = vunpack.c.h.bf16 %v194
        %v747 = vunpack.c.l.bf16 %v195
        %v748 = vunpack.c.h.bf16 %v195
        %v749 = vunpack.c.l.bf16 %v196
        %v750 = vunpack.c.h.bf16 %v196
        %v751 = vunpack.c.l.bf16 %v197
        %v752 = vunpack.c.h.bf16 %v197
        %v753 = vunpack.c.l.bf16 %v198
        %v754 = vunpack.c.h.bf16 %v198
        %v755 = vunpack.c.l.bf16 %v199
        %v756 = vunpack.c.h.bf16 %v199
        %v757 = vunpack.c.l.bf16 %v200
        %v758 = vunpack.c.h.bf16 %v200
        %v759 = vunpack.c.l.bf16 %v201
        %v760 = vunpack.c.h.bf16 %v201
        %v761 = vunpack.c.l.bf16 %v202
        %v762 = vunpack.c.h.bf16 %v202
        %v763 = vunpack.c.l.bf16 %v203
        %v764 = vunpack.c.h.bf16 %v203
        %v765 = vunpack.c.l.bf16 %v204
        %v766 = vunpack.c.h.bf16 %v204
        %v767 = vunpack.c.l.bf16 %v205
        %v768 = vunpack.c.h.bf16 %v205
        %v769 = vunpack.c.l.bf16 %v206
        %v770 = vunpack.c.h.bf16 %v206
        %v771 = vunpack.c.l.bf16 %v207
        %v772 = vunpack.c.h.bf16 %v207
        %v773 = vunpack.c.l.bf16 %v208
        %v774 = vunpack.c.h.bf16 %v208
        %v775 = vunpack.c.l.bf16 %v209
        %v776 = vunpack.c.h.bf16 %v209
        %v777 = vunpack.c.l.bf16 %v210
        %v778 = vunpack.c.h.bf16 %v210
        %v779 = vunpack.c.l.bf16 %v211
        %v780 = vunpack.c.h.bf16 %v211
        %v781 = vunpack.c.l.bf16 %v212
        %v782 = vunpack.c.h.bf16 %v212
        %v783 = vunpack.c.l.bf16 %v213
        %v784 = vunpack.c.h.bf16 %v213
        %v785 = vunpack.c.l.bf16 %v214
        %v786 = vunpack.c.h.bf16 %v214
        %v787 = vunpack.c.l.bf16 %v215
        %v788 = vunpack.c.h.bf16 %v215
        %v789 = vunpack.c.l.bf16 %v216
        %v790 = vunpack.c.h.bf16 %v216
        %v791 = vunpack.c.l.bf16 %v217
        %v792 = vunpack.c.h.bf16 %v217
        %v793 = vunpack.c.l.bf16 %v218
        %v794 = vunpack.c.h.bf16 %v218
        %v795 = vunpack.c.l.bf16 %v219
        %v796 = vunpack.c.h.bf16 %v219
        %v797 = vunpack.c.l.bf16 %v220
        %v798 = vunpack.c.h.bf16 %v220
        %v799 = vunpack.c.l.bf16 %v221
        %v800 = vunpack.c.h.bf16 %v221
        %v801 = vunpack.c.l.bf16 %v222
        %v802 = vunpack.c.h.bf16 %v222
        %v803 = vunpack.c.l.bf16 %v223
        %v804 = vunpack.c.h.bf16 %v223
        %v805 = vunpack.c.l.bf16 %v224
        %v806 = vunpack.c.h.bf16 %v224
        %v807 = vunpack.c.l.bf16 %v225
        %v808 = vunpack.c.h.bf16 %v225
        %v809 = vunpack.c.l.bf16 %v226
        %v810 = vunpack.c.h.bf16 %v226
        %v811 = vunpack.c.l.bf16 %v227
        %v812 = vunpack.c.h.bf16 %v227
        %v813 = vunpack.c.l.bf16 %v228
        %v814 = vunpack.c.h.bf16 %v228
        %v815 = vunpack.c.l.bf16 %v229
        %v816 = vunpack.c.h.bf16 %v229
        %v817 = vunpack.c.l.bf16 %v230
        %v818 = vunpack.c.h.bf16 %v230
        %v819 = vunpack.c.l.bf16 %v231
        %v820 = vunpack.c.h.bf16 %v231
        %v821 = vunpack.c.l.bf16 %v232
        %v822 = vunpack.c.h.bf16 %v232
        %v823 = vunpack.c.l.bf16 %v233
        %v824 = vunpack.c.h.bf16 %v233
        %v825 = vunpack.c.l.bf16 %v234
        %v826 = vunpack.c.h.bf16 %v234
        %v827 = vunpack.c.l.bf16 %v235
        %v828 = vunpack.c.h.bf16 %v235
        %v829 = vunpack.c.l.bf16 %v236
        %v830 = vunpack.c.h.bf16 %v236
        %v831 = vunpack.c.l.bf16 %v237
        %v832 = vunpack.c.h.bf16 %v237
        %v833 = vunpack.c.l.bf16 %v238
        %v834 = vunpack.c.h.bf16 %v238
        %v835 = vunpack.c.l.bf16 %v239
        %v836 = vunpack.c.h.bf16 %v239
        %v837 = vunpack.c.l.bf16 %v240
        %v838 = vunpack.c.h.bf16 %v240
        %v839 = vunpack.c.l.bf16 %v241
        %v840 = vunpack.c.h.bf16 %v241
        %v841 = vunpack.c.l.bf16 %v242
        %v842 = vunpack.c.h.bf16 %v242
        %v843 = vunpack.c.l.bf16 %v243
        %v844 = vunpack.c.h.bf16 %v243
        %v845 = vunpack.c.l.bf16 %v244
        %v846 = vunpack.c.h.bf16 %v244
        %v847 = vunpack.c.l.bf16 %v245
        %v848 = vunpack.c.h.bf16 %v245
        %v849 = vunpack.c.l.bf16 %v246
        %v850 = vunpack.c.h.bf16 %v246
        %v851 = vunpack.c.l.bf16 %v247
        %v852 = vunpack.c.h.bf16 %v247
        %v853 = vunpack.c.l.bf16 %v248
        %v854 = vunpack.c.h.bf16 %v248
        %v855 = vunpack.c.l.bf16 %v249
        %v856 = vunpack.c.h.bf16 %v249
        %v857 = vunpack.c.l.bf16 %v250
        %v858 = vunpack.c.h.bf16 %v250
        %v859 = vunpack.c.l.bf16 %v251
        %v860 = vunpack.c.h.bf16 %v251
        %v861 = vunpack.c.l.bf16 %v252
        %v862 = vunpack.c.h.bf16 %v252
        %v863 = vunpack.c.l.bf16 %v253
        %v864 = vunpack.c.h.bf16 %v253
        %v865 = vunpack.c.l.bf16 %v254
        %v866 = vunpack.c.h.bf16 %v254
        %v867 = vunpack.c.l.bf16 %v255
        %v868 = vunpack.c.h.bf16 %v255
        %v869 = vunpack.c.l.bf16 %v256
        %v870 = vunpack.c.h.bf16 %v256
        %v871 = vunpack.c.l.bf16 %v257
        %v872 = vunpack.c.h.bf16 %v257
        %v873 = vunpack.c.l.bf16 %v258
        %v874 = vunpack.c.h.bf16 %v258
        %v875 = vunpack.c.l.bf16 %v259
        %v876 = vunpack.c.h.bf16 %v259
        %v877 = vunpack.c.l.bf16 %v260
        %v878 = vunpack.c.h.bf16 %v260
        %v879 = vunpack.c.l.bf16 %v261
        %v880 = vunpack.c.h.bf16 %v261
        %v881 = vunpack.c.l.bf16 %v262
        %v882 = vunpack.c.h.bf16 %v262
        %v883 = vunpack.c.l.bf16 %v263
        %v884 = vunpack.c.h.bf16 %v263
        %v885 = vunpack.c.l.bf16 %v264
        %v886 = vunpack.c.h.bf16 %v264
        %v887 = vunpack.c.l.bf16 %v265
        %v888 = vunpack.c.h.bf16 %v265
        %v889 = vunpack.c.l.bf16 %v266
        %v890 = vunpack.c.h.bf16 %v266
        %v891 = vunpack.c.l.bf16 %v267
        %v892 = vunpack.c.h.bf16 %v267
        %v893 = vunpack.c.l.bf16 %v268
        %v894 = vunpack.c.h.bf16 %v268
        %v895 = vunpack.c.l.bf16 %v269
        %v896 = vunpack.c.h.bf16 %v269
        %v897 = vunpack.c.l.bf16 %v270
        %v898 = vunpack.c.h.bf16 %v270
        %v899 = vunpack.c.l.bf16 %v271
        %v900 = vunpack.c.h.bf16 %v271
        %v901 = vunpack.c.l.bf16 %v272
        %v902 = vunpack.c.h.bf16 %v272
        %v903 = vunpack.c.l.bf16 %v273
        %v904 = vunpack.c.h.bf16 %v273
        %v905 = vunpack.c.l.bf16 %v274
        %v906 = vunpack.c.h.bf16 %v274
        %v907 = vunpack.c.l.bf16 %v275
        %v908 = vunpack.c.h.bf16 %v275
        %v909 = vunpack.c.l.bf16 %v276
        %v910 = vunpack.c.h.bf16 %v276
        %v911 = vunpack.c.l.bf16 %v277
        %v912 = vunpack.c.h.bf16 %v277
        %v913 = vunpack.c.l.bf16 %v278
        %v914 = vunpack.c.h.bf16 %v278
        %v915 = vunpack.c.l.bf16 %v279
        %v916 = vunpack.c.h.bf16 %v279
        %v917 = vunpack.c.l.bf16 %v280
        %v918 = vunpack.c.h.bf16 %v280
        %v919 = vunpack.c.l.bf16 %v281
        %v920 = vunpack.c.h.bf16 %v281
        %v921 = vunpack.c.l.bf16 %v282
        %v922 = vunpack.c.h.bf16 %v282
        %v923 = vunpack.c.l.bf16 %v283
        %v924 = vunpack.c.h.bf16 %v283
        %v925 = vunpack.c.l.bf16 %v284
        %v926 = vunpack.c.h.bf16 %v284
        %v927 = vunpack.c.l.bf16 %v285
        %v928 = vunpack.c.h.bf16 %v285
        %v929 = vunpack.c.l.bf16 %v286
        %v930 = vunpack.c.h.bf16 %v286
        %v931 = vunpack.c.l.bf16 %v287
        %v932 = vunpack.c.h.bf16 %v287
        %v933 = vunpack.c.l.bf16 %v288
        %v934 = vunpack.c.h.bf16 %v288
        %v935 = vunpack.c.l.bf16 %v289
        %v936 = vunpack.c.h.bf16 %v289
        %v937 = vunpack.c.l.bf16 %v290
        %v938 = vunpack.c.h.bf16 %v290
        %v939 = vunpack.c.l.bf16 %v291
        %v940 = vunpack.c.h.bf16 %v291
        %v941 = vunpack.c.l.bf16 %v292
        %v942 = vunpack.c.h.bf16 %v292
        %v943 = vunpack.c.l.bf16 %v293
        %v944 = vunpack.c.h.bf16 %v293
        %v945 = vunpack.c.l.bf16 %v294
        %v946 = vunpack.c.h.bf16 %v294
        %v947 = vunpack.c.l.bf16 %v295
        %v948 = vunpack.c.h.bf16 %v295
        %v949 = vunpack.c.l.bf16 %v296
        %v950 = vunpack.c.h.bf16 %v296
        %v951 = vunpack.c.l.bf16 %v297
        %v952 = vunpack.c.h.bf16 %v297
        %v953 = vunpack.c.l.bf16 %v298
        %v954 = vunpack.c.h.bf16 %v298
        %v955 = vunpack.c.l.bf16 %v299
        %v956 = vunpack.c.h.bf16 %v299
        %v957 = vunpack.c.l.bf16 %v300
        %v958 = vunpack.c.h.bf16 %v300
        %v959 = vunpack.c.l.bf16 %v301
        %v960 = vunpack.c.h.bf16 %v301
        %v961 = vunpack.c.l.bf16 %v302
        %v962 = vunpack.c.h.bf16 %v302
        %v963 = vunpack.c.l.bf16 %v303
        %v964 = vunpack.c.h.bf16 %v303
        %v965 = vunpack.c.l.bf16 %v304
        %v966 = vunpack.c.h.bf16 %v304
        %v967 = vunpack.c.l.bf16 %v305
        %v968 = vunpack.c.h.bf16 %v305
        %v969 = vunpack.c.l.bf16 %v306
        %v970 = vunpack.c.h.bf16 %v306
        %v971 = vunpack.c.l.bf16 %v307
        %v972 = vunpack.c.h.bf16 %v307
        %v973 = vunpack.c.l.bf16 %v308
        %v974 = vunpack.c.h.bf16 %v308
        %v975 = vunpack.c.l.bf16 %v309
        %v976 = vunpack.c.h.bf16 %v309
        %v977 = vunpack.c.l.bf16 %v310
        %v978 = vunpack.c.h.bf16 %v310
        %v979 = vunpack.c.l.bf16 %v311
        %v980 = vunpack.c.h.bf16 %v311
        %v981 = vunpack.c.l.bf16 %v312
        %v982 = vunpack.c.h.bf16 %v312
        %v983 = vunpack.c.l.bf16 %v313
        %v984 = vunpack.c.h.bf16 %v313
        %v985 = vunpack.c.l.bf16 %v314
        %v986 = vunpack.c.h.bf16 %v314
        %v987 = vunpack.c.l.bf16 %v315
        %v988 = vunpack.c.h.bf16 %v315
        %v989 = vunpack.c.l.bf16 %v316
        %v990 = vunpack.c.h.bf16 %v316
        %v991 = vunpack.c.l.bf16 %v317
        %v992 = vunpack.c.h.bf16 %v317
        %v993 = vunpack.c.l.bf16 %v318
        %v994 = vunpack.c.h.bf16 %v318
        %v995 = vunpack.c.l.bf16 %v319
        %v996 = vunpack.c.h.bf16 %v319
        %v997 = vunpack.c.l.bf16 %v320
        %v998 = vunpack.c.h.bf16 %v320
        %v999 = vunpack.c.l.bf16 %v321
        %v1000 = vunpack.c.h.bf16 %v321
        %v1001 = vunpack.c.l.bf16 %v322
        %v1002 = vunpack.c.h.bf16 %v322
        %v1003 = vunpack.c.l.bf16 %v323
        %v1004 = vunpack.c.h.bf16 %v323
        %v1005 = vunpack.c.l.bf16 %v324
        %v1006 = vunpack.c.h.bf16 %v324
        %v1007 = vunpack.c.l.bf16 %v325
        %v1008 = vunpack.c.h.bf16 %v325
        %v1009 = vunpack.c.l.bf16 %v326
        %v1010 = vunpack.c.h.bf16 %v326
        %v1011 = vunpack.c.l.bf16 %v327
        %v1012 = vunpack.c.h.bf16 %v327
        %v1013 = vunpack.c.l.bf16 %v328
        %v1014 = vunpack.c.h.bf16 %v328
        %v1015 = vunpack.c.l.bf16 %v329
        %v1016 = vunpack.c.h.bf16 %v329
        %v1017 = vunpack.c.l.bf16 %v330
        %v1018 = vunpack.c.h.bf16 %v330
        %v1019 = vunpack.c.l.bf16 %v331
        %v1020 = vunpack.c.h.bf16 %v331
        %v1021 = vunpack.c.l.bf16 %v332
        %v1022 = vunpack.c.h.bf16 %v332
        %v1023 = vunpack.c.l.bf16 %v333
        %v1024 = vunpack.c.h.bf16 %v333
        %v1025 = vunpack.c.l.bf16 %v334
        %v1026 = vunpack.c.h.bf16 %v334
        %v1027 = vunpack.c.l.bf16 %v335
        %v1028 = vunpack.c.h.bf16 %v335
        %v1029 = vunpack.c.l.bf16 %v336
        %v1030 = vunpack.c.h.bf16 %v336
        %v1031 = vunpack.c.l.bf16 %v337
        %v1032 = vunpack.c.h.bf16 %v337
        %v1033 = vunpack.c.l.bf16 %v338
        %v1034 = vunpack.c.h.bf16 %v338
        %v1035 = vunpack.c.l.bf16 %v339
        %v1036 = vunpack.c.h.bf16 %v339
        %v1037 = vunpack.c.l.bf16 %v340
        %v1038 = vunpack.c.h.bf16 %v340
        %v1039 = vunpack.c.l.bf16 %v341
        %v1040 = vunpack.c.h.bf16 %v341
        %v1041 = vunpack.c.l.bf16 %v342
        %v1042 = vunpack.c.h.bf16 %v342
        %v1043 = vunpack.c.l.bf16 %v343
        %v1044 = vunpack.c.h.bf16 %v343
        %v1045 = vunpack.c.l.bf16 %v344
        %v1046 = vunpack.c.h.bf16 %v344
        %v1047 = vunpack.c.l.bf16 %v345
        %v1048 = vunpack.c.h.bf16 %v345
        %v1049 = vunpack.c.l.bf16 %v346
        %v1050 = vunpack.c.h.bf16 %v346
        %v1051 = vunpack.c.l.bf16 %v347
        %v1052 = vunpack.c.h.bf16 %v347
        %v1053 = vunpack.c.l.bf16 %v348
        %v1054 = vunpack.c.h.bf16 %v348
        %v1055 = vunpack.c.l.bf16 %v349
        %v1056 = vunpack.c.h.bf16 %v349
        %v1057 = vunpack.c.l.bf16 %v350
        %v1058 = vunpack.c.h.bf16 %v350
        %v1059 = vunpack.c.l.bf16 %v351
        %v1060 = vunpack.c.h.bf16 %v351
        %v1061 = vunpack.c.l.bf16 %v352
        %v1062 = vunpack.c.h.bf16 %v352
        %v1063 = vunpack.c.l.bf16 %v353
        %v1064 = vunpack.c.h.bf16 %v353
        %v1065 = vunpack.c.l.bf16 %v354
        %v1066 = vunpack.c.h.bf16 %v354
        %v1067 = vunpack.c.l.bf16 %v355
        %v1068 = vunpack.c.h.bf16 %v355
        %v1069 = vunpack.c.l.bf16 %v356
        %v1070 = vunpack.c.h.bf16 %v356
        %v1071 = vunpack.c.l.bf16 %v357
        %v1072 = vunpack.c.h.bf16 %v357
        %v1073 = vunpack.c.l.bf16 %v358
        %v1074 = vunpack.c.h.bf16 %v358
        %v1075 = vunpack.c.l.bf16 %v359
        %v1076 = vunpack.c.h.bf16 %v359
        %v1077 = vunpack.c.l.bf16 %v360
        %v1078 = vunpack.c.h.bf16 %v360
        %v1079 = vunpack.c.l.bf16 %v361
        %v1080 = vunpack.c.h.bf16 %v361
        %v1081 = vunpack.c.l.bf16 %v362
        %v1082 = vunpack.c.h.bf16 %v362
        %v1083 = vunpack.c.l.bf16 %v363
        %v1084 = vunpack.c.h.bf16 %v363
        %v1085 = vunpack.c.l.bf16 %v364
        %v1086 = vunpack.c.h.bf16 %v364
        %v1087 = vunpack.c.l.bf16 %v365
        %v1088 = vunpack.c.h.bf16 %v365
        %v1089 = vunpack.c.l.bf16 %v366
        %v1090 = vunpack.c.h.bf16 %v366
        %v1091 = vunpack.c.l.bf16 %v367
        %v1092 = vunpack.c.h.bf16 %v367
        %v1093 = vunpack.c.l.bf16 %v368
        %v1094 = vunpack.c.h.bf16 %v368
        %v1095 = vunpack.c.l.bf16 %v369
        %v1096 = vunpack.c.h.bf16 %v369
        %v1097 = vunpack.c.l.bf16 %v370
        %v1098 = vunpack.c.h.bf16 %v370
        %v1099 = vunpack.c.l.bf16 %v371
        %v1100 = vunpack.c.h.bf16 %v371
        %v1101 = vunpack.c.l.bf16 %v372
        %v1102 = vunpack.c.h.bf16 %v372
        %v1103 = vunpack.c.l.bf16 %v373
        %v1104 = vunpack.c.h.bf16 %v373
        %v1105 = vunpack.c.l.bf16 %v374
        %v1106 = vunpack.c.h.bf16 %v374
        %v1107 = vunpack.c.l.bf16 %v375
        %v1108 = vunpack.c.h.bf16 %v375
        %v1109 = vunpack.c.l.bf16 %v376
        %v1110 = vunpack.c.h.bf16 %v376
        %v1111 = vunpack.c.l.bf16 %v377
        %v1112 = vunpack.c.h.bf16 %v377
        %v1113 = vunpack.c.l.bf16 %v378
        %v1114 = vunpack.c.h.bf16 %v378
        %v1115 = vunpack.c.l.bf16 %v379
        %v1116 = vunpack.c.h.bf16 %v379
        %v1117 = vunpack.c.l.bf16 %v380
        %v1118 = vunpack.c.h.bf16 %v380
        %v1119 = vunpack.c.l.bf16 %v381
        %v1120 = vunpack.c.h.bf16 %v381
        %v1121 = vunpack.c.l.bf16 %v382
        %v1122 = vunpack.c.h.bf16 %v382
        %v1123 = vunpack.c.l.bf16 %v383
        %v1124 = vunpack.c.h.bf16 %v383
        %v1125 = vunpack.c.l.bf16 %v384
        %v1126 = vunpack.c.h.bf16 %v384
        %v1127 = vunpack.c.l.bf16 %v385
        %v1128 = vunpack.c.h.bf16 %v385
        %v1129 = vunpack.c.l.bf16 %v386
        %v1130 = vunpack.c.h.bf16 %v386
        %v1131 = vunpack.c.l.bf16 %v387
        %v1132 = vunpack.c.h.bf16 %v387
        %v1133 = vunpack.c.l.bf16 %v388
        %v1134 = vunpack.c.h.bf16 %v388
        %v1135 = vunpack.c.l.bf16 %v389
        %v1136 = vunpack.c.h.bf16 %v389
        %v1137 = vunpack.c.l.bf16 %v390
        %v1138 = vunpack.c.h.bf16 %v390
        %v1139 = vunpack.c.l.bf16 %v391
        %v1140 = vunpack.c.h.bf16 %v391
        %v1141 = vunpack.c.l.bf16 %v392
        %v1142 = vunpack.c.h.bf16 %v392
        %v1143 = vunpack.c.l.bf16 %v393
        %v1144 = vunpack.c.h.bf16 %v393
        %v1145 = vunpack.c.l.bf16 %v394
        %v1146 = vunpack.c.h.bf16 %v394
        %v1147 = vunpack.c.l.bf16 %v395
        %v1148 = vunpack.c.h.bf16 %v395
        %v1149 = vunpack.c.l.bf16 %v396
        %v1150 = vunpack.c.h.bf16 %v396
        %v1151 = vunpack.c.l.bf16 %v397
        %v1152 = vunpack.c.h.bf16 %v397
        %v1153 = vunpack.c.l.bf16 %v398
        %v1154 = vunpack.c.h.bf16 %v398
        %v1155 = vunpack.c.l.bf16 %v399
        %v1156 = vunpack.c.h.bf16 %v399
        %v1157 = vunpack.c.l.bf16 %v400
        %v1158 = vunpack.c.h.bf16 %v400
        %v1159 = vunpack.c.l.bf16 %v401
        %v1160 = vunpack.c.h.bf16 %v401
        %v1161 = vunpack.c.l.bf16 %v402
        %v1162 = vunpack.c.h.bf16 %v402
        %v1163 = vunpack.c.l.bf16 %v403
        %v1164 = vunpack.c.h.bf16 %v403
        %v1165 = vunpack.c.l.bf16 %v404
        %v1166 = vunpack.c.h.bf16 %v404
        %v1167 = vunpack.c.l.bf16 %v405
        %v1168 = vunpack.c.h.bf16 %v405
        %v1169 = vunpack.c.l.bf16 %v406
        %v1170 = vunpack.c.h.bf16 %v406
        %v1171 = vunpack.c.l.bf16 %v407
        %v1172 = vunpack.c.h.bf16 %v407
        %v1173 = vunpack.c.l.bf16 %v408
        %v1174 = vunpack.c.h.bf16 %v408
        %v1175 = vunpack.c.l.bf16 %v409
        %v1176 = vunpack.c.h.bf16 %v409
        %v1177 = vunpack.c.l.bf16 %v410
        %v1178 = vunpack.c.h.bf16 %v410
        %v1179 = vunpack.c.l.bf16 %v411
        %v1180 = vunpack.c.h.bf16 %v411
        %v1181 = vunpack.c.l.bf16 %v412
        %v1182 = vunpack.c.h.bf16 %v412
        %v1183 = vunpack.c.l.bf16 %v413
        %v1184 = vunpack.c.h.bf16 %v413
        %v1185 = vunpack.c.l.bf16 %v414
        %v1186 = vunpack.c.h.bf16 %v414
        %v1187 = vunpack.c.l.bf16 %v415
        %v1188 = vunpack.c.h.bf16 %v415
        %v1189 = vunpack.c.l.bf16 %v416
        %v1190 = vunpack.c.h.bf16 %v416
        %v1191 = vunpack.c.l.bf16 %v417
        %v1192 = vunpack.c.h.bf16 %v417
        %v1193 = vunpack.c.l.bf16 %v418
        %v1194 = vunpack.c.h.bf16 %v418
        %v1195 = vunpack.c.l.bf16 %v419
        %v1196 = vunpack.c.h.bf16 %v419
        %v1197 = vunpack.c.l.bf16 %v420
        %v1198 = vunpack.c.h.bf16 %v420
        %v1199 = vunpack.c.l.bf16 %v421
        %v1200 = vunpack.c.h.bf16 %v421
        %v1201 = vunpack.c.l.bf16 %v422
        %v1202 = vunpack.c.h.bf16 %v422
        %v1203 = vunpack.c.l.bf16 %v423
        %v1204 = vunpack.c.h.bf16 %v423
        %v1205 = vunpack.c.l.bf16 %v424
        %v1206 = vunpack.c.h.bf16 %v424
        %v1207 = vunpack.c.l.bf16 %v425
        %v1208 = vunpack.c.h.bf16 %v425
        %v1209 = vunpack.c.l.bf16 %v426
        %v1210 = vunpack.c.h.bf16 %v426
        %v1211 = vunpack.c.l.bf16 %v427
        %v1212 = vunpack.c.h.bf16 %v427
        %v1213 = vunpack.c.l.bf16 %v428
        %v1214 = vunpack.c.h.bf16 %v428
        %v1215 = vunpack.c.l.bf16 %v429
        %v1216 = vunpack.c.h.bf16 %v429
        %v1217 = vunpack.c.l.bf16 %v430
        %v1218 = vunpack.c.h.bf16 %v430
        %v1219 = vunpack.c.l.bf16 %v431
        %v1220 = vunpack.c.h.bf16 %v431
        %v1221 = vunpack.c.l.bf16 %v432
        %v1222 = vunpack.c.h.bf16 %v432
        %v1223 = vunpack.c.l.bf16 %v433
        %v1224 = vunpack.c.h.bf16 %v433
        %v1225 = vunpack.c.l.bf16 %v434
        %v1226 = vunpack.c.h.bf16 %v434
        %v1227 = vunpack.c.l.bf16 %v435
        %v1228 = vunpack.c.h.bf16 %v435
        %v1229 = vunpack.c.l.bf16 %v436
        %v1230 = vunpack.c.h.bf16 %v436
        %v1231 = vunpack.c.l.bf16 %v437
        %v1232 = vunpack.c.h.bf16 %v437
        %v1233 = vunpack.c.l.bf16 %v438
        %v1234 = vunpack.c.h.bf16 %v438
        %v1235 = vunpack.c.l.bf16 %v439
        %v1236 = vunpack.c.h.bf16 %v439
        %v1237 = vunpack.c.l.bf16 %v440
        %v1238 = vunpack.c.h.bf16 %v440
        %v1239 = vunpack.c.l.bf16 %v441
        %v1240 = vunpack.c.h.bf16 %v441
        %v1241 = vunpack.c.l.bf16 %v442
        %v1242 = vunpack.c.h.bf16 %v442
        %v1243 = vunpack.c.l.bf16 %v443
        %v1244 = vunpack.c.h.bf16 %v443
        %v1245 = vunpack.c.l.bf16 %v444
        %v1246 = vunpack.c.h.bf16 %v444
        %v1247 = vunpack.c.l.bf16 %v445
        %v1248 = vunpack.c.h.bf16 %v445
        %v1249 = vunpack.c.l.bf16 %v446
        %v1250 = vunpack.c.h.bf16 %v446
        %v1251 = vunpack.c.l.bf16 %v447
        %v1252 = vunpack.c.h.bf16 %v447
        %v1253 = vunpack.c.l.bf16 %v448
        %v1254 = vunpack.c.h.bf16 %v448
        %v1255 = vunpack.c.l.bf16 %v449
        %v1256 = vunpack.c.h.bf16 %v449
        %v1257 = vunpack.c.l.bf16 %v450
        %v1258 = vunpack.c.h.bf16 %v450
        %v1259 = vunpack.c.l.bf16 %v451
        %v1260 = vunpack.c.h.bf16 %v451
        %v1261 = vunpack.c.l.bf16 %v452
        %v1262 = vunpack.c.h.bf16 %v452
        %v1263 = vunpack.c.l.bf16 %v453
        %v1264 = vunpack.c.h.bf16 %v453
        %v1265 = vunpack.c.l.bf16 %v454
        %v1266 = vunpack.c.h.bf16 %v454
        %v1267 = vunpack.c.l.bf16 %v455
        %v1268 = vunpack.c.h.bf16 %v455
        %v1269 = vunpack.c.l.bf16 %v456
        %v1270 = vunpack.c.h.bf16 %v456
        %v1271 = vunpack.c.l.bf16 %v457
        %v1272 = vunpack.c.h.bf16 %v457
        %v1273 = vunpack.c.l.bf16 %v458
        %v1274 = vunpack.c.h.bf16 %v458
        %v1275 = vunpack.c.l.bf16 %v459
        %v1276 = vunpack.c.h.bf16 %v459
        %v1277 = vunpack.c.l.bf16 %v460
        %v1278 = vunpack.c.h.bf16 %v460
        %v1279 = vunpack.c.l.bf16 %v461
        %v1280 = vunpack.c.h.bf16 %v461
        %v1281 = vunpack.c.l.bf16 %v462
        %v1282 = vunpack.c.h.bf16 %v462
        %v1283 = vunpack.c.l.bf16 %v463
        %v1284 = vunpack.c.h.bf16 %v463
        %v1285 = vunpack.c.l.bf16 %v464
        %v1286 = vunpack.c.h.bf16 %v464
        %v1287 = vunpack.c.l.bf16 %v465
        %v1288 = vunpack.c.h.bf16 %v465
        %v1289 = vunpack.c.l.bf16 %v466
        %v1290 = vunpack.c.h.bf16 %v466
        %v1291 = vunpack.c.l.bf16 %v467
        %v1292 = vunpack.c.h.bf16 %v467
        %v1293 = vunpack.c.l.bf16 %v468
        %v1294 = vunpack.c.h.bf16 %v468
        %v1295 = vunpack.c.l.bf16 %v469
        %v1296 = vunpack.c.h.bf16 %v469
        %v1297 = vunpack.c.l.bf16 %v470
        %v1298 = vunpack.c.h.bf16 %v470
        %v1299 = vunpack.c.l.bf16 %v471
        %v1300 = vunpack.c.h.bf16 %v471
        %v1301 = vunpack.c.l.bf16 %v472
        %v1302 = vunpack.c.h.bf16 %v472
        %v1303 = vunpack.c.l.bf16 %v473
        %v1304 = vunpack.c.h.bf16 %v473
        %v1305 = vunpack.c.l.bf16 %v474
        %v1306 = vunpack.c.h.bf16 %v474
        %v1307 = vunpack.c.l.bf16 %v475
        %v1308 = vunpack.c.h.bf16 %v475
        %v1309 = vunpack.c.l.bf16 %v476
        %v1310 = vunpack.c.h.bf16 %v476
        %v1311 = vunpack.c.l.bf16 %v477
        %v1312 = vunpack.c.h.bf16 %v477
        %v1313 = vunpack.c.l.bf16 %v478
        %v1314 = vunpack.c.h.bf16 %v478
        %v1315 = vunpack.c.l.bf16 %v479
        %v1316 = vunpack.c.h.bf16 %v479
        %v1317 = vunpack.c.l.bf16 %v480
        %v1318 = vunpack.c.h.bf16 %v480
        %v1319 = vunpack.c.l.bf16 %v481
        %v1320 = vunpack.c.h.bf16 %v481
        %v1321 = vunpack.c.l.bf16 %v482
        %v1322 = vunpack.c.h.bf16 %v482
        %v1323 = vunpack.c.l.bf16 %v483
        %v1324 = vunpack.c.h.bf16 %v483
        %v1325 = vunpack.c.l.bf16 %v484
        %v1326 = vunpack.c.h.bf16 %v484
        %v1327 = vunpack.c.l.bf16 %v485
        %v1328 = vunpack.c.h.bf16 %v485
        %v1329 = vunpack.c.l.bf16 %v486
        %v1330 = vunpack.c.h.bf16 %v486
        %v1331 = vunpack.c.l.bf16 %v487
        %v1332 = vunpack.c.h.bf16 %v487
        %v1333 = vunpack.c.l.bf16 %v488
        %v1334 = vunpack.c.h.bf16 %v488
        %v1335 = vunpack.c.l.bf16 %v489
        %v1336 = vunpack.c.h.bf16 %v489
        %v1337 = vunpack.c.l.bf16 %v490
        %v1338 = vunpack.c.h.bf16 %v490
        %v1339 = vunpack.c.l.bf16 %v491
        %v1340 = vunpack.c.h.bf16 %v491
        %v1341 = vunpack.c.l.bf16 %v492
        %v1342 = vunpack.c.h.bf16 %v492
        %v1343 = vunpack.c.l.bf16 %v493
        %v1344 = vunpack.c.h.bf16 %v493
        %v1345 = vunpack.c.l.bf16 %v494
        %v1346 = vunpack.c.h.bf16 %v494
        %v1347 = vunpack.c.l.bf16 %v495
        %v1348 = vunpack.c.h.bf16 %v495
        %v1349 = vunpack.c.l.bf16 %v496
        %v1350 = vunpack.c.h.bf16 %v496
        %v1351 = vunpack.c.l.bf16 %v497
        %v1352 = vunpack.c.h.bf16 %v497
        %v1353 = vunpack.c.l.bf16 %v498
        %v1354 = vunpack.c.h.bf16 %v498
        %v1355 = vunpack.c.l.bf16 %v499
        %v1356 = vunpack.c.h.bf16 %v499
        %v1357 = vunpack.c.l.bf16 %v500
        %v1358 = vunpack.c.h.bf16 %v500
        %v1359 = vunpack.c.l.bf16 %v501
        %v1360 = vunpack.c.h.bf16 %v501
        %v1361 = vunpack.c.l.bf16 %v502
        %v1362 = vunpack.c.h.bf16 %v502
        %v1363 = vunpack.c.l.bf16 %v503
        %v1364 = vunpack.c.h.bf16 %v503
        %v1365 = vunpack.c.l.bf16 %v504
        %v1366 = vunpack.c.h.bf16 %v504
        %v1367 = vunpack.c.l.bf16 %v505
        %v1368 = vunpack.c.h.bf16 %v505
        %v1369 = vunpack.c.l.bf16 %v506
        %v1370 = vunpack.c.h.bf16 %v506
        %v1371 = vunpack.c.l.bf16 %v507
        %v1372 = vunpack.c.h.bf16 %v507
        %v1373 = vunpack.c.l.bf16 %v508
        %v1374 = vunpack.c.h.bf16 %v508
        %v1375 = vunpack.c.l.bf16 %v509
        %v1376 = vunpack.c.h.bf16 %v509
        %v1377 = vunpack.c.l.bf16 %v510
        %v1378 = vunpack.c.h.bf16 %v510
        %v1379 = vunpack.c.l.bf16 %v511
        %v1380 = vunpack.c.h.bf16 %v511
        %v1381 = vunpack.c.l.bf16 %v512
        %v1382 = vunpack.c.h.bf16 %v512
        %v1383 = vunpack.c.l.bf16 %v513
        %v1384 = vunpack.c.h.bf16 %v513
        %v1385 = vunpack.c.l.bf16 %v514
        %v1386 = vunpack.c.h.bf16 %v514
        %v1387 = vunpack.c.l.bf16 %v515
        %v1388 = vunpack.c.h.bf16 %v515
        %v1389 = vunpack.c.l.bf16 %v516
        %v1390 = vunpack.c.h.bf16 %v516
        %v1391 = vunpack.c.l.bf16 %v517
        %v1392 = vunpack.c.h.bf16 %v517
        %v1393 = vunpack.c.l.bf16 %v518
        %v1394 = vunpack.c.h.bf16 %v518
        %v1395 = vunpack.c.l.bf16 %v519
        %v1396 = vunpack.c.h.bf16 %v519
        %v1397 = vunpack.c.l.bf16 %v520
        %v1398 = vunpack.c.h.bf16 %v520
        %v1399 = vunpack.c.l.bf16 %v521
        %v1400 = vunpack.c.h.bf16 %v521
        %v1401 = vunpack.c.l.bf16 %v522
        %v1402 = vunpack.c.h.bf16 %v522
        %v1403 = vunpack.c.l.bf16 %v523
        %v1404 = vunpack.c.h.bf16 %v523
        %v1405 = vunpack.c.l.bf16 %v524
        %v1406 = vunpack.c.h.bf16 %v524
        %v1407 = vunpack.c.l.bf16 %v525
        %v1408 = vunpack.c.h.bf16 %v525
        %v1409 = vunpack.c.l.bf16 %v526
        %v1410 = vunpack.c.h.bf16 %v526
        %v1411 = vunpack.c.l.bf16 %v527
        %v1412 = vunpack.c.h.bf16 %v527
        %v1413 = vunpack.c.l.bf16 %v528
        %v1414 = vunpack.c.h.bf16 %v528
        %v1415 = vunpack.c.l.bf16 %v529
        %v1416 = vunpack.c.h.bf16 %v529
        %v1417 = vunpack.c.l.bf16 %v530
        %v1418 = vunpack.c.h.bf16 %v530
        %v1419 = vunpack.c.l.bf16 %v531
        %v1420 = vunpack.c.h.bf16 %v531
        %v1421 = vunpack.c.l.bf16 %v532
        %v1422 = vunpack.c.h.bf16 %v532
        %v1423 = vunpack.c.l.bf16 %v533
        %v1424 = vunpack.c.h.bf16 %v533
        %v1425 = vunpack.c.l.bf16 %v534
        %v1426 = vunpack.c.h.bf16 %v534
        %v1427 = vunpack.c.l.bf16 %v535
        %v1428 = vunpack.c.h.bf16 %v535
        %v1429 = vunpack.c.l.bf16 %v536
        %v1430 = vunpack.c.h.bf16 %v536
        %v1431 = vunpack.c.l.bf16 %v537
        %v1432 = vunpack.c.h.bf16 %v537
        %v1433 = vunpack.c.l.bf16 %v538
        %v1434 = vunpack.c.h.bf16 %v538
        %v1435 = vunpack.c.l.bf16 %v539
        %v1436 = vunpack.c.h.bf16 %v539
        %v1437 = vunpack.c.l.bf16 %v540
        %v1438 = vunpack.c.h.bf16 %v540
        %v1439 = vunpack.c.l.bf16 %v541
        %v1440 = vunpack.c.h.bf16 %v541
        %v1441 = vunpack.c.l.bf16 %v542
        %v1442 = vunpack.c.h.bf16 %v542
        %v1443 = vunpack.c.l.bf16 %v543
        %v1444 = vunpack.c.h.bf16 %v543
        %v1445 = vunpack.c.l.bf16 %v544
        %v1446 = vunpack.c.h.bf16 %v544
        %v1447 = vunpack.c.l.bf16 %v545
        %v1448 = vunpack.c.h.bf16 %v545
        %v1449 = vunpack.c.l.bf16 %v546
        %v1450 = vunpack.c.h.bf16 %v546
        %v1451 = vunpack.c.l.bf16 %v547
        %v1452 = vunpack.c.h.bf16 %v547
        %v1453 = vunpack.c.l.bf16 %v548
        %v1454 = vunpack.c.h.bf16 %v548
        %v1455 = vunpack.c.l.bf16 %v549
        %v1456 = vunpack.c.h.bf16 %v549
        %v1457 = vunpack.c.l.bf16 %v550
        %v1458 = vunpack.c.h.bf16 %v550
        %v1459 = vunpack.c.l.bf16 %v551
        %v1460 = vunpack.c.h.bf16 %v551
        %v1461 = vunpack.c.l.bf16 %v552
        %v1462 = vunpack.c.h.bf16 %v552
        %v1463 = vunpack.c.l.bf16 %v553
        %v1464 = vunpack.c.h.bf16 %v553
        %v1465 = vunpack.c.l.bf16 %v554
        %v1466 = vunpack.c.h.bf16 %v554
        %v1467 = vunpack.c.l.bf16 %v555
        %v1468 = vunpack.c.h.bf16 %v555
        %v1469 = vunpack.c.l.bf16 %v556
        %v1470 = vunpack.c.h.bf16 %v556
        %v1471 = vunpack.c.l.bf16 %v557
        %v1472 = vunpack.c.h.bf16 %v557
        %v1473 = vunpack.c.l.bf16 %v558
        %v1474 = vunpack.c.h.bf16 %v558
        %v1475 = vunpack.c.l.bf16 %v559
        %v1476 = vunpack.c.h.bf16 %v559
        %v1477 = vunpack.c.l.bf16 %v560
        %v1478 = vunpack.c.h.bf16 %v560
        %v1479 = vunpack.c.l.bf16 %v561
        %v1480 = vunpack.c.h.bf16 %v561
        %v1481 = vunpack.c.l.bf16 %v562
        %v1482 = vunpack.c.h.bf16 %v562
        %v1483 = vunpack.c.l.bf16 %v563
        %v1484 = vunpack.c.h.bf16 %v563
        %v1485 = vunpack.c.l.bf16 %v564
        %v1486 = vunpack.c.h.bf16 %v564
        %v1487 = vunpack.c.l.bf16 %v565
        %v1488 = vunpack.c.h.bf16 %v565
        %v1489 = vunpack.c.l.bf16 %v566
        %v1490 = vunpack.c.h.bf16 %v566
        %v1491 = vunpack.c.l.bf16 %v567
        %v1492 = vunpack.c.h.bf16 %v567
        %v1493 = vunpack.c.l.bf16 %v568
        %v1494 = vunpack.c.h.bf16 %v568
        %v1495 = vunpack.c.l.bf16 %v569
        %v1496 = vunpack.c.h.bf16 %v569
        %v1497 = vunpack.c.l.bf16 %v570
        %v1498 = vunpack.c.h.bf16 %v570
        %v1499 = vunpack.c.l.bf16 %v571
        %v1500 = vunpack.c.h.bf16 %v571
        %v1501 = vunpack.c.l.bf16 %v572
        %v1502 = vunpack.c.h.bf16 %v572
        %v1503 = vunpack.c.l.bf16 %v573
        %v1504 = vunpack.c.h.bf16 %v573
        %v1505 = vunpack.c.l.bf16 %v574
        %v1506 = vunpack.c.h.bf16 %v574
        %v1507 = vunpack.c.l.bf16 %v575
        %v1508 = vunpack.c.h.bf16 %v575
        %v1509 = vunpack.c.l.bf16 %v576
        %v1510 = vunpack.c.h.bf16 %v576
        %v1511 = vunpack.c.l.bf16 %v577
        %v1512 = vunpack.c.h.bf16 %v577
        %v1513 = vunpack.c.l.bf16 %v578
        %v1514 = vunpack.c.h.bf16 %v578
        %v1515 = vunpack.c.l.bf16 %v579
        %v1516 = vunpack.c.h.bf16 %v579
        %v1517 = vunpack.c.l.bf16 %v580
        %v1518 = vunpack.c.h.bf16 %v580
        %v1519 = vunpack.c.l.bf16 %v581
        %v1520 = vunpack.c.h.bf16 %v581
        %v1521 = vunpack.c.l.bf16 %v582
        %v1522 = vunpack.c.h.bf16 %v582
        %v1523 = vunpack.c.l.bf16 %v583
        %v1524 = vunpack.c.h.bf16 %v583
        %v1525 = vunpack.c.l.bf16 %v584
        %v1526 = vunpack.c.h.bf16 %v584
        %v1527 = vunpack.c.l.bf16 %v585
        %v1528 = vunpack.c.h.bf16 %v585
        %v1529 = vunpack.c.l.bf16 %v586
        %v1530 = vunpack.c.h.bf16 %v586
        %v1531 = vunpack.c.l.bf16 %v587
        %v1532 = vunpack.c.h.bf16 %v587
        %v1533 = vunpack.c.l.bf16 %v588
        %v1534 = vunpack.c.h.bf16 %v588
        %v1535 = vunpack.c.l.bf16 %v589
        %v1536 = vunpack.c.h.bf16 %v589
        %v1537 = vunpack.c.l.bf16 %v590
        %v1538 = vunpack.c.h.bf16 %v590
        %v1539 = vunpack.c.l.bf16 %v591
        %v1540 = vunpack.c.h.bf16 %v591
        %v1541 = vunpack.c.l.bf16 %v592
        %v1542 = vunpack.c.h.bf16 %v592
        %v1543 = vunpack.c.l.bf16 %v593
        %v1544 = vunpack.c.h.bf16 %v593
        %v1545 = vunpack.c.l.bf16 %v594
        %v1546 = vunpack.c.h.bf16 %v594
        %v1547 = vunpack.c.l.bf16 %v595
        %v1548 = vunpack.c.h.bf16 %v595
        %v1549 = vunpack.c.l.bf16 %v596
        %v1550 = vunpack.c.h.bf16 %v596
        %v1551 = vunpack.c.l.bf16 %v597
        %v1552 = vunpack.c.h.bf16 %v597
        %v1553 = vunpack.c.l.bf16 %v598
        %v1554 = vunpack.c.h.bf16 %v598
        %v1555 = vunpack.c.l.bf16 %v599
        %v1556 = vunpack.c.h.bf16 %v599
        %v1557 = vunpack.c.l.bf16 %v600
        %v1558 = vunpack.c.h.bf16 %v600
        %v1559 = vunpack.c.l.bf16 %v601
        %v1560 = vunpack.c.h.bf16 %v601
        %v1561 = vunpack.c.l.bf16 %v602
        %v1562 = vunpack.c.h.bf16 %v602
        %v1563 = vunpack.c.l.bf16 %v603
        %v1564 = vunpack.c.h.bf16 %v603
        %v1565 = vunpack.c.l.bf16 %v604
        %v1566 = vunpack.c.h.bf16 %v604
        %v1567 = vunpack.c.l.bf16 %v605
        %v1568 = vunpack.c.h.bf16 %v605
        %v1569 = vunpack.c.l.bf16 %v606
        %v1570 = vunpack.c.h.bf16 %v606
        %v1571 = vunpack.c.l.bf16 %v607
        %v1572 = vunpack.c.h.bf16 %v607
        %v1573 = vunpack.c.l.bf16 %v608
        %v1574 = vunpack.c.h.bf16 %v608
        %v1575 = vunpack.c.l.bf16 %v609
        %v1576 = vunpack.c.h.bf16 %v609
        %v1577 = vunpack.c.l.bf16 %v610
        %v1578 = vunpack.c.h.bf16 %v610
        %v1579 = vunpack.c.l.bf16 %v611
        %v1580 = vunpack.c.h.bf16 %v611
        %v1581 = vunpack.c.l.bf16 %v612
        %v1582 = vunpack.c.h.bf16 %v612
        %v1583 = vunpack.c.l.bf16 %v613
        %v1584 = vunpack.c.h.bf16 %v613
        %v1585 = vunpack.c.l.bf16 %v614
        %v1586 = vunpack.c.h.bf16 %v614
        %v1587 = vunpack.c.l.bf16 %v615
        %v1588 = vunpack.c.h.bf16 %v615
        %v1589 = vunpack.c.l.bf16 %v616
        %v1590 = vunpack.c.h.bf16 %v616
        %v1591 = vunpack.c.l.bf16 %v617
        %v1592 = vunpack.c.h.bf16 %v617
        %v1593 = vunpack.c.l.bf16 %v618
        %v1594 = vunpack.c.h.bf16 %v618
        %v1595 = vunpack.c.l.bf16 %v619
        %v1596 = vunpack.c.h.bf16 %v619
        %v1597 = vunpack.c.l.bf16 %v620
        %v1598 = vunpack.c.h.bf16 %v620
        %v1599 = vunpack.c.l.bf16 %v621
        %v1600 = vunpack.c.h.bf16 %v621
        %v1601 = vunpack.c.l.bf16 %v622
        %v1602 = vunpack.c.h.bf16 %v622
        %v1603 = vunpack.c.l.bf16 %v623
        %v1604 = vunpack.c.h.bf16 %v623
        %v1605 = vunpack.c.l.bf16 %v624
        %v1606 = vunpack.c.h.bf16 %v624
        %v1607 = vunpack.c.l.bf16 %v625
        %v1608 = vunpack.c.h.bf16 %v625
        %v1609 = vunpack.c.l.bf16 %v626
        %v1610 = vunpack.c.h.bf16 %v626
        %v1611 = vunpack.c.l.bf16 %v627
        %v1612 = vunpack.c.h.bf16 %v627
        %v1613 = vunpack.c.l.bf16 %v628
        %v1614 = vunpack.c.h.bf16 %v628
        %v1615 = vunpack.c.l.bf16 %v629
        %v1616 = vunpack.c.h.bf16 %v629
        %v1617 = vunpack.c.l.bf16 %v630
        %v1618 = vunpack.c.h.bf16 %v630
        %v1619 = vunpack.c.l.bf16 %v631
        %v1620 = vunpack.c.h.bf16 %v631
        %v1621 = vunpack.c.l.bf16 %v632
        %v1622 = vunpack.c.h.bf16 %v632
        %v1623 = vunpack.c.l.bf16 %v633
        %v1624 = vunpack.c.h.bf16 %v633
        %v1625 = vunpack.c.l.bf16 %v634
        %v1626 = vunpack.c.h.bf16 %v634
        %v1627 = vunpack.c.l.bf16 %v635
        %v1628 = vunpack.c.h.bf16 %v635
        %v1629 = vunpack.c.l.bf16 %v636
        %v1630 = vunpack.c.h.bf16 %v636
        %v1631 = vunpack.c.l.bf16 %v637
        %v1632 = vunpack.c.h.bf16 %v637
        %v1633 = vunpack.c.l.bf16 %v638
        %v1634 = vunpack.c.h.bf16 %v638
        %v1635 = vunpack.c.l.bf16 %v639
        %v1636 = vunpack.c.h.bf16 %v639
        %v1637 = vunpack.c.l.bf16 %v640
        %v1638 = vunpack.c.h.bf16 %v640
        %v1639 = vunpack.c.l.bf16 %v641
        %v1640 = vunpack.c.h.bf16 %v641
        %v1641 = vunpack.c.l.bf16 %v642
        %v1642 = vunpack.c.h.bf16 %v642
        %v1643 = vunpack.c.l.bf16 %v643
        %v1644 = vunpack.c.h.bf16 %v643
        %v1645 = vunpack.c.l.bf16 %v644
        %v1646 = vunpack.c.h.bf16 %v644
        %v1647 = vunpack.c.l.bf16 %v645
        %v1648 = vunpack.c.h.bf16 %v645
        %v1649 = vunpack.c.l.bf16 %v646
        %v1650 = vunpack.c.h.bf16 %v646
        %v1651 = vunpack.c.l.bf16 %v647
        %v1652 = vunpack.c.h.bf16 %v647
        %v1653 = vunpack.c.l.bf16 %v648
        %v1654 = vunpack.c.h.bf16 %v648
        %v1655 = vunpack.c.l.bf16 %v649
        %v1656 = vunpack.c.h.bf16 %v649
        %v1657 = vunpack.c.l.bf16 %v650
        %v1658 = vunpack.c.h.bf16 %v650
        %v1659 = vunpack.c.l.bf16 %v651
        %v1660 = vunpack.c.h.bf16 %v651
        %v1661 = vunpack.c.l.bf16 %v652
        %v1662 = vunpack.c.h.bf16 %v652
        %v1663 = vunpack.c.l.bf16 %v653
        %v1664 = vunpack.c.h.bf16 %v653
        %v1665 = vunpack.c.l.bf16 %v654
        %v1666 = vunpack.c.h.bf16 %v654
        %v1667 = vunpack.c.l.bf16 %v655
        %v1668 = vunpack.c.h.bf16 %v655
        %v1669 = vunpack.c.l.bf16 %v656
        %v1670 = vunpack.c.h.bf16 %v656
        %v1671 = vunpack.c.l.bf16 %v657
        %v1672 = vunpack.c.h.bf16 %v657
        %v1673 = vunpack.c.l.bf16 %v658
        %v1674 = vunpack.c.h.bf16 %v658
        %v1675 = vunpack.c.l.bf16 %v659
        %v1676 = vunpack.c.h.bf16 %v659
        %v1677 = vunpack.c.l.bf16 %v660
        %v1678 = vunpack.c.h.bf16 %v660
        %v1679 = vunpack.c.l.bf16 %v661
        %v1680 = vunpack.c.h.bf16 %v661
        %v1681 = vunpack.c.l.bf16 %v662
        %v1682 = vunpack.c.h.bf16 %v662
        %v1683 = vunpack.c.l.bf16 %v663
        %v1684 = vunpack.c.h.bf16 %v663
        %v1685 = vunpack.c.l.bf16 %v664
        %v1686 = vunpack.c.h.bf16 %v664
        %v1687 = vunpack.c.l.bf16 %v665
        %v1688 = vunpack.c.h.bf16 %v665
        %v1689 = vunpack.c.l.bf16 %v666
        %v1690 = vunpack.c.h.bf16 %v666
        %v1691 = vadd.f32 %v667, %v668
        %v1692 = vadd.f32 %v1691, %v669
        %v1693 = vadd.f32 %v1692, %v670
        %1694 = vadd.xlane.f32.xlu0 %v1693
        %v1695 = vpop.xlane.xlu0 %1694
        %v1696 = vadd.f32 %v671, %v672
        %v1697 = vadd.f32 %v1696, %v673
        %v1698 = vadd.f32 %v1697, %v674
        %1699 = vadd.xlane.f32.xlu0 %v1698
        %v1700 = vpop.xlane.xlu0 %1699
        %v1701 = vadd.f32 %v675, %v676
        %v1702 = vadd.f32 %v1701, %v677
        %v1703 = vadd.f32 %v1702, %v678
        %1704 = vadd.xlane.f32.xlu0 %v1703
        %v1705 = vpop.xlane.xlu0 %1704
        %v1706 = vadd.f32 %v679, %v680
        %v1707 = vadd.f32 %v1706, %v681
        %v1708 = vadd.f32 %v1707, %v682
        %1709 = vadd.xlane.f32.xlu0 %v1708
        %v1710 = vpop.xlane.xlu0 %1709
        %v1711 = vadd.f32 %v683, %v684
        %v1712 = vadd.f32 %v1711, %v685
        %v1713 = vadd.f32 %v1712, %v686
        %1714 = vadd.xlane.f32.xlu0 %v1713
        %v1715 = vpop.xlane.xlu0 %1714
        %v1716 = vadd.f32 %v687, %v688
        %v1717 = vadd.f32 %v1716, %v689
        %v1718 = vadd.f32 %v1717, %v690
        %1719 = vadd.xlane.f32.xlu0 %v1718
        %v1720 = vpop.xlane.xlu0 %1719
        %v1721 = vadd.f32 %v691, %v692
        %v1722 = vadd.f32 %v1721, %v693
        %v1723 = vadd.f32 %v1722, %v694
        %1724 = vadd.xlane.f32.xlu0 %v1723
        %v1725 = vpop.xlane.xlu0 %1724
        %v1726 = vadd.f32 %v695, %v696
        %v1727 = vadd.f32 %v1726, %v697
        %v1728 = vadd.f32 %v1727, %v698
        %1729 = vadd.xlane.f32.xlu0 %v1728
        %v1730 = vpop.xlane.xlu0 %1729
        %v1731 = vadd.f32 %v699, %v700
        %v1732 = vadd.f32 %v1731, %v701
        %v1733 = vadd.f32 %v1732, %v702
        %1734 = vadd.xlane.f32.xlu0 %v1733
        %v1735 = vpop.xlane.xlu0 %1734
        %v1736 = vadd.f32 %v703, %v704
        %v1737 = vadd.f32 %v1736, %v705
        %v1738 = vadd.f32 %v1737, %v706
        %1739 = vadd.xlane.f32.xlu0 %v1738
        %v1740 = vpop.xlane.xlu0 %1739
        %v1741 = vadd.f32 %v707, %v708
        %v1742 = vadd.f32 %v1741, %v709
        %v1743 = vadd.f32 %v1742, %v710
        %1744 = vadd.xlane.f32.xlu0 %v1743
        %v1745 = vpop.xlane.xlu0 %1744
        %v1746 = vadd.f32 %v711, %v712
        %v1747 = vadd.f32 %v1746, %v713
        %v1748 = vadd.f32 %v1747, %v714
        %1749 = vadd.xlane.f32.xlu0 %v1748
        %v1750 = vpop.xlane.xlu0 %1749
        %v1751 = vadd.f32 %v715, %v716
        %v1752 = vadd.f32 %v1751, %v717
        %v1753 = vadd.f32 %v1752, %v718
        %1754 = vadd.xlane.f32.xlu0 %v1753
        %v1755 = vpop.xlane.xlu0 %1754
        %v1756 = vadd.f32 %v719, %v720
        %v1757 = vadd.f32 %v1756, %v721
        %v1758 = vadd.f32 %v1757, %v722
        %1759 = vadd.xlane.f32.xlu0 %v1758
        %v1760 = vpop.xlane.xlu0 %1759
        %v1761 = vadd.f32 %v723, %v724
        %v1762 = vadd.f32 %v1761, %v725
        %v1763 = vadd.f32 %v1762, %v726
        %1764 = vadd.xlane.f32.xlu0 %v1763
        %v1765 = vpop.xlane.xlu0 %1764
        %v1766 = vadd.f32 %v727, %v728
        %v1767 = vadd.f32 %v1766, %v729
        %v1768 = vadd.f32 %v1767, %v730
        %1769 = vadd.xlane.f32.xlu0 %v1768
        %v1770 = vpop.xlane.xlu0 %1769
        %v1771 = vadd.f32 %v731, %v732
        %v1772 = vadd.f32 %v1771, %v733
        %v1773 = vadd.f32 %v1772, %v734
        %1774 = vadd.xlane.f32.xlu0 %v1773
        %v1775 = vpop.xlane.xlu0 %1774
        %v1776 = vadd.f32 %v735, %v736
        %v1777 = vadd.f32 %v1776, %v737
        %v1778 = vadd.f32 %v1777, %v738
        %1779 = vadd.xlane.f32.xlu0 %v1778
        %v1780 = vpop.xlane.xlu0 %1779
        %v1781 = vadd.f32 %v739, %v740
        %v1782 = vadd.f32 %v1781, %v741
        %v1783 = vadd.f32 %v1782, %v742
        %1784 = vadd.xlane.f32.xlu0 %v1783
        %v1785 = vpop.xlane.xlu0 %1784
        %v1786 = vadd.f32 %v743, %v744
        %v1787 = vadd.f32 %v1786, %v745
        %v1788 = vadd.f32 %v1787, %v746
        %1789 = vadd.xlane.f32.xlu0 %v1788
        %v1790 = vpop.xlane.xlu0 %1789
        %v1791 = vadd.f32 %v747, %v748
        %v1792 = vadd.f32 %v1791, %v749
        %v1793 = vadd.f32 %v1792, %v750
        %1794 = vadd.xlane.f32.xlu0 %v1793
        %v1795 = vpop.xlane.xlu0 %1794
        %v1796 = vadd.f32 %v751, %v752
        %v1797 = vadd.f32 %v1796, %v753
        %v1798 = vadd.f32 %v1797, %v754
        %1799 = vadd.xlane.f32.xlu0 %v1798
        %v1800 = vpop.xlane.xlu0 %1799
        %v1801 = vadd.f32 %v755, %v756
        %v1802 = vadd.f32 %v1801, %v757
        %v1803 = vadd.f32 %v1802, %v758
        %1804 = vadd.xlane.f32.xlu0 %v1803
        %v1805 = vpop.xlane.xlu0 %1804
        %v1806 = vadd.f32 %v759, %v760
        %v1807 = vadd.f32 %v1806, %v761
        %v1808 = vadd.f32 %v1807, %v762
        %1809 = vadd.xlane.f32.xlu0 %v1808
        %v1810 = vpop.xlane.xlu0 %1809
        %v1811 = vadd.f32 %v763, %v764
        %v1812 = vadd.f32 %v1811, %v765
        %v1813 = vadd.f32 %v1812, %v766
        %1814 = vadd.xlane.f32.xlu0 %v1813
        %v1815 = vpop.xlane.xlu0 %1814
        %v1816 = vadd.f32 %v767, %v768
        %v1817 = vadd.f32 %v1816, %v769
        %v1818 = vadd.f32 %v1817, %v770
        %1819 = vadd.xlane.f32.xlu0 %v1818
        %v1820 = vpop.xlane.xlu0 %1819
        %v1821 = vadd.f32 %v771, %v772
        %v1822 = vadd.f32 %v1821, %v773
        %v1823 = vadd.f32 %v1822, %v774
        %1824 = vadd.xlane.f32.xlu0 %v1823
        %v1825 = vpop.xlane.xlu0 %1824
        %v1826 = vadd.f32 %v775, %v776
        %v1827 = vadd.f32 %v1826, %v777
        %v1828 = vadd.f32 %v1827, %v778
        %1829 = vadd.xlane.f32.xlu0 %v1828
        %v1830 = vpop.xlane.xlu0 %1829
        %v1831 = vadd.f32 %v779, %v780
        %v1832 = vadd.f32 %v1831, %v781
        %v1833 = vadd.f32 %v1832, %v782
        %1834 = vadd.xlane.f32.xlu0 %v1833
        %v1835 = vpop.xlane.xlu0 %1834
        %v1836 = vadd.f32 %v783, %v784
        %v1837 = vadd.f32 %v1836, %v785
        %v1838 = vadd.f32 %v1837, %v786
        %1839 = vadd.xlane.f32.xlu0 %v1838
        %v1840 = vpop.xlane.xlu0 %1839
        %v1841 = vadd.f32 %v787, %v788
        %v1842 = vadd.f32 %v1841, %v789
        %v1843 = vadd.f32 %v1842, %v790
        %1844 = vadd.xlane.f32.xlu0 %v1843
        %v1845 = vpop.xlane.xlu0 %1844
        %v1846 = vadd.f32 %v791, %v792
        %v1847 = vadd.f32 %v1846, %v793
        %v1848 = vadd.f32 %v1847, %v794
        %1849 = vadd.xlane.f32.xlu0 %v1848
        %v1850 = vpop.xlane.xlu0 %1849
        %v1851 = vadd.f32 %v795, %v796
        %v1852 = vadd.f32 %v1851, %v797
        %v1853 = vadd.f32 %v1852, %v798
        %1854 = vadd.xlane.f32.xlu0 %v1853
        %v1855 = vpop.xlane.xlu0 %1854
        %v1856 = vadd.f32 %v799, %v800
        %v1857 = vadd.f32 %v1856, %v801
        %v1858 = vadd.f32 %v1857, %v802
        %1859 = vadd.xlane.f32.xlu0 %v1858
        %v1860 = vpop.xlane.xlu0 %1859
        %v1861 = vadd.f32 %v803, %v804
        %v1862 = vadd.f32 %v1861, %v805
        %v1863 = vadd.f32 %v1862, %v806
        %1864 = vadd.xlane.f32.xlu0 %v1863
        %v1865 = vpop.xlane.xlu0 %1864
        %v1866 = vadd.f32 %v807, %v808
        %v1867 = vadd.f32 %v1866, %v809
        %v1868 = vadd.f32 %v1867, %v810
        %1869 = vadd.xlane.f32.xlu0 %v1868
        %v1870 = vpop.xlane.xlu0 %1869
        %v1871 = vadd.f32 %v811, %v812
        %v1872 = vadd.f32 %v1871, %v813
        %v1873 = vadd.f32 %v1872, %v814
        %1874 = vadd.xlane.f32.xlu0 %v1873
        %v1875 = vpop.xlane.xlu0 %1874
        %v1876 = vadd.f32 %v815, %v816
        %v1877 = vadd.f32 %v1876, %v817
        %v1878 = vadd.f32 %v1877, %v818
        %1879 = vadd.xlane.f32.xlu0 %v1878
        %v1880 = vpop.xlane.xlu0 %1879
        %v1881 = vadd.f32 %v819, %v820
        %v1882 = vadd.f32 %v1881, %v821
        %v1883 = vadd.f32 %v1882, %v822
        %1884 = vadd.xlane.f32.xlu0 %v1883
        %v1885 = vpop.xlane.xlu0 %1884
        %v1886 = vadd.f32 %v823, %v824
        %v1887 = vadd.f32 %v1886, %v825
        %v1888 = vadd.f32 %v1887, %v826
        %1889 = vadd.xlane.f32.xlu0 %v1888
        %v1890 = vpop.xlane.xlu0 %1889
        %v1891 = vadd.f32 %v827, %v828
        %v1892 = vadd.f32 %v1891, %v829
        %v1893 = vadd.f32 %v1892, %v830
        %1894 = vadd.xlane.f32.xlu0 %v1893
        %v1895 = vpop.xlane.xlu0 %1894
        %v1896 = vadd.f32 %v831, %v832
        %v1897 = vadd.f32 %v1896, %v833
        %v1898 = vadd.f32 %v1897, %v834
        %1899 = vadd.xlane.f32.xlu0 %v1898
        %v1900 = vpop.xlane.xlu0 %1899
        %v1901 = vadd.f32 %v835, %v836
        %v1902 = vadd.f32 %v1901, %v837
        %v1903 = vadd.f32 %v1902, %v838
        %1904 = vadd.xlane.f32.xlu0 %v1903
        %v1905 = vpop.xlane.xlu0 %1904
        %v1906 = vadd.f32 %v839, %v840
        %v1907 = vadd.f32 %v1906, %v841
        %v1908 = vadd.f32 %v1907, %v842
        %1909 = vadd.xlane.f32.xlu0 %v1908
        %v1910 = vpop.xlane.xlu0 %1909
        %v1911 = vadd.f32 %v843, %v844
        %v1912 = vadd.f32 %v1911, %v845
        %v1913 = vadd.f32 %v1912, %v846
        %1914 = vadd.xlane.f32.xlu0 %v1913
        %v1915 = vpop.xlane.xlu0 %1914
        %v1916 = vadd.f32 %v847, %v848
        %v1917 = vadd.f32 %v1916, %v849
        %v1918 = vadd.f32 %v1917, %v850
        %1919 = vadd.xlane.f32.xlu0 %v1918
        %v1920 = vpop.xlane.xlu0 %1919
        %v1921 = vadd.f32 %v851, %v852
        %v1922 = vadd.f32 %v1921, %v853
        %v1923 = vadd.f32 %v1922, %v854
        %1924 = vadd.xlane.f32.xlu0 %v1923
        %v1925 = vpop.xlane.xlu0 %1924
        %v1926 = vadd.f32 %v855, %v856
        %v1927 = vadd.f32 %v1926, %v857
        %v1928 = vadd.f32 %v1927, %v858
        %1929 = vadd.xlane.f32.xlu0 %v1928
        %v1930 = vpop.xlane.xlu0 %1929
        %v1931 = vadd.f32 %v859, %v860
        %v1932 = vadd.f32 %v1931, %v861
        %v1933 = vadd.f32 %v1932, %v862
        %1934 = vadd.xlane.f32.xlu0 %v1933
        %v1935 = vpop.xlane.xlu0 %1934
        %v1936 = vadd.f32 %v863, %v864
        %v1937 = vadd.f32 %v1936, %v865
        %v1938 = vadd.f32 %v1937, %v866
        %1939 = vadd.xlane.f32.xlu0 %v1938
        %v1940 = vpop.xlane.xlu0 %1939
        %v1941 = vadd.f32 %v867, %v868
        %v1942 = vadd.f32 %v1941, %v869
        %v1943 = vadd.f32 %v1942, %v870
        %1944 = vadd.xlane.f32.xlu0 %v1943
        %v1945 = vpop.xlane.xlu0 %1944
        %v1946 = vadd.f32 %v871, %v872
        %v1947 = vadd.f32 %v1946, %v873
        %v1948 = vadd.f32 %v1947, %v874
        %1949 = vadd.xlane.f32.xlu0 %v1948
        %v1950 = vpop.xlane.xlu0 %1949
        %v1951 = vadd.f32 %v875, %v876
        %v1952 = vadd.f32 %v1951, %v877
        %v1953 = vadd.f32 %v1952, %v878
        %1954 = vadd.xlane.f32.xlu0 %v1953
        %v1955 = vpop.xlane.xlu0 %1954
        %v1956 = vadd.f32 %v879, %v880
        %v1957 = vadd.f32 %v1956, %v881
        %v1958 = vadd.f32 %v1957, %v882
        %1959 = vadd.xlane.f32.xlu0 %v1958
        %v1960 = vpop.xlane.xlu0 %1959
        %v1961 = vadd.f32 %v883, %v884
        %v1962 = vadd.f32 %v1961, %v885
        %v1963 = vadd.f32 %v1962, %v886
        %1964 = vadd.xlane.f32.xlu0 %v1963
        %v1965 = vpop.xlane.xlu0 %1964
        %v1966 = vadd.f32 %v887, %v888
        %v1967 = vadd.f32 %v1966, %v889
        %v1968 = vadd.f32 %v1967, %v890
        %1969 = vadd.xlane.f32.xlu0 %v1968
        %v1970 = vpop.xlane.xlu0 %1969
        %v1971 = vadd.f32 %v891, %v892
        %v1972 = vadd.f32 %v1971, %v893
        %v1973 = vadd.f32 %v1972, %v894
        %1974 = vadd.xlane.f32.xlu0 %v1973
        %v1975 = vpop.xlane.xlu0 %1974
        %v1976 = vadd.f32 %v895, %v896
        %v1977 = vadd.f32 %v1976, %v897
        %v1978 = vadd.f32 %v1977, %v898
        %1979 = vadd.xlane.f32.xlu0 %v1978
        %v1980 = vpop.xlane.xlu0 %1979
        %v1981 = vadd.f32 %v899, %v900
        %v1982 = vadd.f32 %v1981, %v901
        %v1983 = vadd.f32 %v1982, %v902
        %1984 = vadd.xlane.f32.xlu0 %v1983
        %v1985 = vpop.xlane.xlu0 %1984
        %v1986 = vadd.f32 %v903, %v904
        %v1987 = vadd.f32 %v1986, %v905
        %v1988 = vadd.f32 %v1987, %v906
        %1989 = vadd.xlane.f32.xlu0 %v1988
        %v1990 = vpop.xlane.xlu0 %1989
        %v1991 = vadd.f32 %v907, %v908
        %v1992 = vadd.f32 %v1991, %v909
        %v1993 = vadd.f32 %v1992, %v910
        %1994 = vadd.xlane.f32.xlu0 %v1993
        %v1995 = vpop.xlane.xlu0 %1994
        %v1996 = vadd.f32 %v911, %v912
        %v1997 = vadd.f32 %v1996, %v913
        %v1998 = vadd.f32 %v1997, %v914
        %1999 = vadd.xlane.f32.xlu0 %v1998
        %v2000 = vpop.xlane.xlu0 %1999
        %v2001 = vadd.f32 %v915, %v916
        %v2002 = vadd.f32 %v2001, %v917
        %v2003 = vadd.f32 %v2002, %v918
        %2004 = vadd.xlane.f32.xlu0 %v2003
        %v2005 = vpop.xlane.xlu0 %2004
        %v2006 = vadd.f32 %v919, %v920
        %v2007 = vadd.f32 %v2006, %v921
        %v2008 = vadd.f32 %v2007, %v922
        %2009 = vadd.xlane.f32.xlu0 %v2008
        %v2010 = vpop.xlane.xlu0 %2009
        %v2011 = vadd.f32 %v923, %v924
        %v2012 = vadd.f32 %v2011, %v925
        %v2013 = vadd.f32 %v2012, %v926
        %2014 = vadd.xlane.f32.xlu0 %v2013
        %v2015 = vpop.xlane.xlu0 %2014
        %v2016 = vadd.f32 %v927, %v928
        %v2017 = vadd.f32 %v2016, %v929
        %v2018 = vadd.f32 %v2017, %v930
        %2019 = vadd.xlane.f32.xlu0 %v2018
        %v2020 = vpop.xlane.xlu0 %2019
        %v2021 = vadd.f32 %v931, %v932
        %v2022 = vadd.f32 %v2021, %v933
        %v2023 = vadd.f32 %v2022, %v934
        %2024 = vadd.xlane.f32.xlu0 %v2023
        %v2025 = vpop.xlane.xlu0 %2024
        %v2026 = vadd.f32 %v935, %v936
        %v2027 = vadd.f32 %v2026, %v937
        %v2028 = vadd.f32 %v2027, %v938
        %2029 = vadd.xlane.f32.xlu0 %v2028
        %v2030 = vpop.xlane.xlu0 %2029
        %v2031 = vadd.f32 %v939, %v940
        %v2032 = vadd.f32 %v2031, %v941
        %v2033 = vadd.f32 %v2032, %v942
        %2034 = vadd.xlane.f32.xlu0 %v2033
        %v2035 = vpop.xlane.xlu0 %2034
        %v2036 = vadd.f32 %v943, %v944
        %v2037 = vadd.f32 %v2036, %v945
        %v2038 = vadd.f32 %v2037, %v946
        %2039 = vadd.xlane.f32.xlu0 %v2038
        %v2040 = vpop.xlane.xlu0 %2039
        %v2041 = vadd.f32 %v947, %v948
        %v2042 = vadd.f32 %v2041, %v949
        %v2043 = vadd.f32 %v2042, %v950
        %2044 = vadd.xlane.f32.xlu0 %v2043
        %v2045 = vpop.xlane.xlu0 %2044
        %v2046 = vadd.f32 %v951, %v952
        %v2047 = vadd.f32 %v2046, %v953
        %v2048 = vadd.f32 %v2047, %v954
        %2049 = vadd.xlane.f32.xlu0 %v2048
        %v2050 = vpop.xlane.xlu0 %2049
        %v2051 = vadd.f32 %v955, %v956
        %v2052 = vadd.f32 %v2051, %v957
        %v2053 = vadd.f32 %v2052, %v958
        %2054 = vadd.xlane.f32.xlu0 %v2053
        %v2055 = vpop.xlane.xlu0 %2054
        %v2056 = vadd.f32 %v959, %v960
        %v2057 = vadd.f32 %v2056, %v961
        %v2058 = vadd.f32 %v2057, %v962
        %2059 = vadd.xlane.f32.xlu0 %v2058
        %v2060 = vpop.xlane.xlu0 %2059
        %v2061 = vadd.f32 %v963, %v964
        %v2062 = vadd.f32 %v2061, %v965
        %v2063 = vadd.f32 %v2062, %v966
        %2064 = vadd.xlane.f32.xlu0 %v2063
        %v2065 = vpop.xlane.xlu0 %2064
        %v2066 = vadd.f32 %v967, %v968
        %v2067 = vadd.f32 %v2066, %v969
        %v2068 = vadd.f32 %v2067, %v970
        %2069 = vadd.xlane.f32.xlu0 %v2068
        %v2070 = vpop.xlane.xlu0 %2069
        %v2071 = vadd.f32 %v971, %v972
        %v2072 = vadd.f32 %v2071, %v973
        %v2073 = vadd.f32 %v2072, %v974
        %2074 = vadd.xlane.f32.xlu0 %v2073
        %v2075 = vpop.xlane.xlu0 %2074
        %v2076 = vadd.f32 %v975, %v976
        %v2077 = vadd.f32 %v2076, %v977
        %v2078 = vadd.f32 %v2077, %v978
        %2079 = vadd.xlane.f32.xlu0 %v2078
        %v2080 = vpop.xlane.xlu0 %2079
        %v2081 = vadd.f32 %v979, %v980
        %v2082 = vadd.f32 %v2081, %v981
        %v2083 = vadd.f32 %v2082, %v982
        %2084 = vadd.xlane.f32.xlu0 %v2083
        %v2085 = vpop.xlane.xlu0 %2084
        %v2086 = vadd.f32 %v983, %v984
        %v2087 = vadd.f32 %v2086, %v985
        %v2088 = vadd.f32 %v2087, %v986
        %2089 = vadd.xlane.f32.xlu0 %v2088
        %v2090 = vpop.xlane.xlu0 %2089
        %v2091 = vadd.f32 %v987, %v988
        %v2092 = vadd.f32 %v2091, %v989
        %v2093 = vadd.f32 %v2092, %v990
        %2094 = vadd.xlane.f32.xlu0 %v2093
        %v2095 = vpop.xlane.xlu0 %2094
        %v2096 = vadd.f32 %v991, %v992
        %v2097 = vadd.f32 %v2096, %v993
        %v2098 = vadd.f32 %v2097, %v994
        %2099 = vadd.xlane.f32.xlu0 %v2098
        %v2100 = vpop.xlane.xlu0 %2099
        %v2101 = vadd.f32 %v995, %v996
        %v2102 = vadd.f32 %v2101, %v997
        %v2103 = vadd.f32 %v2102, %v998
        %2104 = vadd.xlane.f32.xlu0 %v2103
        %v2105 = vpop.xlane.xlu0 %2104
        %v2106 = vadd.f32 %v999, %v1000
        %v2107 = vadd.f32 %v2106, %v1001
        %v2108 = vadd.f32 %v2107, %v1002
        %2109 = vadd.xlane.f32.xlu0 %v2108
        %v2110 = vpop.xlane.xlu0 %2109
        %v2111 = vadd.f32 %v1003, %v1004
        %v2112 = vadd.f32 %v2111, %v1005
        %v2113 = vadd.f32 %v2112, %v1006
        %2114 = vadd.xlane.f32.xlu0 %v2113
        %v2115 = vpop.xlane.xlu0 %2114
        %v2116 = vadd.f32 %v1007, %v1008
        %v2117 = vadd.f32 %v2116, %v1009
        %v2118 = vadd.f32 %v2117, %v1010
        %2119 = vadd.xlane.f32.xlu0 %v2118
        %v2120 = vpop.xlane.xlu0 %2119
        %v2121 = vadd.f32 %v1011, %v1012
        %v2122 = vadd.f32 %v2121, %v1013
        %v2123 = vadd.f32 %v2122, %v1014
        %2124 = vadd.xlane.f32.xlu0 %v2123
        %v2125 = vpop.xlane.xlu0 %2124
        %v2126 = vadd.f32 %v1015, %v1016
        %v2127 = vadd.f32 %v2126, %v1017
        %v2128 = vadd.f32 %v2127, %v1018
        %2129 = vadd.xlane.f32.xlu0 %v2128
        %v2130 = vpop.xlane.xlu0 %2129
        %v2131 = vadd.f32 %v1019, %v1020
        %v2132 = vadd.f32 %v2131, %v1021
        %v2133 = vadd.f32 %v2132, %v1022
        %2134 = vadd.xlane.f32.xlu0 %v2133
        %v2135 = vpop.xlane.xlu0 %2134
        %v2136 = vadd.f32 %v1023, %v1024
        %v2137 = vadd.f32 %v2136, %v1025
        %v2138 = vadd.f32 %v2137, %v1026
        %2139 = vadd.xlane.f32.xlu0 %v2138
        %v2140 = vpop.xlane.xlu0 %2139
        %v2141 = vadd.f32 %v1027, %v1028
        %v2142 = vadd.f32 %v2141, %v1029
        %v2143 = vadd.f32 %v2142, %v1030
        %2144 = vadd.xlane.f32.xlu0 %v2143
        %v2145 = vpop.xlane.xlu0 %2144
        %v2146 = vadd.f32 %v1031, %v1032
        %v2147 = vadd.f32 %v2146, %v1033
        %v2148 = vadd.f32 %v2147, %v1034
        %2149 = vadd.xlane.f32.xlu0 %v2148
        %v2150 = vpop.xlane.xlu0 %2149
        %v2151 = vadd.f32 %v1035, %v1036
        %v2152 = vadd.f32 %v2151, %v1037
        %v2153 = vadd.f32 %v2152, %v1038
        %2154 = vadd.xlane.f32.xlu0 %v2153
        %v2155 = vpop.xlane.xlu0 %2154
        %v2156 = vadd.f32 %v1039, %v1040
        %v2157 = vadd.f32 %v2156, %v1041
        %v2158 = vadd.f32 %v2157, %v1042
        %2159 = vadd.xlane.f32.xlu0 %v2158
        %v2160 = vpop.xlane.xlu0 %2159
        %v2161 = vadd.f32 %v1043, %v1044
        %v2162 = vadd.f32 %v2161, %v1045
        %v2163 = vadd.f32 %v2162, %v1046
        %2164 = vadd.xlane.f32.xlu0 %v2163
        %v2165 = vpop.xlane.xlu0 %2164
        %v2166 = vadd.f32 %v1047, %v1048
        %v2167 = vadd.f32 %v2166, %v1049
        %v2168 = vadd.f32 %v2167, %v1050
        %2169 = vadd.xlane.f32.xlu0 %v2168
        %v2170 = vpop.xlane.xlu0 %2169
        %v2171 = vadd.f32 %v1051, %v1052
        %v2172 = vadd.f32 %v2171, %v1053
        %v2173 = vadd.f32 %v2172, %v1054
        %2174 = vadd.xlane.f32.xlu0 %v2173
        %v2175 = vpop.xlane.xlu0 %2174
        %v2176 = vadd.f32 %v1055, %v1056
        %v2177 = vadd.f32 %v2176, %v1057
        %v2178 = vadd.f32 %v2177, %v1058
        %2179 = vadd.xlane.f32.xlu0 %v2178
        %v2180 = vpop.xlane.xlu0 %2179
        %v2181 = vadd.f32 %v1059, %v1060
        %v2182 = vadd.f32 %v2181, %v1061
        %v2183 = vadd.f32 %v2182, %v1062
        %2184 = vadd.xlane.f32.xlu0 %v2183
        %v2185 = vpop.xlane.xlu0 %2184
        %v2186 = vadd.f32 %v1063, %v1064
        %v2187 = vadd.f32 %v2186, %v1065
        %v2188 = vadd.f32 %v2187, %v1066
        %2189 = vadd.xlane.f32.xlu0 %v2188
        %v2190 = vpop.xlane.xlu0 %2189
        %v2191 = vadd.f32 %v1067, %v1068
        %v2192 = vadd.f32 %v2191, %v1069
        %v2193 = vadd.f32 %v2192, %v1070
        %2194 = vadd.xlane.f32.xlu0 %v2193
        %v2195 = vpop.xlane.xlu0 %2194
        %v2196 = vadd.f32 %v1071, %v1072
        %v2197 = vadd.f32 %v2196, %v1073
        %v2198 = vadd.f32 %v2197, %v1074
        %2199 = vadd.xlane.f32.xlu0 %v2198
        %v2200 = vpop.xlane.xlu0 %2199
        %v2201 = vadd.f32 %v1075, %v1076
        %v2202 = vadd.f32 %v2201, %v1077
        %v2203 = vadd.f32 %v2202, %v1078
        %2204 = vadd.xlane.f32.xlu0 %v2203
        %v2205 = vpop.xlane.xlu0 %2204
        %v2206 = vadd.f32 %v1079, %v1080
        %v2207 = vadd.f32 %v2206, %v1081
        %v2208 = vadd.f32 %v2207, %v1082
        %2209 = vadd.xlane.f32.xlu0 %v2208
        %v2210 = vpop.xlane.xlu0 %2209
        %v2211 = vadd.f32 %v1083, %v1084
        %v2212 = vadd.f32 %v2211, %v1085
        %v2213 = vadd.f32 %v2212, %v1086
        %2214 = vadd.xlane.f32.xlu0 %v2213
        %v2215 = vpop.xlane.xlu0 %2214
        %v2216 = vadd.f32 %v1087, %v1088
        %v2217 = vadd.f32 %v2216, %v1089
        %v2218 = vadd.f32 %v2217, %v1090
        %2219 = vadd.xlane.f32.xlu0 %v2218
        %v2220 = vpop.xlane.xlu0 %2219
        %v2221 = vadd.f32 %v1091, %v1092
        %v2222 = vadd.f32 %v2221, %v1093
        %v2223 = vadd.f32 %v2222, %v1094
        %2224 = vadd.xlane.f32.xlu0 %v2223
        %v2225 = vpop.xlane.xlu0 %2224
        %v2226 = vadd.f32 %v1095, %v1096
        %v2227 = vadd.f32 %v2226, %v1097
        %v2228 = vadd.f32 %v2227, %v1098
        %2229 = vadd.xlane.f32.xlu0 %v2228
        %v2230 = vpop.xlane.xlu0 %2229
        %v2231 = vadd.f32 %v1099, %v1100
        %v2232 = vadd.f32 %v2231, %v1101
        %v2233 = vadd.f32 %v2232, %v1102
        %2234 = vadd.xlane.f32.xlu0 %v2233
        %v2235 = vpop.xlane.xlu0 %2234
        %v2236 = vadd.f32 %v1103, %v1104
        %v2237 = vadd.f32 %v2236, %v1105
        %v2238 = vadd.f32 %v2237, %v1106
        %2239 = vadd.xlane.f32.xlu0 %v2238
        %v2240 = vpop.xlane.xlu0 %2239
        %v2241 = vadd.f32 %v1107, %v1108
        %v2242 = vadd.f32 %v2241, %v1109
        %v2243 = vadd.f32 %v2242, %v1110
        %2244 = vadd.xlane.f32.xlu0 %v2243
        %v2245 = vpop.xlane.xlu0 %2244
        %v2246 = vadd.f32 %v1111, %v1112
        %v2247 = vadd.f32 %v2246, %v1113
        %v2248 = vadd.f32 %v2247, %v1114
        %2249 = vadd.xlane.f32.xlu0 %v2248
        %v2250 = vpop.xlane.xlu0 %2249
        %v2251 = vadd.f32 %v1115, %v1116
        %v2252 = vadd.f32 %v2251, %v1117
        %v2253 = vadd.f32 %v2252, %v1118
        %2254 = vadd.xlane.f32.xlu0 %v2253
        %v2255 = vpop.xlane.xlu0 %2254
        %v2256 = vadd.f32 %v1119, %v1120
        %v2257 = vadd.f32 %v2256, %v1121
        %v2258 = vadd.f32 %v2257, %v1122
        %2259 = vadd.xlane.f32.xlu0 %v2258
        %v2260 = vpop.xlane.xlu0 %2259
        %v2261 = vadd.f32 %v1123, %v1124
        %v2262 = vadd.f32 %v2261, %v1125
        %v2263 = vadd.f32 %v2262, %v1126
        %2264 = vadd.xlane.f32.xlu0 %v2263
        %v2265 = vpop.xlane.xlu0 %2264
        %v2266 = vadd.f32 %v1127, %v1128
        %v2267 = vadd.f32 %v2266, %v1129
        %v2268 = vadd.f32 %v2267, %v1130
        %2269 = vadd.xlane.f32.xlu0 %v2268
        %v2270 = vpop.xlane.xlu0 %2269
        %v2271 = vadd.f32 %v1131, %v1132
        %v2272 = vadd.f32 %v2271, %v1133
        %v2273 = vadd.f32 %v2272, %v1134
        %2274 = vadd.xlane.f32.xlu0 %v2273
        %v2275 = vpop.xlane.xlu0 %2274
        %v2276 = vadd.f32 %v1135, %v1136
        %v2277 = vadd.f32 %v2276, %v1137
        %v2278 = vadd.f32 %v2277, %v1138
        %2279 = vadd.xlane.f32.xlu0 %v2278
        %v2280 = vpop.xlane.xlu0 %2279
        %v2281 = vadd.f32 %v1139, %v1140
        %v2282 = vadd.f32 %v2281, %v1141
        %v2283 = vadd.f32 %v2282, %v1142
        %2284 = vadd.xlane.f32.xlu0 %v2283
        %v2285 = vpop.xlane.xlu0 %2284
        %v2286 = vadd.f32 %v1143, %v1144
        %v2287 = vadd.f32 %v2286, %v1145
        %v2288 = vadd.f32 %v2287, %v1146
        %2289 = vadd.xlane.f32.xlu0 %v2288
        %v2290 = vpop.xlane.xlu0 %2289
        %v2291 = vadd.f32 %v1147, %v1148
        %v2292 = vadd.f32 %v2291, %v1149
        %v2293 = vadd.f32 %v2292, %v1150
        %2294 = vadd.xlane.f32.xlu0 %v2293
        %v2295 = vpop.xlane.xlu0 %2294
        %v2296 = vadd.f32 %v1151, %v1152
        %v2297 = vadd.f32 %v2296, %v1153
        %v2298 = vadd.f32 %v2297, %v1154
        %2299 = vadd.xlane.f32.xlu0 %v2298
        %v2300 = vpop.xlane.xlu0 %2299
        %v2301 = vadd.f32 %v1155, %v1156
        %v2302 = vadd.f32 %v2301, %v1157
        %v2303 = vadd.f32 %v2302, %v1158
        %2304 = vadd.xlane.f32.xlu0 %v2303
        %v2305 = vpop.xlane.xlu0 %2304
        %v2306 = vadd.f32 %v1159, %v1160
        %v2307 = vadd.f32 %v2306, %v1161
        %v2308 = vadd.f32 %v2307, %v1162
        %2309 = vadd.xlane.f32.xlu0 %v2308
        %v2310 = vpop.xlane.xlu0 %2309
        %v2311 = vadd.f32 %v1163, %v1164
        %v2312 = vadd.f32 %v2311, %v1165
        %v2313 = vadd.f32 %v2312, %v1166
        %2314 = vadd.xlane.f32.xlu0 %v2313
        %v2315 = vpop.xlane.xlu0 %2314
        %v2316 = vadd.f32 %v1167, %v1168
        %v2317 = vadd.f32 %v2316, %v1169
        %v2318 = vadd.f32 %v2317, %v1170
        %2319 = vadd.xlane.f32.xlu0 %v2318
        %v2320 = vpop.xlane.xlu0 %2319
        %v2321 = vadd.f32 %v1171, %v1172
        %v2322 = vadd.f32 %v2321, %v1173
        %v2323 = vadd.f32 %v2322, %v1174
        %2324 = vadd.xlane.f32.xlu0 %v2323
        %v2325 = vpop.xlane.xlu0 %2324
        %v2326 = vadd.f32 %v1175, %v1176
        %v2327 = vadd.f32 %v2326, %v1177
        %v2328 = vadd.f32 %v2327, %v1178
        %2329 = vadd.xlane.f32.xlu0 %v2328
        %v2330 = vpop.xlane.xlu0 %2329
        %v2331 = vadd.f32 %v1179, %v1180
        %v2332 = vadd.f32 %v2331, %v1181
        %v2333 = vadd.f32 %v2332, %v1182
        %2334 = vadd.xlane.f32.xlu0 %v2333
        %v2335 = vpop.xlane.xlu0 %2334
        %v2336 = vadd.f32 %v1183, %v1184
        %v2337 = vadd.f32 %v2336, %v1185
        %v2338 = vadd.f32 %v2337, %v1186
        %2339 = vadd.xlane.f32.xlu0 %v2338
        %v2340 = vpop.xlane.xlu0 %2339
        %v2341 = vadd.f32 %v1187, %v1188
        %v2342 = vadd.f32 %v2341, %v1189
        %v2343 = vadd.f32 %v2342, %v1190
        %2344 = vadd.xlane.f32.xlu0 %v2343
        %v2345 = vpop.xlane.xlu0 %2344
        %v2346 = vadd.f32 %v1191, %v1192
        %v2347 = vadd.f32 %v2346, %v1193
        %v2348 = vadd.f32 %v2347, %v1194
        %2349 = vadd.xlane.f32.xlu0 %v2348
        %v2350 = vpop.xlane.xlu0 %2349
        %v2351 = vadd.f32 %v1195, %v1196
        %v2352 = vadd.f32 %v2351, %v1197
        %v2353 = vadd.f32 %v2352, %v1198
        %2354 = vadd.xlane.f32.xlu0 %v2353
        %v2355 = vpop.xlane.xlu0 %2354
        %v2356 = vadd.f32 %v1199, %v1200
        %v2357 = vadd.f32 %v2356, %v1201
        %v2358 = vadd.f32 %v2357, %v1202
        %2359 = vadd.xlane.f32.xlu0 %v2358
        %v2360 = vpop.xlane.xlu0 %2359
        %v2361 = vadd.f32 %v1203, %v1204
        %v2362 = vadd.f32 %v2361, %v1205
        %v2363 = vadd.f32 %v2362, %v1206
        %2364 = vadd.xlane.f32.xlu0 %v2363
        %v2365 = vpop.xlane.xlu0 %2364
        %v2366 = vadd.f32 %v1207, %v1208
        %v2367 = vadd.f32 %v2366, %v1209
        %v2368 = vadd.f32 %v2367, %v1210
        %2369 = vadd.xlane.f32.xlu0 %v2368
        %v2370 = vpop.xlane.xlu0 %2369
        %v2371 = vadd.f32 %v1211, %v1212
        %v2372 = vadd.f32 %v2371, %v1213
        %v2373 = vadd.f32 %v2372, %v1214
        %2374 = vadd.xlane.f32.xlu0 %v2373
        %v2375 = vpop.xlane.xlu0 %2374
        %v2376 = vadd.f32 %v1215, %v1216
        %v2377 = vadd.f32 %v2376, %v1217
        %v2378 = vadd.f32 %v2377, %v1218
        %2379 = vadd.xlane.f32.xlu0 %v2378
        %v2380 = vpop.xlane.xlu0 %2379
        %v2381 = vadd.f32 %v1219, %v1220
        %v2382 = vadd.f32 %v2381, %v1221
        %v2383 = vadd.f32 %v2382, %v1222
        %2384 = vadd.xlane.f32.xlu0 %v2383
        %v2385 = vpop.xlane.xlu0 %2384
        %v2386 = vadd.f32 %v1223, %v1224
        %v2387 = vadd.f32 %v2386, %v1225
        %v2388 = vadd.f32 %v2387, %v1226
        %2389 = vadd.xlane.f32.xlu0 %v2388
        %v2390 = vpop.xlane.xlu0 %2389
        %v2391 = vadd.f32 %v1227, %v1228
        %v2392 = vadd.f32 %v2391, %v1229
        %v2393 = vadd.f32 %v2392, %v1230
        %2394 = vadd.xlane.f32.xlu0 %v2393
        %v2395 = vpop.xlane.xlu0 %2394
        %v2396 = vadd.f32 %v1231, %v1232
        %v2397 = vadd.f32 %v2396, %v1233
        %v2398 = vadd.f32 %v2397, %v1234
        %2399 = vadd.xlane.f32.xlu0 %v2398
        %v2400 = vpop.xlane.xlu0 %2399
        %v2401 = vadd.f32 %v1235, %v1236
        %v2402 = vadd.f32 %v2401, %v1237
        %v2403 = vadd.f32 %v2402, %v1238
        %2404 = vadd.xlane.f32.xlu0 %v2403
        %v2405 = vpop.xlane.xlu0 %2404
        %v2406 = vadd.f32 %v1239, %v1240
        %v2407 = vadd.f32 %v2406, %v1241
        %v2408 = vadd.f32 %v2407, %v1242
        %2409 = vadd.xlane.f32.xlu0 %v2408
        %v2410 = vpop.xlane.xlu0 %2409
        %v2411 = vadd.f32 %v1243, %v1244
        %v2412 = vadd.f32 %v2411, %v1245
        %v2413 = vadd.f32 %v2412, %v1246
        %2414 = vadd.xlane.f32.xlu0 %v2413
        %v2415 = vpop.xlane.xlu0 %2414
        %v2416 = vadd.f32 %v1247, %v1248
        %v2417 = vadd.f32 %v2416, %v1249
        %v2418 = vadd.f32 %v2417, %v1250
        %2419 = vadd.xlane.f32.xlu0 %v2418
        %v2420 = vpop.xlane.xlu0 %2419
        %v2421 = vadd.f32 %v1251, %v1252
        %v2422 = vadd.f32 %v2421, %v1253
        %v2423 = vadd.f32 %v2422, %v1254
        %2424 = vadd.xlane.f32.xlu0 %v2423
        %v2425 = vpop.xlane.xlu0 %2424
        %v2426 = vadd.f32 %v1255, %v1256
        %v2427 = vadd.f32 %v2426, %v1257
        %v2428 = vadd.f32 %v2427, %v1258
        %2429 = vadd.xlane.f32.xlu0 %v2428
        %v2430 = vpop.xlane.xlu0 %2429
        %v2431 = vadd.f32 %v1259, %v1260
        %v2432 = vadd.f32 %v2431, %v1261
        %v2433 = vadd.f32 %v2432, %v1262
        %2434 = vadd.xlane.f32.xlu0 %v2433
        %v2435 = vpop.xlane.xlu0 %2434
        %v2436 = vadd.f32 %v1263, %v1264
        %v2437 = vadd.f32 %v2436, %v1265
        %v2438 = vadd.f32 %v2437, %v1266
        %2439 = vadd.xlane.f32.xlu0 %v2438
        %v2440 = vpop.xlane.xlu0 %2439
        %v2441 = vadd.f32 %v1267, %v1268
        %v2442 = vadd.f32 %v2441, %v1269
        %v2443 = vadd.f32 %v2442, %v1270
        %2444 = vadd.xlane.f32.xlu0 %v2443
        %v2445 = vpop.xlane.xlu0 %2444
        %v2446 = vadd.f32 %v1271, %v1272
        %v2447 = vadd.f32 %v2446, %v1273
        %v2448 = vadd.f32 %v2447, %v1274
        %2449 = vadd.xlane.f32.xlu0 %v2448
        %v2450 = vpop.xlane.xlu0 %2449
        %v2451 = vadd.f32 %v1275, %v1276
        %v2452 = vadd.f32 %v2451, %v1277
        %v2453 = vadd.f32 %v2452, %v1278
        %2454 = vadd.xlane.f32.xlu0 %v2453
        %v2455 = vpop.xlane.xlu0 %2454
        %v2456 = vadd.f32 %v1279, %v1280
        %v2457 = vadd.f32 %v2456, %v1281
        %v2458 = vadd.f32 %v2457, %v1282
        %2459 = vadd.xlane.f32.xlu0 %v2458
        %v2460 = vpop.xlane.xlu0 %2459
        %v2461 = vadd.f32 %v1283, %v1284
        %v2462 = vadd.f32 %v2461, %v1285
        %v2463 = vadd.f32 %v2462, %v1286
        %2464 = vadd.xlane.f32.xlu0 %v2463
        %v2465 = vpop.xlane.xlu0 %2464
        %v2466 = vadd.f32 %v1287, %v1288
        %v2467 = vadd.f32 %v2466, %v1289
        %v2468 = vadd.f32 %v2467, %v1290
        %2469 = vadd.xlane.f32.xlu0 %v2468
        %v2470 = vpop.xlane.xlu0 %2469
        %v2471 = vadd.f32 %v1291, %v1292
        %v2472 = vadd.f32 %v2471, %v1293
        %v2473 = vadd.f32 %v2472, %v1294
        %2474 = vadd.xlane.f32.xlu0 %v2473
        %v2475 = vpop.xlane.xlu0 %2474
        %v2476 = vadd.f32 %v1295, %v1296
        %v2477 = vadd.f32 %v2476, %v1297
        %v2478 = vadd.f32 %v2477, %v1298
        %2479 = vadd.xlane.f32.xlu0 %v2478
        %v2480 = vpop.xlane.xlu0 %2479
        %v2481 = vadd.f32 %v1299, %v1300
        %v2482 = vadd.f32 %v2481, %v1301
        %v2483 = vadd.f32 %v2482, %v1302
        %2484 = vadd.xlane.f32.xlu0 %v2483
        %v2485 = vpop.xlane.xlu0 %2484
        %v2486 = vadd.f32 %v1303, %v1304
        %v2487 = vadd.f32 %v2486, %v1305
        %v2488 = vadd.f32 %v2487, %v1306
        %2489 = vadd.xlane.f32.xlu0 %v2488
        %v2490 = vpop.xlane.xlu0 %2489
        %v2491 = vadd.f32 %v1307, %v1308
        %v2492 = vadd.f32 %v2491, %v1309
        %v2493 = vadd.f32 %v2492, %v1310
        %2494 = vadd.xlane.f32.xlu0 %v2493
        %v2495 = vpop.xlane.xlu0 %2494
        %v2496 = vadd.f32 %v1311, %v1312
        %v2497 = vadd.f32 %v2496, %v1313
        %v2498 = vadd.f32 %v2497, %v1314
        %2499 = vadd.xlane.f32.xlu0 %v2498
        %v2500 = vpop.xlane.xlu0 %2499
        %v2501 = vadd.f32 %v1315, %v1316
        %v2502 = vadd.f32 %v2501, %v1317
        %v2503 = vadd.f32 %v2502, %v1318
        %2504 = vadd.xlane.f32.xlu0 %v2503
        %v2505 = vpop.xlane.xlu0 %2504
        %v2506 = vadd.f32 %v1319, %v1320
        %v2507 = vadd.f32 %v2506, %v1321
        %v2508 = vadd.f32 %v2507, %v1322
        %2509 = vadd.xlane.f32.xlu0 %v2508
        %v2510 = vpop.xlane.xlu0 %2509
        %v2511 = vadd.f32 %v1323, %v1324
        %v2512 = vadd.f32 %v2511, %v1325
        %v2513 = vadd.f32 %v2512, %v1326
        %2514 = vadd.xlane.f32.xlu0 %v2513
        %v2515 = vpop.xlane.xlu0 %2514
        %v2516 = vadd.f32 %v1327, %v1328
        %v2517 = vadd.f32 %v2516, %v1329
        %v2518 = vadd.f32 %v2517, %v1330
        %2519 = vadd.xlane.f32.xlu0 %v2518
        %v2520 = vpop.xlane.xlu0 %2519
        %v2521 = vadd.f32 %v1331, %v1332
        %v2522 = vadd.f32 %v2521, %v1333
        %v2523 = vadd.f32 %v2522, %v1334
        %2524 = vadd.xlane.f32.xlu0 %v2523
        %v2525 = vpop.xlane.xlu0 %2524
        %v2526 = vadd.f32 %v1335, %v1336
        %v2527 = vadd.f32 %v2526, %v1337
        %v2528 = vadd.f32 %v2527, %v1338
        %2529 = vadd.xlane.f32.xlu0 %v2528
        %v2530 = vpop.xlane.xlu0 %2529
        %v2531 = vadd.f32 %v1339, %v1340
        %v2532 = vadd.f32 %v2531, %v1341
        %v2533 = vadd.f32 %v2532, %v1342
        %2534 = vadd.xlane.f32.xlu0 %v2533
        %v2535 = vpop.xlane.xlu0 %2534
        %v2536 = vadd.f32 %v1343, %v1344
        %v2537 = vadd.f32 %v2536, %v1345
        %v2538 = vadd.f32 %v2537, %v1346
        %2539 = vadd.xlane.f32.xlu0 %v2538
        %v2540 = vpop.xlane.xlu0 %2539
        %v2541 = vadd.f32 %v1347, %v1348
        %v2542 = vadd.f32 %v2541, %v1349
        %v2543 = vadd.f32 %v2542, %v1350
        %2544 = vadd.xlane.f32.xlu0 %v2543
        %v2545 = vpop.xlane.xlu0 %2544
        %v2546 = vadd.f32 %v1351, %v1352
        %v2547 = vadd.f32 %v2546, %v1353
        %v2548 = vadd.f32 %v2547, %v1354
        %2549 = vadd.xlane.f32.xlu0 %v2548
        %v2550 = vpop.xlane.xlu0 %2549
        %v2551 = vadd.f32 %v1355, %v1356
        %v2552 = vadd.f32 %v2551, %v1357
        %v2553 = vadd.f32 %v2552, %v1358
        %2554 = vadd.xlane.f32.xlu0 %v2553
        %v2555 = vpop.xlane.xlu0 %2554
        %v2556 = vadd.f32 %v1359, %v1360
        %v2557 = vadd.f32 %v2556, %v1361
        %v2558 = vadd.f32 %v2557, %v1362
        %2559 = vadd.xlane.f32.xlu0 %v2558
        %v2560 = vpop.xlane.xlu0 %2559
        %v2561 = vadd.f32 %v1363, %v1364
        %v2562 = vadd.f32 %v2561, %v1365
        %v2563 = vadd.f32 %v2562, %v1366
        %2564 = vadd.xlane.f32.xlu0 %v2563
        %v2565 = vpop.xlane.xlu0 %2564
        %v2566 = vadd.f32 %v1367, %v1368
        %v2567 = vadd.f32 %v2566, %v1369
        %v2568 = vadd.f32 %v2567, %v1370
        %2569 = vadd.xlane.f32.xlu0 %v2568
        %v2570 = vpop.xlane.xlu0 %2569
        %v2571 = vadd.f32 %v1371, %v1372
        %v2572 = vadd.f32 %v2571, %v1373
        %v2573 = vadd.f32 %v2572, %v1374
        %2574 = vadd.xlane.f32.xlu0 %v2573
        %v2575 = vpop.xlane.xlu0 %2574
        %v2576 = vadd.f32 %v1375, %v1376
        %v2577 = vadd.f32 %v2576, %v1377
        %v2578 = vadd.f32 %v2577, %v1378
        %2579 = vadd.xlane.f32.xlu0 %v2578
        %v2580 = vpop.xlane.xlu0 %2579
        %v2581 = vadd.f32 %v1379, %v1380
        %v2582 = vadd.f32 %v2581, %v1381
        %v2583 = vadd.f32 %v2582, %v1382
        %2584 = vadd.xlane.f32.xlu0 %v2583
        %v2585 = vpop.xlane.xlu0 %2584
        %v2586 = vadd.f32 %v1383, %v1384
        %v2587 = vadd.f32 %v2586, %v1385
        %v2588 = vadd.f32 %v2587, %v1386
        %2589 = vadd.xlane.f32.xlu0 %v2588
        %v2590 = vpop.xlane.xlu0 %2589
        %v2591 = vadd.f32 %v1387, %v1388
        %v2592 = vadd.f32 %v2591, %v1389
        %v2593 = vadd.f32 %v2592, %v1390
        %2594 = vadd.xlane.f32.xlu0 %v2593
        %v2595 = vpop.xlane.xlu0 %2594
        %v2596 = vadd.f32 %v1391, %v1392
        %v2597 = vadd.f32 %v2596, %v1393
        %v2598 = vadd.f32 %v2597, %v1394
        %2599 = vadd.xlane.f32.xlu0 %v2598
        %v2600 = vpop.xlane.xlu0 %2599
        %v2601 = vadd.f32 %v1395, %v1396
        %v2602 = vadd.f32 %v2601, %v1397
        %v2603 = vadd.f32 %v2602, %v1398
        %2604 = vadd.xlane.f32.xlu0 %v2603
        %v2605 = vpop.xlane.xlu0 %2604
        %v2606 = vadd.f32 %v1399, %v1400
        %v2607 = vadd.f32 %v2606, %v1401
        %v2608 = vadd.f32 %v2607, %v1402
        %2609 = vadd.xlane.f32.xlu0 %v2608
        %v2610 = vpop.xlane.xlu0 %2609
        %v2611 = vadd.f32 %v1403, %v1404
        %v2612 = vadd.f32 %v2611, %v1405
        %v2613 = vadd.f32 %v2612, %v1406
        %2614 = vadd.xlane.f32.xlu0 %v2613
        %v2615 = vpop.xlane.xlu0 %2614
        %v2616 = vadd.f32 %v1407, %v1408
        %v2617 = vadd.f32 %v2616, %v1409
        %v2618 = vadd.f32 %v2617, %v1410
        %2619 = vadd.xlane.f32.xlu0 %v2618
        %v2620 = vpop.xlane.xlu0 %2619
        %v2621 = vadd.f32 %v1411, %v1412
        %v2622 = vadd.f32 %v2621, %v1413
        %v2623 = vadd.f32 %v2622, %v1414
        %2624 = vadd.xlane.f32.xlu0 %v2623
        %v2625 = vpop.xlane.xlu0 %2624
        %v2626 = vadd.f32 %v1415, %v1416
        %v2627 = vadd.f32 %v2626, %v1417
        %v2628 = vadd.f32 %v2627, %v1418
        %2629 = vadd.xlane.f32.xlu0 %v2628
        %v2630 = vpop.xlane.xlu0 %2629
        %v2631 = vadd.f32 %v1419, %v1420
        %v2632 = vadd.f32 %v2631, %v1421
        %v2633 = vadd.f32 %v2632, %v1422
        %2634 = vadd.xlane.f32.xlu0 %v2633
        %v2635 = vpop.xlane.xlu0 %2634
        %v2636 = vadd.f32 %v1423, %v1424
        %v2637 = vadd.f32 %v2636, %v1425
        %v2638 = vadd.f32 %v2637, %v1426
        %2639 = vadd.xlane.f32.xlu0 %v2638
        %v2640 = vpop.xlane.xlu0 %2639
        %v2641 = vadd.f32 %v1427, %v1428
        %v2642 = vadd.f32 %v2641, %v1429
        %v2643 = vadd.f32 %v2642, %v1430
        %2644 = vadd.xlane.f32.xlu0 %v2643
        %v2645 = vpop.xlane.xlu0 %2644
        %v2646 = vadd.f32 %v1431, %v1432
        %v2647 = vadd.f32 %v2646, %v1433
        %v2648 = vadd.f32 %v2647, %v1434
        %2649 = vadd.xlane.f32.xlu0 %v2648
        %v2650 = vpop.xlane.xlu0 %2649
        %v2651 = vadd.f32 %v1435, %v1436
        %v2652 = vadd.f32 %v2651, %v1437
        %v2653 = vadd.f32 %v2652, %v1438
        %2654 = vadd.xlane.f32.xlu0 %v2653
        %v2655 = vpop.xlane.xlu0 %2654
        %v2656 = vadd.f32 %v1439, %v1440
        %v2657 = vadd.f32 %v2656, %v1441
        %v2658 = vadd.f32 %v2657, %v1442
        %2659 = vadd.xlane.f32.xlu0 %v2658
        %v2660 = vpop.xlane.xlu0 %2659
        %v2661 = vadd.f32 %v1443, %v1444
        %v2662 = vadd.f32 %v2661, %v1445
        %v2663 = vadd.f32 %v2662, %v1446
        %2664 = vadd.xlane.f32.xlu0 %v2663
        %v2665 = vpop.xlane.xlu0 %2664
        %v2666 = vadd.f32 %v1447, %v1448
        %v2667 = vadd.f32 %v2666, %v1449
        %v2668 = vadd.f32 %v2667, %v1450
        %2669 = vadd.xlane.f32.xlu0 %v2668
        %v2670 = vpop.xlane.xlu0 %2669
        %v2671 = vadd.f32 %v1451, %v1452
        %v2672 = vadd.f32 %v2671, %v1453
        %v2673 = vadd.f32 %v2672, %v1454
        %2674 = vadd.xlane.f32.xlu0 %v2673
        %v2675 = vpop.xlane.xlu0 %2674
        %v2676 = vadd.f32 %v1455, %v1456
        %v2677 = vadd.f32 %v2676, %v1457
        %v2678 = vadd.f32 %v2677, %v1458
        %2679 = vadd.xlane.f32.xlu0 %v2678
        %v2680 = vpop.xlane.xlu0 %2679
        %v2681 = vadd.f32 %v1459, %v1460
        %v2682 = vadd.f32 %v2681, %v1461
        %v2683 = vadd.f32 %v2682, %v1462
        %2684 = vadd.xlane.f32.xlu0 %v2683
        %v2685 = vpop.xlane.xlu0 %2684
        %v2686 = vadd.f32 %v1463, %v1464
        %v2687 = vadd.f32 %v2686, %v1465
        %v2688 = vadd.f32 %v2687, %v1466
        %2689 = vadd.xlane.f32.xlu0 %v2688
        %v2690 = vpop.xlane.xlu0 %2689
        %v2691 = vadd.f32 %v1467, %v1468
        %v2692 = vadd.f32 %v2691, %v1469
        %v2693 = vadd.f32 %v2692, %v1470
        %2694 = vadd.xlane.f32.xlu0 %v2693
        %v2695 = vpop.xlane.xlu0 %2694
        %v2696 = vadd.f32 %v1471, %v1472
        %v2697 = vadd.f32 %v2696, %v1473
        %v2698 = vadd.f32 %v2697, %v1474
        %2699 = vadd.xlane.f32.xlu0 %v2698
        %v2700 = vpop.xlane.xlu0 %2699
        %v2701 = vadd.f32 %v1475, %v1476
        %v2702 = vadd.f32 %v2701, %v1477
        %v2703 = vadd.f32 %v2702, %v1478
        %2704 = vadd.xlane.f32.xlu0 %v2703
        %v2705 = vpop.xlane.xlu0 %2704
        %v2706 = vadd.f32 %v1479, %v1480
        %v2707 = vadd.f32 %v2706, %v1481
        %v2708 = vadd.f32 %v2707, %v1482
        %2709 = vadd.xlane.f32.xlu0 %v2708
        %v2710 = vpop.xlane.xlu0 %2709
        %v2711 = vadd.f32 %v1483, %v1484
        %v2712 = vadd.f32 %v2711, %v1485
        %v2713 = vadd.f32 %v2712, %v1486
        %2714 = vadd.xlane.f32.xlu0 %v2713
        %v2715 = vpop.xlane.xlu0 %2714
        %v2716 = vadd.f32 %v1487, %v1488
        %v2717 = vadd.f32 %v2716, %v1489
        %v2718 = vadd.f32 %v2717, %v1490
        %2719 = vadd.xlane.f32.xlu0 %v2718
        %v2720 = vpop.xlane.xlu0 %2719
        %v2721 = vadd.f32 %v1491, %v1492
        %v2722 = vadd.f32 %v2721, %v1493
        %v2723 = vadd.f32 %v2722, %v1494
        %2724 = vadd.xlane.f32.xlu0 %v2723
        %v2725 = vpop.xlane.xlu0 %2724
        %v2726 = vadd.f32 %v1495, %v1496
        %v2727 = vadd.f32 %v2726, %v1497
        %v2728 = vadd.f32 %v2727, %v1498
        %2729 = vadd.xlane.f32.xlu0 %v2728
        %v2730 = vpop.xlane.xlu0 %2729
        %v2731 = vadd.f32 %v1499, %v1500
        %v2732 = vadd.f32 %v2731, %v1501
        %v2733 = vadd.f32 %v2732, %v1502
        %2734 = vadd.xlane.f32.xlu0 %v2733
        %v2735 = vpop.xlane.xlu0 %2734
        %v2736 = vadd.f32 %v1503, %v1504
        %v2737 = vadd.f32 %v2736, %v1505
        %v2738 = vadd.f32 %v2737, %v1506
        %2739 = vadd.xlane.f32.xlu0 %v2738
        %v2740 = vpop.xlane.xlu0 %2739
        %v2741 = vadd.f32 %v1507, %v1508
        %v2742 = vadd.f32 %v2741, %v1509
        %v2743 = vadd.f32 %v2742, %v1510
        %2744 = vadd.xlane.f32.xlu0 %v2743
        %v2745 = vpop.xlane.xlu0 %2744
        %v2746 = vadd.f32 %v1511, %v1512
        %v2747 = vadd.f32 %v2746, %v1513
        %v2748 = vadd.f32 %v2747, %v1514
        %2749 = vadd.xlane.f32.xlu0 %v2748
        %v2750 = vpop.xlane.xlu0 %2749
        %v2751 = vadd.f32 %v1515, %v1516
        %v2752 = vadd.f32 %v2751, %v1517
        %v2753 = vadd.f32 %v2752, %v1518
        %2754 = vadd.xlane.f32.xlu0 %v2753
        %v2755 = vpop.xlane.xlu0 %2754
        %v2756 = vadd.f32 %v1519, %v1520
        %v2757 = vadd.f32 %v2756, %v1521
        %v2758 = vadd.f32 %v2757, %v1522
        %2759 = vadd.xlane.f32.xlu0 %v2758
        %v2760 = vpop.xlane.xlu0 %2759
        %v2761 = vadd.f32 %v1523, %v1524
        %v2762 = vadd.f32 %v2761, %v1525
        %v2763 = vadd.f32 %v2762, %v1526
        %2764 = vadd.xlane.f32.xlu0 %v2763
        %v2765 = vpop.xlane.xlu0 %2764
        %v2766 = vadd.f32 %v1527, %v1528
        %v2767 = vadd.f32 %v2766, %v1529
        %v2768 = vadd.f32 %v2767, %v1530
        %2769 = vadd.xlane.f32.xlu0 %v2768
        %v2770 = vpop.xlane.xlu0 %2769
        %v2771 = vadd.f32 %v1531, %v1532
        %v2772 = vadd.f32 %v2771, %v1533
        %v2773 = vadd.f32 %v2772, %v1534
        %2774 = vadd.xlane.f32.xlu0 %v2773
        %v2775 = vpop.xlane.xlu0 %2774
        %v2776 = vadd.f32 %v1535, %v1536
        %v2777 = vadd.f32 %v2776, %v1537
        %v2778 = vadd.f32 %v2777, %v1538
        %2779 = vadd.xlane.f32.xlu0 %v2778
        %v2780 = vpop.xlane.xlu0 %2779
        %v2781 = vadd.f32 %v1539, %v1540
        %v2782 = vadd.f32 %v2781, %v1541
        %v2783 = vadd.f32 %v2782, %v1542
        %2784 = vadd.xlane.f32.xlu0 %v2783
        %v2785 = vpop.xlane.xlu0 %2784
        %v2786 = vadd.f32 %v1543, %v1544
        %v2787 = vadd.f32 %v2786, %v1545
        %v2788 = vadd.f32 %v2787, %v1546
        %2789 = vadd.xlane.f32.xlu0 %v2788
        %v2790 = vpop.xlane.xlu0 %2789
        %v2791 = vadd.f32 %v1547, %v1548
        %v2792 = vadd.f32 %v2791, %v1549
        %v2793 = vadd.f32 %v2792, %v1550
        %2794 = vadd.xlane.f32.xlu0 %v2793
        %v2795 = vpop.xlane.xlu0 %2794
        %v2796 = vadd.f32 %v1551, %v1552
        %v2797 = vadd.f32 %v2796, %v1553
        %v2798 = vadd.f32 %v2797, %v1554
        %2799 = vadd.xlane.f32.xlu0 %v2798
        %v2800 = vpop.xlane.xlu0 %2799
        %v2801 = vadd.f32 %v1555, %v1556
        %v2802 = vadd.f32 %v2801, %v1557
        %v2803 = vadd.f32 %v2802, %v1558
        %2804 = vadd.xlane.f32.xlu0 %v2803
        %v2805 = vpop.xlane.xlu0 %2804
        %v2806 = vadd.f32 %v1559, %v1560
        %v2807 = vadd.f32 %v2806, %v1561
        %v2808 = vadd.f32 %v2807, %v1562
        %2809 = vadd.xlane.f32.xlu0 %v2808
        %v2810 = vpop.xlane.xlu0 %2809
        %v2811 = vadd.f32 %v1563, %v1564
        %v2812 = vadd.f32 %v2811, %v1565
        %v2813 = vadd.f32 %v2812, %v1566
        %2814 = vadd.xlane.f32.xlu0 %v2813
        %v2815 = vpop.xlane.xlu0 %2814
        %v2816 = vadd.f32 %v1567, %v1568
        %v2817 = vadd.f32 %v2816, %v1569
        %v2818 = vadd.f32 %v2817, %v1570
        %2819 = vadd.xlane.f32.xlu0 %v2818
        %v2820 = vpop.xlane.xlu0 %2819
        %v2821 = vadd.f32 %v1571, %v1572
        %v2822 = vadd.f32 %v2821, %v1573
        %v2823 = vadd.f32 %v2822, %v1574
        %2824 = vadd.xlane.f32.xlu0 %v2823
        %v2825 = vpop.xlane.xlu0 %2824
        %v2826 = vadd.f32 %v1575, %v1576
        %v2827 = vadd.f32 %v2826, %v1577
        %v2828 = vadd.f32 %v2827, %v1578
        %2829 = vadd.xlane.f32.xlu0 %v2828
        %v2830 = vpop.xlane.xlu0 %2829
        %v2831 = vadd.f32 %v1579, %v1580
        %v2832 = vadd.f32 %v2831, %v1581
        %v2833 = vadd.f32 %v2832, %v1582
        %2834 = vadd.xlane.f32.xlu0 %v2833
        %v2835 = vpop.xlane.xlu0 %2834
        %v2836 = vadd.f32 %v1583, %v1584
        %v2837 = vadd.f32 %v2836, %v1585
        %v2838 = vadd.f32 %v2837, %v1586
        %2839 = vadd.xlane.f32.xlu0 %v2838
        %v2840 = vpop.xlane.xlu0 %2839
        %v2841 = vadd.f32 %v1587, %v1588
        %v2842 = vadd.f32 %v2841, %v1589
        %v2843 = vadd.f32 %v2842, %v1590
        %2844 = vadd.xlane.f32.xlu0 %v2843
        %v2845 = vpop.xlane.xlu0 %2844
        %v2846 = vadd.f32 %v1591, %v1592
        %v2847 = vadd.f32 %v2846, %v1593
        %v2848 = vadd.f32 %v2847, %v1594
        %2849 = vadd.xlane.f32.xlu0 %v2848
        %v2850 = vpop.xlane.xlu0 %2849
        %v2851 = vadd.f32 %v1595, %v1596
        %v2852 = vadd.f32 %v2851, %v1597
        %v2853 = vadd.f32 %v2852, %v1598
        %2854 = vadd.xlane.f32.xlu0 %v2853
        %v2855 = vpop.xlane.xlu0 %2854
        %v2856 = vadd.f32 %v1599, %v1600
        %v2857 = vadd.f32 %v2856, %v1601
        %v2858 = vadd.f32 %v2857, %v1602
        %2859 = vadd.xlane.f32.xlu0 %v2858
        %v2860 = vpop.xlane.xlu0 %2859
        %v2861 = vadd.f32 %v1603, %v1604
        %v2862 = vadd.f32 %v2861, %v1605
        %v2863 = vadd.f32 %v2862, %v1606
        %2864 = vadd.xlane.f32.xlu0 %v2863
        %v2865 = vpop.xlane.xlu0 %2864
        %v2866 = vadd.f32 %v1607, %v1608
        %v2867 = vadd.f32 %v2866, %v1609
        %v2868 = vadd.f32 %v2867, %v1610
        %2869 = vadd.xlane.f32.xlu0 %v2868
        %v2870 = vpop.xlane.xlu0 %2869
        %v2871 = vadd.f32 %v1611, %v1612
        %v2872 = vadd.f32 %v2871, %v1613
        %v2873 = vadd.f32 %v2872, %v1614
        %2874 = vadd.xlane.f32.xlu0 %v2873
        %v2875 = vpop.xlane.xlu0 %2874
        %v2876 = vadd.f32 %v1615, %v1616
        %v2877 = vadd.f32 %v2876, %v1617
        %v2878 = vadd.f32 %v2877, %v1618
        %2879 = vadd.xlane.f32.xlu0 %v2878
        %v2880 = vpop.xlane.xlu0 %2879
        %v2881 = vadd.f32 %v1619, %v1620
        %v2882 = vadd.f32 %v2881, %v1621
        %v2883 = vadd.f32 %v2882, %v1622
        %2884 = vadd.xlane.f32.xlu0 %v2883
        %v2885 = vpop.xlane.xlu0 %2884
        %v2886 = vadd.f32 %v1623, %v1624
        %v2887 = vadd.f32 %v2886, %v1625
        %v2888 = vadd.f32 %v2887, %v1626
        %2889 = vadd.xlane.f32.xlu0 %v2888
        %v2890 = vpop.xlane.xlu0 %2889
        %v2891 = vadd.f32 %v1627, %v1628
        %v2892 = vadd.f32 %v2891, %v1629
        %v2893 = vadd.f32 %v2892, %v1630
        %2894 = vadd.xlane.f32.xlu0 %v2893
        %v2895 = vpop.xlane.xlu0 %2894
        %v2896 = vadd.f32 %v1631, %v1632
        %v2897 = vadd.f32 %v2896, %v1633
        %v2898 = vadd.f32 %v2897, %v1634
        %2899 = vadd.xlane.f32.xlu0 %v2898
        %v2900 = vpop.xlane.xlu0 %2899
        %v2901 = vadd.f32 %v1635, %v1636
        %v2902 = vadd.f32 %v2901, %v1637
        %v2903 = vadd.f32 %v2902, %v1638
        %2904 = vadd.xlane.f32.xlu0 %v2903
        %v2905 = vpop.xlane.xlu0 %2904
        %v2906 = vadd.f32 %v1639, %v1640
        %v2907 = vadd.f32 %v2906, %v1641
        %v2908 = vadd.f32 %v2907, %v1642
        %2909 = vadd.xlane.f32.xlu0 %v2908
        %v2910 = vpop.xlane.xlu0 %2909
        %v2911 = vadd.f32 %v1643, %v1644
        %v2912 = vadd.f32 %v2911, %v1645
        %v2913 = vadd.f32 %v2912, %v1646
        %2914 = vadd.xlane.f32.xlu0 %v2913
        %v2915 = vpop.xlane.xlu0 %2914
        %v2916 = vadd.f32 %v1647, %v1648
        %v2917 = vadd.f32 %v2916, %v1649
        %v2918 = vadd.f32 %v2917, %v1650
        %2919 = vadd.xlane.f32.xlu0 %v2918
        %v2920 = vpop.xlane.xlu0 %2919
        %v2921 = vadd.f32 %v1651, %v1652
        %v2922 = vadd.f32 %v2921, %v1653
        %v2923 = vadd.f32 %v2922, %v1654
        %2924 = vadd.xlane.f32.xlu0 %v2923
        %v2925 = vpop.xlane.xlu0 %2924
        %v2926 = vadd.f32 %v1655, %v1656
        %v2927 = vadd.f32 %v2926, %v1657
        %v2928 = vadd.f32 %v2927, %v1658
        %2929 = vadd.xlane.f32.xlu0 %v2928
        %v2930 = vpop.xlane.xlu0 %2929
        %v2931 = vadd.f32 %v1659, %v1660
        %v2932 = vadd.f32 %v2931, %v1661
        %v2933 = vadd.f32 %v2932, %v1662
        %2934 = vadd.xlane.f32.xlu0 %v2933
        %v2935 = vpop.xlane.xlu0 %2934
        %v2936 = vadd.f32 %v1663, %v1664
        %v2937 = vadd.f32 %v2936, %v1665
        %v2938 = vadd.f32 %v2937, %v1666
        %2939 = vadd.xlane.f32.xlu0 %v2938
        %v2940 = vpop.xlane.xlu0 %2939
        %v2941 = vadd.f32 %v1667, %v1668
        %v2942 = vadd.f32 %v2941, %v1669
        %v2943 = vadd.f32 %v2942, %v1670
        %2944 = vadd.xlane.f32.xlu0 %v2943
        %v2945 = vpop.xlane.xlu0 %2944
        %v2946 = vadd.f32 %v1671, %v1672
        %v2947 = vadd.f32 %v2946, %v1673
        %v2948 = vadd.f32 %v2947, %v1674
        %2949 = vadd.xlane.f32.xlu0 %v2948
        %v2950 = vpop.xlane.xlu0 %2949
        %v2951 = vadd.f32 %v1675, %v1676
        %v2952 = vadd.f32 %v2951, %v1677
        %v2953 = vadd.f32 %v2952, %v1678
        %2954 = vadd.xlane.f32.xlu0 %v2953
        %v2955 = vpop.xlane.xlu0 %2954
        %v2956 = vadd.f32 %v1679, %v1680
        %v2957 = vadd.f32 %v2956, %v1681
        %v2958 = vadd.f32 %v2957, %v1682
        %2959 = vadd.xlane.f32.xlu0 %v2958
        %v2960 = vpop.xlane.xlu0 %2959
        %v2961 = vadd.f32 %v1683, %v1684
        %v2962 = vadd.f32 %v2961, %v1685
        %v2963 = vadd.f32 %v2962, %v1686
        %2964 = vadd.xlane.f32.xlu0 %v2963
        %v2965 = vpop.xlane.xlu0 %2964
        %v2966 = vadd.f32 %v1687, %v1688
        %v2967 = vadd.f32 %v2966, %v1689
        %v2968 = vadd.f32 %v2967, %v1690
        %2969 = vadd.xlane.f32.xlu0 %v2968
        %v2970 = vpop.xlane.xlu0 %2969
        %v3227 = vlaneseq
        %v3228 = vand.u32 %v3227, 127
        %v3229 = vlaneseq
        %v3230 = vshrl.u32 %v3229, 7
        %v3231 = vsub.s32 %v3228, %v3230
        %v3232 = vrot.slane %v1695, %v3231
        %v3233 = vadd.s32 %v3228, 4294967288
        %v3234 = vlaneseq
        %v3235 = vshrl.u32 %v3234, 7
        %v3236 = vsub.s32 %v3233, %v3235
        %v3237 = vrot.slane %v1700, %v3236
        %vm3238 = vcmask 130112
        %v3239 = vsel %vm3238, %v3237, %v3232
        %v3240 = vadd.s32 %v3228, 4294967280
        %v3241 = vlaneseq
        %v3242 = vshrl.u32 %v3241, 7
        %v3243 = vsub.s32 %v3240, %v3242
        %v3244 = vrot.slane %v1705, %v3243
        %vm3245 = vcmask 195712
        %v3246 = vsel %vm3245, %v3244, %v3239
        %v3247 = vadd.s32 %v3228, 4294967272
        %v3248 = vlaneseq
        %v3249 = vshrl.u32 %v3248, 7
        %v3250 = vsub.s32 %v3247, %v3249
        %v3251 = vrot.slane %v1710, %v3250
        %vm3252 = vcmask 261312
        %v3253 = vsel %vm3252, %v3251, %v3246
        %v3254 = vadd.s32 %v3228, 4294967264
        %v3255 = vlaneseq
        %v3256 = vshrl.u32 %v3255, 7
        %v3257 = vsub.s32 %v3254, %v3256
        %v3258 = vrot.slane %v1715, %v3257
        %vm3259 = vcmask 326912
        %v3260 = vsel %vm3259, %v3258, %v3253
        %v3261 = vadd.s32 %v3228, 4294967256
        %v3262 = vlaneseq
        %v3263 = vshrl.u32 %v3262, 7
        %v3264 = vsub.s32 %v3261, %v3263
        %v3265 = vrot.slane %v1720, %v3264
        %vm3266 = vcmask 392512
        %v3267 = vsel %vm3266, %v3265, %v3260
        %v3268 = vadd.s32 %v3228, 4294967248
        %v3269 = vlaneseq
        %v3270 = vshrl.u32 %v3269, 7
        %v3271 = vsub.s32 %v3268, %v3270
        %v3272 = vrot.slane %v1725, %v3271
        %vm3273 = vcmask 458112
        %v3274 = vsel %vm3273, %v3272, %v3267
        %v3275 = vadd.s32 %v3228, 4294967240
        %v3276 = vlaneseq
        %v3277 = vshrl.u32 %v3276, 7
        %v3278 = vsub.s32 %v3275, %v3277
        %v3279 = vrot.slane %v1730, %v3278
        %vm3280 = vcmask 523712
        %v3281 = vsel %vm3280, %v3279, %v3274
        %v3282 = vadd.s32 %v3228, 4294967232
        %v3283 = vlaneseq
        %v3284 = vshrl.u32 %v3283, 7
        %v3285 = vsub.s32 %v3282, %v3284
        %v3286 = vrot.slane %v1735, %v3285
        %vm3287 = vcmask 589312
        %v3288 = vsel %vm3287, %v3286, %v3281
        %v3289 = vadd.s32 %v3228, 4294967224
        %v3290 = vlaneseq
        %v3291 = vshrl.u32 %v3290, 7
        %v3292 = vsub.s32 %v3289, %v3291
        %v3293 = vrot.slane %v1740, %v3292
        %vm3294 = vcmask 654912
        %v3295 = vsel %vm3294, %v3293, %v3288
        %v3296 = vadd.s32 %v3228, 4294967216
        %v3297 = vlaneseq
        %v3298 = vshrl.u32 %v3297, 7
        %v3299 = vsub.s32 %v3296, %v3298
        %v3300 = vrot.slane %v1745, %v3299
        %vm3301 = vcmask 720512
        %v3302 = vsel %vm3301, %v3300, %v3295
        %v3303 = vadd.s32 %v3228, 4294967208
        %v3304 = vlaneseq
        %v3305 = vshrl.u32 %v3304, 7
        %v3306 = vsub.s32 %v3303, %v3305
        %v3307 = vrot.slane %v1750, %v3306
        %vm3308 = vcmask 786112
        %v3309 = vsel %vm3308, %v3307, %v3302
        %v3310 = vadd.s32 %v3228, 4294967200
        %v3311 = vlaneseq
        %v3312 = vshrl.u32 %v3311, 7
        %v3313 = vsub.s32 %v3310, %v3312
        %v3314 = vrot.slane %v1755, %v3313
        %vm3315 = vcmask 851712
        %v3316 = vsel %vm3315, %v3314, %v3309
        %v3317 = vadd.s32 %v3228, 4294967192
        %v3318 = vlaneseq
        %v3319 = vshrl.u32 %v3318, 7
        %v3320 = vsub.s32 %v3317, %v3319
        %v3321 = vrot.slane %v1760, %v3320
        %vm3322 = vcmask 917312
        %v3323 = vsel %vm3322, %v3321, %v3316
        %v3324 = vadd.s32 %v3228, 4294967184
        %v3325 = vlaneseq
        %v3326 = vshrl.u32 %v3325, 7
        %v3327 = vsub.s32 %v3324, %v3326
        %v3328 = vrot.slane %v1765, %v3327
        %vm3329 = vcmask 982912
        %v3330 = vsel %vm3329, %v3328, %v3323
        %v3331 = vadd.s32 %v3228, 4294967176
        %v3332 = vlaneseq
        %v3333 = vshrl.u32 %v3332, 7
        %v3334 = vsub.s32 %v3331, %v3333
        %v3335 = vrot.slane %v1770, %v3334
        %vm3336 = vcmask 1048512
        %v3337 = vsel %vm3336, %v3335, %v3330
        %v3338 = vlaneseq
        %v3339 = vshrl.u32 %v3338, 7
        %v3340 = vsub.s32 %v3228, %v3339
        %v3341 = vrot.slane %v1775, %v3340
        %v3342 = vlaneseq
        %v3343 = vshrl.u32 %v3342, 7
        %v3344 = vsub.s32 %v3233, %v3343
        %v3345 = vrot.slane %v1780, %v3344
        %v3346 = vsel %vm3238, %v3345, %v3341
        %v3347 = vlaneseq
        %v3348 = vshrl.u32 %v3347, 7
        %v3349 = vsub.s32 %v3240, %v3348
        %v3350 = vrot.slane %v1785, %v3349
        %v3351 = vsel %vm3245, %v3350, %v3346
        %v3352 = vlaneseq
        %v3353 = vshrl.u32 %v3352, 7
        %v3354 = vsub.s32 %v3247, %v3353
        %v3355 = vrot.slane %v1790, %v3354
        %v3356 = vsel %vm3252, %v3355, %v3351
        %v3357 = vlaneseq
        %v3358 = vshrl.u32 %v3357, 7
        %v3359 = vsub.s32 %v3254, %v3358
        %v3360 = vrot.slane %v1795, %v3359
        %v3361 = vsel %vm3259, %v3360, %v3356
        %v3362 = vlaneseq
        %v3363 = vshrl.u32 %v3362, 7
        %v3364 = vsub.s32 %v3261, %v3363
        %v3365 = vrot.slane %v1800, %v3364
        %v3366 = vsel %vm3266, %v3365, %v3361
        %v3367 = vlaneseq
        %v3368 = vshrl.u32 %v3367, 7
        %v3369 = vsub.s32 %v3268, %v3368
        %v3370 = vrot.slane %v1805, %v3369
        %v3371 = vsel %vm3273, %v3370, %v3366
        %v3372 = vlaneseq
        %v3373 = vshrl.u32 %v3372, 7
        %v3374 = vsub.s32 %v3275, %v3373
        %v3375 = vrot.slane %v1810, %v3374
        %v3376 = vsel %vm3280, %v3375, %v3371
        %v3377 = vlaneseq
        %v3378 = vshrl.u32 %v3377, 7
        %v3379 = vsub.s32 %v3282, %v3378
        %v3380 = vrot.slane %v1815, %v3379
        %v3381 = vsel %vm3287, %v3380, %v3376
        %v3382 = vlaneseq
        %v3383 = vshrl.u32 %v3382, 7
        %v3384 = vsub.s32 %v3289, %v3383
        %v3385 = vrot.slane %v1820, %v3384
        %v3386 = vsel %vm3294, %v3385, %v3381
        %v3387 = vlaneseq
        %v3388 = vshrl.u32 %v3387, 7
        %v3389 = vsub.s32 %v3296, %v3388
        %v3390 = vrot.slane %v1825, %v3389
        %v3391 = vsel %vm3301, %v3390, %v3386
        %v3392 = vlaneseq
        %v3393 = vshrl.u32 %v3392, 7
        %v3394 = vsub.s32 %v3303, %v3393
        %v3395 = vrot.slane %v1830, %v3394
        %v3396 = vsel %vm3308, %v3395, %v3391
        %v3397 = vlaneseq
        %v3398 = vshrl.u32 %v3397, 7
        %v3399 = vsub.s32 %v3310, %v3398
        %v3400 = vrot.slane %v1835, %v3399
        %v3401 = vsel %vm3315, %v3400, %v3396
        %v3402 = vlaneseq
        %v3403 = vshrl.u32 %v3402, 7
        %v3404 = vsub.s32 %v3317, %v3403
        %v3405 = vrot.slane %v1840, %v3404
        %v3406 = vsel %vm3322, %v3405, %v3401
        %v3407 = vlaneseq
        %v3408 = vshrl.u32 %v3407, 7
        %v3409 = vsub.s32 %v3324, %v3408
        %v3410 = vrot.slane %v1845, %v3409
        %v3411 = vsel %vm3329, %v3410, %v3406
        %v3412 = vlaneseq
        %v3413 = vshrl.u32 %v3412, 7
        %v3414 = vsub.s32 %v3331, %v3413
        %v3415 = vrot.slane %v1850, %v3414
        %v3416 = vsel %vm3336, %v3415, %v3411
        %v3417 = vlaneseq
        %v3418 = vshrl.u32 %v3417, 7
        %v3419 = vsub.s32 %v3228, %v3418
        %v3420 = vrot.slane %v1855, %v3419
        %v3421 = vlaneseq
        %v3422 = vshrl.u32 %v3421, 7
        %v3423 = vsub.s32 %v3233, %v3422
        %v3424 = vrot.slane %v1860, %v3423
        %v3425 = vsel %vm3238, %v3424, %v3420
        %v3426 = vlaneseq
        %v3427 = vshrl.u32 %v3426, 7
        %v3428 = vsub.s32 %v3240, %v3427
        %v3429 = vrot.slane %v1865, %v3428
        %v3430 = vsel %vm3245, %v3429, %v3425
        %v3431 = vlaneseq
        %v3432 = vshrl.u32 %v3431, 7
        %v3433 = vsub.s32 %v3247, %v3432
        %v3434 = vrot.slane %v1870, %v3433
        %v3435 = vsel %vm3252, %v3434, %v3430
        %v3436 = vlaneseq
        %v3437 = vshrl.u32 %v3436, 7
        %v3438 = vsub.s32 %v3254, %v3437
        %v3439 = vrot.slane %v1875, %v3438
        %v3440 = vsel %vm3259, %v3439, %v3435
        %v3441 = vlaneseq
        %v3442 = vshrl.u32 %v3441, 7
        %v3443 = vsub.s32 %v3261, %v3442
        %v3444 = vrot.slane %v1880, %v3443
        %v3445 = vsel %vm3266, %v3444, %v3440
        %v3446 = vlaneseq
        %v3447 = vshrl.u32 %v3446, 7
        %v3448 = vsub.s32 %v3268, %v3447
        %v3449 = vrot.slane %v1885, %v3448
        %v3450 = vsel %vm3273, %v3449, %v3445
        %v3451 = vlaneseq
        %v3452 = vshrl.u32 %v3451, 7
        %v3453 = vsub.s32 %v3275, %v3452
        %v3454 = vrot.slane %v1890, %v3453
        %v3455 = vsel %vm3280, %v3454, %v3450
        %v3456 = vlaneseq
        %v3457 = vshrl.u32 %v3456, 7
        %v3458 = vsub.s32 %v3282, %v3457
        %v3459 = vrot.slane %v1895, %v3458
        %v3460 = vsel %vm3287, %v3459, %v3455
        %v3461 = vlaneseq
        %v3462 = vshrl.u32 %v3461, 7
        %v3463 = vsub.s32 %v3289, %v3462
        %v3464 = vrot.slane %v1900, %v3463
        %v3465 = vsel %vm3294, %v3464, %v3460
        %v3466 = vlaneseq
        %v3467 = vshrl.u32 %v3466, 7
        %v3468 = vsub.s32 %v3296, %v3467
        %v3469 = vrot.slane %v1905, %v3468
        %v3470 = vsel %vm3301, %v3469, %v3465
        %v3471 = vlaneseq
        %v3472 = vshrl.u32 %v3471, 7
        %v3473 = vsub.s32 %v3303, %v3472
        %v3474 = vrot.slane %v1910, %v3473
        %v3475 = vsel %vm3308, %v3474, %v3470
        %v3476 = vlaneseq
        %v3477 = vshrl.u32 %v3476, 7
        %v3478 = vsub.s32 %v3310, %v3477
        %v3479 = vrot.slane %v1915, %v3478
        %v3480 = vsel %vm3315, %v3479, %v3475
        %v3481 = vlaneseq
        %v3482 = vshrl.u32 %v3481, 7
        %v3483 = vsub.s32 %v3317, %v3482
        %v3484 = vrot.slane %v1920, %v3483
        %v3485 = vsel %vm3322, %v3484, %v3480
        %v3486 = vlaneseq
        %v3487 = vshrl.u32 %v3486, 7
        %v3488 = vsub.s32 %v3324, %v3487
        %v3489 = vrot.slane %v1925, %v3488
        %v3490 = vsel %vm3329, %v3489, %v3485
        %v3491 = vlaneseq
        %v3492 = vshrl.u32 %v3491, 7
        %v3493 = vsub.s32 %v3331, %v3492
        %v3494 = vrot.slane %v1930, %v3493
        %v3495 = vsel %vm3336, %v3494, %v3490
        %v3496 = vlaneseq
        %v3497 = vshrl.u32 %v3496, 7
        %v3498 = vsub.s32 %v3228, %v3497
        %v3499 = vrot.slane %v1935, %v3498
        %v3500 = vlaneseq
        %v3501 = vshrl.u32 %v3500, 7
        %v3502 = vsub.s32 %v3233, %v3501
        %v3503 = vrot.slane %v1940, %v3502
        %v3504 = vsel %vm3238, %v3503, %v3499
        %v3505 = vlaneseq
        %v3506 = vshrl.u32 %v3505, 7
        %v3507 = vsub.s32 %v3240, %v3506
        %v3508 = vrot.slane %v1945, %v3507
        %v3509 = vsel %vm3245, %v3508, %v3504
        %v3510 = vlaneseq
        %v3511 = vshrl.u32 %v3510, 7
        %v3512 = vsub.s32 %v3247, %v3511
        %v3513 = vrot.slane %v1950, %v3512
        %v3514 = vsel %vm3252, %v3513, %v3509
        %v3515 = vlaneseq
        %v3516 = vshrl.u32 %v3515, 7
        %v3517 = vsub.s32 %v3254, %v3516
        %v3518 = vrot.slane %v1955, %v3517
        %v3519 = vsel %vm3259, %v3518, %v3514
        %v3520 = vlaneseq
        %v3521 = vshrl.u32 %v3520, 7
        %v3522 = vsub.s32 %v3261, %v3521
        %v3523 = vrot.slane %v1960, %v3522
        %v3524 = vsel %vm3266, %v3523, %v3519
        %v3525 = vlaneseq
        %v3526 = vshrl.u32 %v3525, 7
        %v3527 = vsub.s32 %v3268, %v3526
        %v3528 = vrot.slane %v1965, %v3527
        %v3529 = vsel %vm3273, %v3528, %v3524
        %v3530 = vlaneseq
        %v3531 = vshrl.u32 %v3530, 7
        %v3532 = vsub.s32 %v3275, %v3531
        %v3533 = vrot.slane %v1970, %v3532
        %v3534 = vsel %vm3280, %v3533, %v3529
        %v3535 = vlaneseq
        %v3536 = vshrl.u32 %v3535, 7
        %v3537 = vsub.s32 %v3282, %v3536
        %v3538 = vrot.slane %v1975, %v3537
        %v3539 = vsel %vm3287, %v3538, %v3534
        %v3540 = vlaneseq
        %v3541 = vshrl.u32 %v3540, 7
        %v3542 = vsub.s32 %v3289, %v3541
        %v3543 = vrot.slane %v1980, %v3542
        %v3544 = vsel %vm3294, %v3543, %v3539
        %v3545 = vlaneseq
        %v3546 = vshrl.u32 %v3545, 7
        %v3547 = vsub.s32 %v3296, %v3546
        %v3548 = vrot.slane %v1985, %v3547
        %v3549 = vsel %vm3301, %v3548, %v3544
        %v3550 = vlaneseq
        %v3551 = vshrl.u32 %v3550, 7
        %v3552 = vsub.s32 %v3303, %v3551
        %v3553 = vrot.slane %v1990, %v3552
        %v3554 = vsel %vm3308, %v3553, %v3549
        %v3555 = vlaneseq
        %v3556 = vshrl.u32 %v3555, 7
        %v3557 = vsub.s32 %v3310, %v3556
        %v3558 = vrot.slane %v1995, %v3557
        %v3559 = vsel %vm3315, %v3558, %v3554
        %v3560 = vlaneseq
        %v3561 = vshrl.u32 %v3560, 7
        %v3562 = vsub.s32 %v3317, %v3561
        %v3563 = vrot.slane %v2000, %v3562
        %v3564 = vsel %vm3322, %v3563, %v3559
        %v3565 = vlaneseq
        %v3566 = vshrl.u32 %v3565, 7
        %v3567 = vsub.s32 %v3324, %v3566
        %v3568 = vrot.slane %v2005, %v3567
        %v3569 = vsel %vm3329, %v3568, %v3564
        %v3570 = vlaneseq
        %v3571 = vshrl.u32 %v3570, 7
        %v3572 = vsub.s32 %v3331, %v3571
        %v3573 = vrot.slane %v2010, %v3572
        %v3574 = vsel %vm3336, %v3573, %v3569
        %v3575 = vlaneseq
        %v3576 = vshrl.u32 %v3575, 7
        %v3577 = vsub.s32 %v3228, %v3576
        %v3578 = vrot.slane %v2015, %v3577
        %v3579 = vlaneseq
        %v3580 = vshrl.u32 %v3579, 7
        %v3581 = vsub.s32 %v3233, %v3580
        %v3582 = vrot.slane %v2020, %v3581
        %v3583 = vsel %vm3238, %v3582, %v3578
        %v3584 = vlaneseq
        %v3585 = vshrl.u32 %v3584, 7
        %v3586 = vsub.s32 %v3240, %v3585
        %v3587 = vrot.slane %v2025, %v3586
        %v3588 = vsel %vm3245, %v3587, %v3583
        %v3589 = vlaneseq
        %v3590 = vshrl.u32 %v3589, 7
        %v3591 = vsub.s32 %v3247, %v3590
        %v3592 = vrot.slane %v2030, %v3591
        %v3593 = vsel %vm3252, %v3592, %v3588
        %v3594 = vlaneseq
        %v3595 = vshrl.u32 %v3594, 7
        %v3596 = vsub.s32 %v3254, %v3595
        %v3597 = vrot.slane %v2035, %v3596
        %v3598 = vsel %vm3259, %v3597, %v3593
        %v3599 = vlaneseq
        %v3600 = vshrl.u32 %v3599, 7
        %v3601 = vsub.s32 %v3261, %v3600
        %v3602 = vrot.slane %v2040, %v3601
        %v3603 = vsel %vm3266, %v3602, %v3598
        %v3604 = vlaneseq
        %v3605 = vshrl.u32 %v3604, 7
        %v3606 = vsub.s32 %v3268, %v3605
        %v3607 = vrot.slane %v2045, %v3606
        %v3608 = vsel %vm3273, %v3607, %v3603
        %v3609 = vlaneseq
        %v3610 = vshrl.u32 %v3609, 7
        %v3611 = vsub.s32 %v3275, %v3610
        %v3612 = vrot.slane %v2050, %v3611
        %v3613 = vsel %vm3280, %v3612, %v3608
        %v3614 = vlaneseq
        %v3615 = vshrl.u32 %v3614, 7
        %v3616 = vsub.s32 %v3282, %v3615
        %v3617 = vrot.slane %v2055, %v3616
        %v3618 = vsel %vm3287, %v3617, %v3613
        %v3619 = vlaneseq
        %v3620 = vshrl.u32 %v3619, 7
        %v3621 = vsub.s32 %v3289, %v3620
        %v3622 = vrot.slane %v2060, %v3621
        %v3623 = vsel %vm3294, %v3622, %v3618
        %v3624 = vlaneseq
        %v3625 = vshrl.u32 %v3624, 7
        %v3626 = vsub.s32 %v3296, %v3625
        %v3627 = vrot.slane %v2065, %v3626
        %v3628 = vsel %vm3301, %v3627, %v3623
        %v3629 = vlaneseq
        %v3630 = vshrl.u32 %v3629, 7
        %v3631 = vsub.s32 %v3303, %v3630
        %v3632 = vrot.slane %v2070, %v3631
        %v3633 = vsel %vm3308, %v3632, %v3628
        %v3634 = vlaneseq
        %v3635 = vshrl.u32 %v3634, 7
        %v3636 = vsub.s32 %v3310, %v3635
        %v3637 = vrot.slane %v2075, %v3636
        %v3638 = vsel %vm3315, %v3637, %v3633
        %v3639 = vlaneseq
        %v3640 = vshrl.u32 %v3639, 7
        %v3641 = vsub.s32 %v3317, %v3640
        %v3642 = vrot.slane %v2080, %v3641
        %v3643 = vsel %vm3322, %v3642, %v3638
        %v3644 = vlaneseq
        %v3645 = vshrl.u32 %v3644, 7
        %v3646 = vsub.s32 %v3324, %v3645
        %v3647 = vrot.slane %v2085, %v3646
        %v3648 = vsel %vm3329, %v3647, %v3643
        %v3649 = vlaneseq
        %v3650 = vshrl.u32 %v3649, 7
        %v3651 = vsub.s32 %v3331, %v3650
        %v3652 = vrot.slane %v2090, %v3651
        %v3653 = vsel %vm3336, %v3652, %v3648
        %v3654 = vlaneseq
        %v3655 = vshrl.u32 %v3654, 7
        %v3656 = vsub.s32 %v3228, %v3655
        %v3657 = vrot.slane %v2095, %v3656
        %v3658 = vlaneseq
        %v3659 = vshrl.u32 %v3658, 7
        %v3660 = vsub.s32 %v3233, %v3659
        %v3661 = vrot.slane %v2100, %v3660
        %v3662 = vsel %vm3238, %v3661, %v3657
        %v3663 = vlaneseq
        %v3664 = vshrl.u32 %v3663, 7
        %v3665 = vsub.s32 %v3240, %v3664
        %v3666 = vrot.slane %v2105, %v3665
        %v3667 = vsel %vm3245, %v3666, %v3662
        %v3668 = vlaneseq
        %v3669 = vshrl.u32 %v3668, 7
        %v3670 = vsub.s32 %v3247, %v3669
        %v3671 = vrot.slane %v2110, %v3670
        %v3672 = vsel %vm3252, %v3671, %v3667
        %v3673 = vlaneseq
        %v3674 = vshrl.u32 %v3673, 7
        %v3675 = vsub.s32 %v3254, %v3674
        %v3676 = vrot.slane %v2115, %v3675
        %v3677 = vsel %vm3259, %v3676, %v3672
        %v3678 = vlaneseq
        %v3679 = vshrl.u32 %v3678, 7
        %v3680 = vsub.s32 %v3261, %v3679
        %v3681 = vrot.slane %v2120, %v3680
        %v3682 = vsel %vm3266, %v3681, %v3677
        %v3683 = vlaneseq
        %v3684 = vshrl.u32 %v3683, 7
        %v3685 = vsub.s32 %v3268, %v3684
        %v3686 = vrot.slane %v2125, %v3685
        %v3687 = vsel %vm3273, %v3686, %v3682
        %v3688 = vlaneseq
        %v3689 = vshrl.u32 %v3688, 7
        %v3690 = vsub.s32 %v3275, %v3689
        %v3691 = vrot.slane %v2130, %v3690
        %v3692 = vsel %vm3280, %v3691, %v3687
        %v3693 = vlaneseq
        %v3694 = vshrl.u32 %v3693, 7
        %v3695 = vsub.s32 %v3282, %v3694
        %v3696 = vrot.slane %v2135, %v3695
        %v3697 = vsel %vm3287, %v3696, %v3692
        %v3698 = vlaneseq
        %v3699 = vshrl.u32 %v3698, 7
        %v3700 = vsub.s32 %v3289, %v3699
        %v3701 = vrot.slane %v2140, %v3700
        %v3702 = vsel %vm3294, %v3701, %v3697
        %v3703 = vlaneseq
        %v3704 = vshrl.u32 %v3703, 7
        %v3705 = vsub.s32 %v3296, %v3704
        %v3706 = vrot.slane %v2145, %v3705
        %v3707 = vsel %vm3301, %v3706, %v3702
        %v3708 = vlaneseq
        %v3709 = vshrl.u32 %v3708, 7
        %v3710 = vsub.s32 %v3303, %v3709
        %v3711 = vrot.slane %v2150, %v3710
        %v3712 = vsel %vm3308, %v3711, %v3707
        %v3713 = vlaneseq
        %v3714 = vshrl.u32 %v3713, 7
        %v3715 = vsub.s32 %v3310, %v3714
        %v3716 = vrot.slane %v2155, %v3715
        %v3717 = vsel %vm3315, %v3716, %v3712
        %v3718 = vlaneseq
        %v3719 = vshrl.u32 %v3718, 7
        %v3720 = vsub.s32 %v3317, %v3719
        %v3721 = vrot.slane %v2160, %v3720
        %v3722 = vsel %vm3322, %v3721, %v3717
        %v3723 = vlaneseq
        %v3724 = vshrl.u32 %v3723, 7
        %v3725 = vsub.s32 %v3324, %v3724
        %v3726 = vrot.slane %v2165, %v3725
        %v3727 = vsel %vm3329, %v3726, %v3722
        %v3728 = vlaneseq
        %v3729 = vshrl.u32 %v3728, 7
        %v3730 = vsub.s32 %v3331, %v3729
        %v3731 = vrot.slane %v2170, %v3730
        %v3732 = vsel %vm3336, %v3731, %v3727
        %v3733 = vlaneseq
        %v3734 = vshrl.u32 %v3733, 7
        %v3735 = vsub.s32 %v3228, %v3734
        %v3736 = vrot.slane %v2175, %v3735
        %v3737 = vlaneseq
        %v3738 = vshrl.u32 %v3737, 7
        %v3739 = vsub.s32 %v3233, %v3738
        %v3740 = vrot.slane %v2180, %v3739
        %v3741 = vsel %vm3238, %v3740, %v3736
        %v3742 = vlaneseq
        %v3743 = vshrl.u32 %v3742, 7
        %v3744 = vsub.s32 %v3240, %v3743
        %v3745 = vrot.slane %v2185, %v3744
        %v3746 = vsel %vm3245, %v3745, %v3741
        %v3747 = vlaneseq
        %v3748 = vshrl.u32 %v3747, 7
        %v3749 = vsub.s32 %v3247, %v3748
        %v3750 = vrot.slane %v2190, %v3749
        %v3751 = vsel %vm3252, %v3750, %v3746
        %v3752 = vlaneseq
        %v3753 = vshrl.u32 %v3752, 7
        %v3754 = vsub.s32 %v3254, %v3753
        %v3755 = vrot.slane %v2195, %v3754
        %v3756 = vsel %vm3259, %v3755, %v3751
        %v3757 = vlaneseq
        %v3758 = vshrl.u32 %v3757, 7
        %v3759 = vsub.s32 %v3261, %v3758
        %v3760 = vrot.slane %v2200, %v3759
        %v3761 = vsel %vm3266, %v3760, %v3756
        %v3762 = vlaneseq
        %v3763 = vshrl.u32 %v3762, 7
        %v3764 = vsub.s32 %v3268, %v3763
        %v3765 = vrot.slane %v2205, %v3764
        %v3766 = vsel %vm3273, %v3765, %v3761
        %v3767 = vlaneseq
        %v3768 = vshrl.u32 %v3767, 7
        %v3769 = vsub.s32 %v3275, %v3768
        %v3770 = vrot.slane %v2210, %v3769
        %v3771 = vsel %vm3280, %v3770, %v3766
        %v3772 = vlaneseq
        %v3773 = vshrl.u32 %v3772, 7
        %v3774 = vsub.s32 %v3282, %v3773
        %v3775 = vrot.slane %v2215, %v3774
        %v3776 = vsel %vm3287, %v3775, %v3771
        %v3777 = vlaneseq
        %v3778 = vshrl.u32 %v3777, 7
        %v3779 = vsub.s32 %v3289, %v3778
        %v3780 = vrot.slane %v2220, %v3779
        %v3781 = vsel %vm3294, %v3780, %v3776
        %v3782 = vlaneseq
        %v3783 = vshrl.u32 %v3782, 7
        %v3784 = vsub.s32 %v3296, %v3783
        %v3785 = vrot.slane %v2225, %v3784
        %v3786 = vsel %vm3301, %v3785, %v3781
        %v3787 = vlaneseq
        %v3788 = vshrl.u32 %v3787, 7
        %v3789 = vsub.s32 %v3303, %v3788
        %v3790 = vrot.slane %v2230, %v3789
        %v3791 = vsel %vm3308, %v3790, %v3786
        %v3792 = vlaneseq
        %v3793 = vshrl.u32 %v3792, 7
        %v3794 = vsub.s32 %v3310, %v3793
        %v3795 = vrot.slane %v2235, %v3794
        %v3796 = vsel %vm3315, %v3795, %v3791
        %v3797 = vlaneseq
        %v3798 = vshrl.u32 %v3797, 7
        %v3799 = vsub.s32 %v3317, %v3798
        %v3800 = vrot.slane %v2240, %v3799
        %v3801 = vsel %vm3322, %v3800, %v3796
        %v3802 = vlaneseq
        %v3803 = vshrl.u32 %v3802, 7
        %v3804 = vsub.s32 %v3324, %v3803
        %v3805 = vrot.slane %v2245, %v3804
        %v3806 = vsel %vm3329, %v3805, %v3801
        %v3807 = vlaneseq
        %v3808 = vshrl.u32 %v3807, 7
        %v3809 = vsub.s32 %v3331, %v3808
        %v3810 = vrot.slane %v2250, %v3809
        %v3811 = vsel %vm3336, %v3810, %v3806
        %v3812 = vlaneseq
        %v3813 = vshrl.u32 %v3812, 7
        %v3814 = vsub.s32 %v3228, %v3813
        %v3815 = vrot.slane %v2255, %v3814
        %v3816 = vlaneseq
        %v3817 = vshrl.u32 %v3816, 7
        %v3818 = vsub.s32 %v3233, %v3817
        %v3819 = vrot.slane %v2260, %v3818
        %v3820 = vsel %vm3238, %v3819, %v3815
        %v3821 = vlaneseq
        %v3822 = vshrl.u32 %v3821, 7
        %v3823 = vsub.s32 %v3240, %v3822
        %v3824 = vrot.slane %v2265, %v3823
        %v3825 = vsel %vm3245, %v3824, %v3820
        %v3826 = vlaneseq
        %v3827 = vshrl.u32 %v3826, 7
        %v3828 = vsub.s32 %v3247, %v3827
        %v3829 = vrot.slane %v2270, %v3828
        %v3830 = vsel %vm3252, %v3829, %v3825
        %v3831 = vlaneseq
        %v3832 = vshrl.u32 %v3831, 7
        %v3833 = vsub.s32 %v3254, %v3832
        %v3834 = vrot.slane %v2275, %v3833
        %v3835 = vsel %vm3259, %v3834, %v3830
        %v3836 = vlaneseq
        %v3837 = vshrl.u32 %v3836, 7
        %v3838 = vsub.s32 %v3261, %v3837
        %v3839 = vrot.slane %v2280, %v3838
        %v3840 = vsel %vm3266, %v3839, %v3835
        %v3841 = vlaneseq
        %v3842 = vshrl.u32 %v3841, 7
        %v3843 = vsub.s32 %v3268, %v3842
        %v3844 = vrot.slane %v2285, %v3843
        %v3845 = vsel %vm3273, %v3844, %v3840
        %v3846 = vlaneseq
        %v3847 = vshrl.u32 %v3846, 7
        %v3848 = vsub.s32 %v3275, %v3847
        %v3849 = vrot.slane %v2290, %v3848
        %v3850 = vsel %vm3280, %v3849, %v3845
        %v3851 = vlaneseq
        %v3852 = vshrl.u32 %v3851, 7
        %v3853 = vsub.s32 %v3282, %v3852
        %v3854 = vrot.slane %v2295, %v3853
        %v3855 = vsel %vm3287, %v3854, %v3850
        %v3856 = vlaneseq
        %v3857 = vshrl.u32 %v3856, 7
        %v3858 = vsub.s32 %v3289, %v3857
        %v3859 = vrot.slane %v2300, %v3858
        %v3860 = vsel %vm3294, %v3859, %v3855
        %v3861 = vlaneseq
        %v3862 = vshrl.u32 %v3861, 7
        %v3863 = vsub.s32 %v3296, %v3862
        %v3864 = vrot.slane %v2305, %v3863
        %v3865 = vsel %vm3301, %v3864, %v3860
        %v3866 = vlaneseq
        %v3867 = vshrl.u32 %v3866, 7
        %v3868 = vsub.s32 %v3303, %v3867
        %v3869 = vrot.slane %v2310, %v3868
        %v3870 = vsel %vm3308, %v3869, %v3865
        %v3871 = vlaneseq
        %v3872 = vshrl.u32 %v3871, 7
        %v3873 = vsub.s32 %v3310, %v3872
        %v3874 = vrot.slane %v2315, %v3873
        %v3875 = vsel %vm3315, %v3874, %v3870
        %v3876 = vlaneseq
        %v3877 = vshrl.u32 %v3876, 7
        %v3878 = vsub.s32 %v3317, %v3877
        %v3879 = vrot.slane %v2320, %v3878
        %v3880 = vsel %vm3322, %v3879, %v3875
        %v3881 = vlaneseq
        %v3882 = vshrl.u32 %v3881, 7
        %v3883 = vsub.s32 %v3324, %v3882
        %v3884 = vrot.slane %v2325, %v3883
        %v3885 = vsel %vm3329, %v3884, %v3880
        %v3886 = vlaneseq
        %v3887 = vshrl.u32 %v3886, 7
        %v3888 = vsub.s32 %v3331, %v3887
        %v3889 = vrot.slane %v2330, %v3888
        %v3890 = vsel %vm3336, %v3889, %v3885
        %v3891 = vlaneseq
        %v3892 = vshrl.u32 %v3891, 7
        %v3893 = vsub.s32 %v3228, %v3892
        %v3894 = vrot.slane %v2335, %v3893
        %v3895 = vlaneseq
        %v3896 = vshrl.u32 %v3895, 7
        %v3897 = vsub.s32 %v3233, %v3896
        %v3898 = vrot.slane %v2340, %v3897
        %v3899 = vsel %vm3238, %v3898, %v3894
        %v3900 = vlaneseq
        %v3901 = vshrl.u32 %v3900, 7
        %v3902 = vsub.s32 %v3240, %v3901
        %v3903 = vrot.slane %v2345, %v3902
        %v3904 = vsel %vm3245, %v3903, %v3899
        %v3905 = vlaneseq
        %v3906 = vshrl.u32 %v3905, 7
        %v3907 = vsub.s32 %v3247, %v3906
        %v3908 = vrot.slane %v2350, %v3907
        %v3909 = vsel %vm3252, %v3908, %v3904
        %v3910 = vlaneseq
        %v3911 = vshrl.u32 %v3910, 7
        %v3912 = vsub.s32 %v3254, %v3911
        %v3913 = vrot.slane %v2355, %v3912
        %v3914 = vsel %vm3259, %v3913, %v3909
        %v3915 = vlaneseq
        %v3916 = vshrl.u32 %v3915, 7
        %v3917 = vsub.s32 %v3261, %v3916
        %v3918 = vrot.slane %v2360, %v3917
        %v3919 = vsel %vm3266, %v3918, %v3914
        %v3920 = vlaneseq
        %v3921 = vshrl.u32 %v3920, 7
        %v3922 = vsub.s32 %v3268, %v3921
        %v3923 = vrot.slane %v2365, %v3922
        %v3924 = vsel %vm3273, %v3923, %v3919
        %v3925 = vlaneseq
        %v3926 = vshrl.u32 %v3925, 7
        %v3927 = vsub.s32 %v3275, %v3926
        %v3928 = vrot.slane %v2370, %v3927
        %v3929 = vsel %vm3280, %v3928, %v3924
        %v3930 = vlaneseq
        %v3931 = vshrl.u32 %v3930, 7
        %v3932 = vsub.s32 %v3282, %v3931
        %v3933 = vrot.slane %v2375, %v3932
        %v3934 = vsel %vm3287, %v3933, %v3929
        %v3935 = vlaneseq
        %v3936 = vshrl.u32 %v3935, 7
        %v3937 = vsub.s32 %v3289, %v3936
        %v3938 = vrot.slane %v2380, %v3937
        %v3939 = vsel %vm3294, %v3938, %v3934
        %v3940 = vlaneseq
        %v3941 = vshrl.u32 %v3940, 7
        %v3942 = vsub.s32 %v3296, %v3941
        %v3943 = vrot.slane %v2385, %v3942
        %v3944 = vsel %vm3301, %v3943, %v3939
        %v3945 = vlaneseq
        %v3946 = vshrl.u32 %v3945, 7
        %v3947 = vsub.s32 %v3303, %v3946
        %v3948 = vrot.slane %v2390, %v3947
        %v3949 = vsel %vm3308, %v3948, %v3944
        %v3950 = vlaneseq
        %v3951 = vshrl.u32 %v3950, 7
        %v3952 = vsub.s32 %v3310, %v3951
        %v3953 = vrot.slane %v2395, %v3952
        %v3954 = vsel %vm3315, %v3953, %v3949
        %v3955 = vlaneseq
        %v3956 = vshrl.u32 %v3955, 7
        %v3957 = vsub.s32 %v3317, %v3956
        %v3958 = vrot.slane %v2400, %v3957
        %v3959 = vsel %vm3322, %v3958, %v3954
        %v3960 = vlaneseq
        %v3961 = vshrl.u32 %v3960, 7
        %v3962 = vsub.s32 %v3324, %v3961
        %v3963 = vrot.slane %v2405, %v3962
        %v3964 = vsel %vm3329, %v3963, %v3959
        %v3965 = vlaneseq
        %v3966 = vshrl.u32 %v3965, 7
        %v3967 = vsub.s32 %v3331, %v3966
        %v3968 = vrot.slane %v2410, %v3967
        %v3969 = vsel %vm3336, %v3968, %v3964
        %v3970 = vlaneseq
        %v3971 = vshrl.u32 %v3970, 7
        %v3972 = vsub.s32 %v3228, %v3971
        %v3973 = vrot.slane %v2415, %v3972
        %v3974 = vlaneseq
        %v3975 = vshrl.u32 %v3974, 7
        %v3976 = vsub.s32 %v3233, %v3975
        %v3977 = vrot.slane %v2420, %v3976
        %v3978 = vsel %vm3238, %v3977, %v3973
        %v3979 = vlaneseq
        %v3980 = vshrl.u32 %v3979, 7
        %v3981 = vsub.s32 %v3240, %v3980
        %v3982 = vrot.slane %v2425, %v3981
        %v3983 = vsel %vm3245, %v3982, %v3978
        %v3984 = vlaneseq
        %v3985 = vshrl.u32 %v3984, 7
        %v3986 = vsub.s32 %v3247, %v3985
        %v3987 = vrot.slane %v2430, %v3986
        %v3988 = vsel %vm3252, %v3987, %v3983
        %v3989 = vlaneseq
        %v3990 = vshrl.u32 %v3989, 7
        %v3991 = vsub.s32 %v3254, %v3990
        %v3992 = vrot.slane %v2435, %v3991
        %v3993 = vsel %vm3259, %v3992, %v3988
        %v3994 = vlaneseq
        %v3995 = vshrl.u32 %v3994, 7
        %v3996 = vsub.s32 %v3261, %v3995
        %v3997 = vrot.slane %v2440, %v3996
        %v3998 = vsel %vm3266, %v3997, %v3993
        %v3999 = vlaneseq
        %v4000 = vshrl.u32 %v3999, 7
        %v4001 = vsub.s32 %v3268, %v4000
        %v4002 = vrot.slane %v2445, %v4001
        %v4003 = vsel %vm3273, %v4002, %v3998
        %v4004 = vlaneseq
        %v4005 = vshrl.u32 %v4004, 7
        %v4006 = vsub.s32 %v3275, %v4005
        %v4007 = vrot.slane %v2450, %v4006
        %v4008 = vsel %vm3280, %v4007, %v4003
        %v4009 = vlaneseq
        %v4010 = vshrl.u32 %v4009, 7
        %v4011 = vsub.s32 %v3282, %v4010
        %v4012 = vrot.slane %v2455, %v4011
        %v4013 = vsel %vm3287, %v4012, %v4008
        %v4014 = vlaneseq
        %v4015 = vshrl.u32 %v4014, 7
        %v4016 = vsub.s32 %v3289, %v4015
        %v4017 = vrot.slane %v2460, %v4016
        %v4018 = vsel %vm3294, %v4017, %v4013
        %v4019 = vlaneseq
        %v4020 = vshrl.u32 %v4019, 7
        %v4021 = vsub.s32 %v3296, %v4020
        %v4022 = vrot.slane %v2465, %v4021
        %v4023 = vsel %vm3301, %v4022, %v4018
        %v4024 = vlaneseq
        %v4025 = vshrl.u32 %v4024, 7
        %v4026 = vsub.s32 %v3303, %v4025
        %v4027 = vrot.slane %v2470, %v4026
        %v4028 = vsel %vm3308, %v4027, %v4023
        %v4029 = vlaneseq
        %v4030 = vshrl.u32 %v4029, 7
        %v4031 = vsub.s32 %v3310, %v4030
        %v4032 = vrot.slane %v2475, %v4031
        %v4033 = vsel %vm3315, %v4032, %v4028
        %v4034 = vlaneseq
        %v4035 = vshrl.u32 %v4034, 7
        %v4036 = vsub.s32 %v3317, %v4035
        %v4037 = vrot.slane %v2480, %v4036
        %v4038 = vsel %vm3322, %v4037, %v4033
        %v4039 = vlaneseq
        %v4040 = vshrl.u32 %v4039, 7
        %v4041 = vsub.s32 %v3324, %v4040
        %v4042 = vrot.slane %v2485, %v4041
        %v4043 = vsel %vm3329, %v4042, %v4038
        %v4044 = vlaneseq
        %v4045 = vshrl.u32 %v4044, 7
        %v4046 = vsub.s32 %v3331, %v4045
        %v4047 = vrot.slane %v2490, %v4046
        %v4048 = vsel %vm3336, %v4047, %v4043
        %v4049 = vlaneseq
        %v4050 = vshrl.u32 %v4049, 7
        %v4051 = vsub.s32 %v3228, %v4050
        %v4052 = vrot.slane %v2495, %v4051
        %v4053 = vlaneseq
        %v4054 = vshrl.u32 %v4053, 7
        %v4055 = vsub.s32 %v3233, %v4054
        %v4056 = vrot.slane %v2500, %v4055
        %v4057 = vsel %vm3238, %v4056, %v4052
        %v4058 = vlaneseq
        %v4059 = vshrl.u32 %v4058, 7
        %v4060 = vsub.s32 %v3240, %v4059
        %v4061 = vrot.slane %v2505, %v4060
        %v4062 = vsel %vm3245, %v4061, %v4057
        %v4063 = vlaneseq
        %v4064 = vshrl.u32 %v4063, 7
        %v4065 = vsub.s32 %v3247, %v4064
        %v4066 = vrot.slane %v2510, %v4065
        %v4067 = vsel %vm3252, %v4066, %v4062
        %v4068 = vlaneseq
        %v4069 = vshrl.u32 %v4068, 7
        %v4070 = vsub.s32 %v3254, %v4069
        %v4071 = vrot.slane %v2515, %v4070
        %v4072 = vsel %vm3259, %v4071, %v4067
        %v4073 = vlaneseq
        %v4074 = vshrl.u32 %v4073, 7
        %v4075 = vsub.s32 %v3261, %v4074
        %v4076 = vrot.slane %v2520, %v4075
        %v4077 = vsel %vm3266, %v4076, %v4072
        %v4078 = vlaneseq
        %v4079 = vshrl.u32 %v4078, 7
        %v4080 = vsub.s32 %v3268, %v4079
        %v4081 = vrot.slane %v2525, %v4080
        %v4082 = vsel %vm3273, %v4081, %v4077
        %v4083 = vlaneseq
        %v4084 = vshrl.u32 %v4083, 7
        %v4085 = vsub.s32 %v3275, %v4084
        %v4086 = vrot.slane %v2530, %v4085
        %v4087 = vsel %vm3280, %v4086, %v4082
        %v4088 = vlaneseq
        %v4089 = vshrl.u32 %v4088, 7
        %v4090 = vsub.s32 %v3282, %v4089
        %v4091 = vrot.slane %v2535, %v4090
        %v4092 = vsel %vm3287, %v4091, %v4087
        %v4093 = vlaneseq
        %v4094 = vshrl.u32 %v4093, 7
        %v4095 = vsub.s32 %v3289, %v4094
        %v4096 = vrot.slane %v2540, %v4095
        %v4097 = vsel %vm3294, %v4096, %v4092
        %v4098 = vlaneseq
        %v4099 = vshrl.u32 %v4098, 7
        %v4100 = vsub.s32 %v3296, %v4099
        %v4101 = vrot.slane %v2545, %v4100
        %v4102 = vsel %vm3301, %v4101, %v4097
        %v4103 = vlaneseq
        %v4104 = vshrl.u32 %v4103, 7
        %v4105 = vsub.s32 %v3303, %v4104
        %v4106 = vrot.slane %v2550, %v4105
        %v4107 = vsel %vm3308, %v4106, %v4102
        %v4108 = vlaneseq
        %v4109 = vshrl.u32 %v4108, 7
        %v4110 = vsub.s32 %v3310, %v4109
        %v4111 = vrot.slane %v2555, %v4110
        %v4112 = vsel %vm3315, %v4111, %v4107
        %v4113 = vlaneseq
        %v4114 = vshrl.u32 %v4113, 7
        %v4115 = vsub.s32 %v3317, %v4114
        %v4116 = vrot.slane %v2560, %v4115
        %v4117 = vsel %vm3322, %v4116, %v4112
        %v4118 = vlaneseq
        %v4119 = vshrl.u32 %v4118, 7
        %v4120 = vsub.s32 %v3324, %v4119
        %v4121 = vrot.slane %v2565, %v4120
        %v4122 = vsel %vm3329, %v4121, %v4117
        %v4123 = vlaneseq
        %v4124 = vshrl.u32 %v4123, 7
        %v4125 = vsub.s32 %v3331, %v4124
        %v4126 = vrot.slane %v2570, %v4125
        %v4127 = vsel %vm3336, %v4126, %v4122
        %v4128 = vlaneseq
        %v4129 = vshrl.u32 %v4128, 7
        %v4130 = vsub.s32 %v3228, %v4129
        %v4131 = vrot.slane %v2575, %v4130
        %v4132 = vlaneseq
        %v4133 = vshrl.u32 %v4132, 7
        %v4134 = vsub.s32 %v3233, %v4133
        %v4135 = vrot.slane %v2580, %v4134
        %v4136 = vsel %vm3238, %v4135, %v4131
        %v4137 = vlaneseq
        %v4138 = vshrl.u32 %v4137, 7
        %v4139 = vsub.s32 %v3240, %v4138
        %v4140 = vrot.slane %v2585, %v4139
        %v4141 = vsel %vm3245, %v4140, %v4136
        %v4142 = vlaneseq
        %v4143 = vshrl.u32 %v4142, 7
        %v4144 = vsub.s32 %v3247, %v4143
        %v4145 = vrot.slane %v2590, %v4144
        %v4146 = vsel %vm3252, %v4145, %v4141
        %v4147 = vlaneseq
        %v4148 = vshrl.u32 %v4147, 7
        %v4149 = vsub.s32 %v3254, %v4148
        %v4150 = vrot.slane %v2595, %v4149
        %v4151 = vsel %vm3259, %v4150, %v4146
        %v4152 = vlaneseq
        %v4153 = vshrl.u32 %v4152, 7
        %v4154 = vsub.s32 %v3261, %v4153
        %v4155 = vrot.slane %v2600, %v4154
        %v4156 = vsel %vm3266, %v4155, %v4151
        %v4157 = vlaneseq
        %v4158 = vshrl.u32 %v4157, 7
        %v4159 = vsub.s32 %v3268, %v4158
        %v4160 = vrot.slane %v2605, %v4159
        %v4161 = vsel %vm3273, %v4160, %v4156
        %v4162 = vlaneseq
        %v4163 = vshrl.u32 %v4162, 7
        %v4164 = vsub.s32 %v3275, %v4163
        %v4165 = vrot.slane %v2610, %v4164
        %v4166 = vsel %vm3280, %v4165, %v4161
        %v4167 = vlaneseq
        %v4168 = vshrl.u32 %v4167, 7
        %v4169 = vsub.s32 %v3282, %v4168
        %v4170 = vrot.slane %v2615, %v4169
        %v4171 = vsel %vm3287, %v4170, %v4166
        %v4172 = vlaneseq
        %v4173 = vshrl.u32 %v4172, 7
        %v4174 = vsub.s32 %v3289, %v4173
        %v4175 = vrot.slane %v2620, %v4174
        %v4176 = vsel %vm3294, %v4175, %v4171
        %v4177 = vlaneseq
        %v4178 = vshrl.u32 %v4177, 7
        %v4179 = vsub.s32 %v3296, %v4178
        %v4180 = vrot.slane %v2625, %v4179
        %v4181 = vsel %vm3301, %v4180, %v4176
        %v4182 = vlaneseq
        %v4183 = vshrl.u32 %v4182, 7
        %v4184 = vsub.s32 %v3303, %v4183
        %v4185 = vrot.slane %v2630, %v4184
        %v4186 = vsel %vm3308, %v4185, %v4181
        %v4187 = vlaneseq
        %v4188 = vshrl.u32 %v4187, 7
        %v4189 = vsub.s32 %v3310, %v4188
        %v4190 = vrot.slane %v2635, %v4189
        %v4191 = vsel %vm3315, %v4190, %v4186
        %v4192 = vlaneseq
        %v4193 = vshrl.u32 %v4192, 7
        %v4194 = vsub.s32 %v3317, %v4193
        %v4195 = vrot.slane %v2640, %v4194
        %v4196 = vsel %vm3322, %v4195, %v4191
        %v4197 = vlaneseq
        %v4198 = vshrl.u32 %v4197, 7
        %v4199 = vsub.s32 %v3324, %v4198
        %v4200 = vrot.slane %v2645, %v4199
        %v4201 = vsel %vm3329, %v4200, %v4196
        %v4202 = vlaneseq
        %v4203 = vshrl.u32 %v4202, 7
        %v4204 = vsub.s32 %v3331, %v4203
        %v4205 = vrot.slane %v2650, %v4204
        %v4206 = vsel %vm3336, %v4205, %v4201
        %v4207 = vlaneseq
        %v4208 = vshrl.u32 %v4207, 7
        %v4209 = vsub.s32 %v3228, %v4208
        %v4210 = vrot.slane %v2655, %v4209
        %v4211 = vlaneseq
        %v4212 = vshrl.u32 %v4211, 7
        %v4213 = vsub.s32 %v3233, %v4212
        %v4214 = vrot.slane %v2660, %v4213
        %v4215 = vsel %vm3238, %v4214, %v4210
        %v4216 = vlaneseq
        %v4217 = vshrl.u32 %v4216, 7
        %v4218 = vsub.s32 %v3240, %v4217
        %v4219 = vrot.slane %v2665, %v4218
        %v4220 = vsel %vm3245, %v4219, %v4215
        %v4221 = vlaneseq
        %v4222 = vshrl.u32 %v4221, 7
        %v4223 = vsub.s32 %v3247, %v4222
        %v4224 = vrot.slane %v2670, %v4223
        %v4225 = vsel %vm3252, %v4224, %v4220
        %v4226 = vlaneseq
        %v4227 = vshrl.u32 %v4226, 7
        %v4228 = vsub.s32 %v3254, %v4227
        %v4229 = vrot.slane %v2675, %v4228
        %v4230 = vsel %vm3259, %v4229, %v4225
        %v4231 = vlaneseq
        %v4232 = vshrl.u32 %v4231, 7
        %v4233 = vsub.s32 %v3261, %v4232
        %v4234 = vrot.slane %v2680, %v4233
        %v4235 = vsel %vm3266, %v4234, %v4230
        %v4236 = vlaneseq
        %v4237 = vshrl.u32 %v4236, 7
        %v4238 = vsub.s32 %v3268, %v4237
        %v4239 = vrot.slane %v2685, %v4238
        %v4240 = vsel %vm3273, %v4239, %v4235
        %v4241 = vlaneseq
        %v4242 = vshrl.u32 %v4241, 7
        %v4243 = vsub.s32 %v3275, %v4242
        %v4244 = vrot.slane %v2690, %v4243
        %v4245 = vsel %vm3280, %v4244, %v4240
        %v4246 = vlaneseq
        %v4247 = vshrl.u32 %v4246, 7
        %v4248 = vsub.s32 %v3282, %v4247
        %v4249 = vrot.slane %v2695, %v4248
        %v4250 = vsel %vm3287, %v4249, %v4245
        %v4251 = vlaneseq
        %v4252 = vshrl.u32 %v4251, 7
        %v4253 = vsub.s32 %v3289, %v4252
        %v4254 = vrot.slane %v2700, %v4253
        %v4255 = vsel %vm3294, %v4254, %v4250
        %v4256 = vlaneseq
        %v4257 = vshrl.u32 %v4256, 7
        %v4258 = vsub.s32 %v3296, %v4257
        %v4259 = vrot.slane %v2705, %v4258
        %v4260 = vsel %vm3301, %v4259, %v4255
        %v4261 = vlaneseq
        %v4262 = vshrl.u32 %v4261, 7
        %v4263 = vsub.s32 %v3303, %v4262
        %v4264 = vrot.slane %v2710, %v4263
        %v4265 = vsel %vm3308, %v4264, %v4260
        %v4266 = vlaneseq
        %v4267 = vshrl.u32 %v4266, 7
        %v4268 = vsub.s32 %v3310, %v4267
        %v4269 = vrot.slane %v2715, %v4268
        %v4270 = vsel %vm3315, %v4269, %v4265
        %v4271 = vlaneseq
        %v4272 = vshrl.u32 %v4271, 7
        %v4273 = vsub.s32 %v3317, %v4272
        %v4274 = vrot.slane %v2720, %v4273
        %v4275 = vsel %vm3322, %v4274, %v4270
        %v4276 = vlaneseq
        %v4277 = vshrl.u32 %v4276, 7
        %v4278 = vsub.s32 %v3324, %v4277
        %v4279 = vrot.slane %v2725, %v4278
        %v4280 = vsel %vm3329, %v4279, %v4275
        %v4281 = vlaneseq
        %v4282 = vshrl.u32 %v4281, 7
        %v4283 = vsub.s32 %v3331, %v4282
        %v4284 = vrot.slane %v2730, %v4283
        %v4285 = vsel %vm3336, %v4284, %v4280
        %v4286 = vlaneseq
        %v4287 = vshrl.u32 %v4286, 7
        %v4288 = vsub.s32 %v3228, %v4287
        %v4289 = vrot.slane %v2735, %v4288
        %v4290 = vlaneseq
        %v4291 = vshrl.u32 %v4290, 7
        %v4292 = vsub.s32 %v3233, %v4291
        %v4293 = vrot.slane %v2740, %v4292
        %v4294 = vsel %vm3238, %v4293, %v4289
        %v4295 = vlaneseq
        %v4296 = vshrl.u32 %v4295, 7
        %v4297 = vsub.s32 %v3240, %v4296
        %v4298 = vrot.slane %v2745, %v4297
        %v4299 = vsel %vm3245, %v4298, %v4294
        %v4300 = vlaneseq
        %v4301 = vshrl.u32 %v4300, 7
        %v4302 = vsub.s32 %v3247, %v4301
        %v4303 = vrot.slane %v2750, %v4302
        %v4304 = vsel %vm3252, %v4303, %v4299
        %v4305 = vlaneseq
        %v4306 = vshrl.u32 %v4305, 7
        %v4307 = vsub.s32 %v3254, %v4306
        %v4308 = vrot.slane %v2755, %v4307
        %v4309 = vsel %vm3259, %v4308, %v4304
        %v4310 = vlaneseq
        %v4311 = vshrl.u32 %v4310, 7
        %v4312 = vsub.s32 %v3261, %v4311
        %v4313 = vrot.slane %v2760, %v4312
        %v4314 = vsel %vm3266, %v4313, %v4309
        %v4315 = vlaneseq
        %v4316 = vshrl.u32 %v4315, 7
        %v4317 = vsub.s32 %v3268, %v4316
        %v4318 = vrot.slane %v2765, %v4317
        %v4319 = vsel %vm3273, %v4318, %v4314
        %v4320 = vlaneseq
        %v4321 = vshrl.u32 %v4320, 7
        %v4322 = vsub.s32 %v3275, %v4321
        %v4323 = vrot.slane %v2770, %v4322
        %v4324 = vsel %vm3280, %v4323, %v4319
        %v4325 = vlaneseq
        %v4326 = vshrl.u32 %v4325, 7
        %v4327 = vsub.s32 %v3282, %v4326
        %v4328 = vrot.slane %v2775, %v4327
        %v4329 = vsel %vm3287, %v4328, %v4324
        %v4330 = vlaneseq
        %v4331 = vshrl.u32 %v4330, 7
        %v4332 = vsub.s32 %v3289, %v4331
        %v4333 = vrot.slane %v2780, %v4332
        %v4334 = vsel %vm3294, %v4333, %v4329
        %v4335 = vlaneseq
        %v4336 = vshrl.u32 %v4335, 7
        %v4337 = vsub.s32 %v3296, %v4336
        %v4338 = vrot.slane %v2785, %v4337
        %v4339 = vsel %vm3301, %v4338, %v4334
        %v4340 = vlaneseq
        %v4341 = vshrl.u32 %v4340, 7
        %v4342 = vsub.s32 %v3303, %v4341
        %v4343 = vrot.slane %v2790, %v4342
        %v4344 = vsel %vm3308, %v4343, %v4339
        %v4345 = vlaneseq
        %v4346 = vshrl.u32 %v4345, 7
        %v4347 = vsub.s32 %v3310, %v4346
        %v4348 = vrot.slane %v2795, %v4347
        %v4349 = vsel %vm3315, %v4348, %v4344
        %v4350 = vlaneseq
        %v4351 = vshrl.u32 %v4350, 7
        %v4352 = vsub.s32 %v3317, %v4351
        %v4353 = vrot.slane %v2800, %v4352
        %v4354 = vsel %vm3322, %v4353, %v4349
        %v4355 = vlaneseq
        %v4356 = vshrl.u32 %v4355, 7
        %v4357 = vsub.s32 %v3324, %v4356
        %v4358 = vrot.slane %v2805, %v4357
        %v4359 = vsel %vm3329, %v4358, %v4354
        %v4360 = vlaneseq
        %v4361 = vshrl.u32 %v4360, 7
        %v4362 = vsub.s32 %v3331, %v4361
        %v4363 = vrot.slane %v2810, %v4362
        %v4364 = vsel %vm3336, %v4363, %v4359
        %v4365 = vlaneseq
        %v4366 = vshrl.u32 %v4365, 7
        %v4367 = vsub.s32 %v3228, %v4366
        %v4368 = vrot.slane %v2815, %v4367
        %v4369 = vlaneseq
        %v4370 = vshrl.u32 %v4369, 7
        %v4371 = vsub.s32 %v3233, %v4370
        %v4372 = vrot.slane %v2820, %v4371
        %v4373 = vsel %vm3238, %v4372, %v4368
        %v4374 = vlaneseq
        %v4375 = vshrl.u32 %v4374, 7
        %v4376 = vsub.s32 %v3240, %v4375
        %v4377 = vrot.slane %v2825, %v4376
        %v4378 = vsel %vm3245, %v4377, %v4373
        %v4379 = vlaneseq
        %v4380 = vshrl.u32 %v4379, 7
        %v4381 = vsub.s32 %v3247, %v4380
        %v4382 = vrot.slane %v2830, %v4381
        %v4383 = vsel %vm3252, %v4382, %v4378
        %v4384 = vlaneseq
        %v4385 = vshrl.u32 %v4384, 7
        %v4386 = vsub.s32 %v3254, %v4385
        %v4387 = vrot.slane %v2835, %v4386
        %v4388 = vsel %vm3259, %v4387, %v4383
        %v4389 = vlaneseq
        %v4390 = vshrl.u32 %v4389, 7
        %v4391 = vsub.s32 %v3261, %v4390
        %v4392 = vrot.slane %v2840, %v4391
        %v4393 = vsel %vm3266, %v4392, %v4388
        %v4394 = vlaneseq
        %v4395 = vshrl.u32 %v4394, 7
        %v4396 = vsub.s32 %v3268, %v4395
        %v4397 = vrot.slane %v2845, %v4396
        %v4398 = vsel %vm3273, %v4397, %v4393
        %v4399 = vlaneseq
        %v4400 = vshrl.u32 %v4399, 7
        %v4401 = vsub.s32 %v3275, %v4400
        %v4402 = vrot.slane %v2850, %v4401
        %v4403 = vsel %vm3280, %v4402, %v4398
        %v4404 = vlaneseq
        %v4405 = vshrl.u32 %v4404, 7
        %v4406 = vsub.s32 %v3282, %v4405
        %v4407 = vrot.slane %v2855, %v4406
        %v4408 = vsel %vm3287, %v4407, %v4403
        %v4409 = vlaneseq
        %v4410 = vshrl.u32 %v4409, 7
        %v4411 = vsub.s32 %v3289, %v4410
        %v4412 = vrot.slane %v2860, %v4411
        %v4413 = vsel %vm3294, %v4412, %v4408
        %v4414 = vlaneseq
        %v4415 = vshrl.u32 %v4414, 7
        %v4416 = vsub.s32 %v3296, %v4415
        %v4417 = vrot.slane %v2865, %v4416
        %v4418 = vsel %vm3301, %v4417, %v4413
        %v4419 = vlaneseq
        %v4420 = vshrl.u32 %v4419, 7
        %v4421 = vsub.s32 %v3303, %v4420
        %v4422 = vrot.slane %v2870, %v4421
        %v4423 = vsel %vm3308, %v4422, %v4418
        %v4424 = vlaneseq
        %v4425 = vshrl.u32 %v4424, 7
        %v4426 = vsub.s32 %v3310, %v4425
        %v4427 = vrot.slane %v2875, %v4426
        %v4428 = vsel %vm3315, %v4427, %v4423
        %v4429 = vlaneseq
        %v4430 = vshrl.u32 %v4429, 7
        %v4431 = vsub.s32 %v3317, %v4430
        %v4432 = vrot.slane %v2880, %v4431
        %v4433 = vsel %vm3322, %v4432, %v4428
        %v4434 = vlaneseq
        %v4435 = vshrl.u32 %v4434, 7
        %v4436 = vsub.s32 %v3324, %v4435
        %v4437 = vrot.slane %v2885, %v4436
        %v4438 = vsel %vm3329, %v4437, %v4433
        %v4439 = vlaneseq
        %v4440 = vshrl.u32 %v4439, 7
        %v4441 = vsub.s32 %v3331, %v4440
        %v4442 = vrot.slane %v2890, %v4441
        %v4443 = vsel %vm3336, %v4442, %v4438
        %v4444 = vlaneseq
        %v4445 = vshrl.u32 %v4444, 7
        %v4446 = vsub.s32 %v3228, %v4445
        %v4447 = vrot.slane %v2895, %v4446
        %v4448 = vlaneseq
        %v4449 = vshrl.u32 %v4448, 7
        %v4450 = vsub.s32 %v3233, %v4449
        %v4451 = vrot.slane %v2900, %v4450
        %v4452 = vsel %vm3238, %v4451, %v4447
        %v4453 = vlaneseq
        %v4454 = vshrl.u32 %v4453, 7
        %v4455 = vsub.s32 %v3240, %v4454
        %v4456 = vrot.slane %v2905, %v4455
        %v4457 = vsel %vm3245, %v4456, %v4452
        %v4458 = vlaneseq
        %v4459 = vshrl.u32 %v4458, 7
        %v4460 = vsub.s32 %v3247, %v4459
        %v4461 = vrot.slane %v2910, %v4460
        %v4462 = vsel %vm3252, %v4461, %v4457
        %v4463 = vlaneseq
        %v4464 = vshrl.u32 %v4463, 7
        %v4465 = vsub.s32 %v3254, %v4464
        %v4466 = vrot.slane %v2915, %v4465
        %v4467 = vsel %vm3259, %v4466, %v4462
        %v4468 = vlaneseq
        %v4469 = vshrl.u32 %v4468, 7
        %v4470 = vsub.s32 %v3261, %v4469
        %v4471 = vrot.slane %v2920, %v4470
        %v4472 = vsel %vm3266, %v4471, %v4467
        %v4473 = vlaneseq
        %v4474 = vshrl.u32 %v4473, 7
        %v4475 = vsub.s32 %v3268, %v4474
        %v4476 = vrot.slane %v2925, %v4475
        %v4477 = vsel %vm3273, %v4476, %v4472
        %v4478 = vlaneseq
        %v4479 = vshrl.u32 %v4478, 7
        %v4480 = vsub.s32 %v3275, %v4479
        %v4481 = vrot.slane %v2930, %v4480
        %v4482 = vsel %vm3280, %v4481, %v4477
        %v4483 = vlaneseq
        %v4484 = vshrl.u32 %v4483, 7
        %v4485 = vsub.s32 %v3282, %v4484
        %v4486 = vrot.slane %v2935, %v4485
        %v4487 = vsel %vm3287, %v4486, %v4482
        %v4488 = vlaneseq
        %v4489 = vshrl.u32 %v4488, 7
        %v4490 = vsub.s32 %v3289, %v4489
        %v4491 = vrot.slane %v2940, %v4490
        %v4492 = vsel %vm3294, %v4491, %v4487
        %v4493 = vlaneseq
        %v4494 = vshrl.u32 %v4493, 7
        %v4495 = vsub.s32 %v3296, %v4494
        %v4496 = vrot.slane %v2945, %v4495
        %v4497 = vsel %vm3301, %v4496, %v4492
        %v4498 = vlaneseq
        %v4499 = vshrl.u32 %v4498, 7
        %v4500 = vsub.s32 %v3303, %v4499
        %v4501 = vrot.slane %v2950, %v4500
        %v4502 = vsel %vm3308, %v4501, %v4497
        %v4503 = vlaneseq
        %v4504 = vshrl.u32 %v4503, 7
        %v4505 = vsub.s32 %v3310, %v4504
        %v4506 = vrot.slane %v2955, %v4505
        %v4507 = vsel %vm3315, %v4506, %v4502
        %v4508 = vlaneseq
        %v4509 = vshrl.u32 %v4508, 7
        %v4510 = vsub.s32 %v3317, %v4509
        %v4511 = vrot.slane %v2960, %v4510
        %v4512 = vsel %vm3322, %v4511, %v4507
        %v4513 = vlaneseq
        %v4514 = vshrl.u32 %v4513, 7
        %v4515 = vsub.s32 %v3324, %v4514
        %v4516 = vrot.slane %v2965, %v4515
        %v4517 = vsel %vm3329, %v4516, %v4512
        %v4518 = vlaneseq
        %v4519 = vshrl.u32 %v4518, 7
        %v4520 = vsub.s32 %v3331, %v4519
        %v4521 = vrot.slane %v2970, %v4520
        %v4522 = vsel %vm3336, %v4521, %v4517
        %vm4523 = vcmask 1041409
        %v4524 = vsel %vm4523, %v3416, %v3337
        %vm4525 = vcmask 1042434
        %v4526 = vsel %vm4525, %v3495, %v4524
        %vm4527 = vcmask 1043459
        %v4528 = vsel %vm4527, %v3574, %v4526
        %vm4529 = vcmask 1044484
        %v4530 = vsel %vm4529, %v3653, %v4528
        %vm4531 = vcmask 1045509
        %v4532 = vsel %vm4531, %v3732, %v4530
        %vm4533 = vcmask 1046534
        %v4534 = vsel %vm4533, %v3811, %v4532
        %vm4535 = vcmask 1047559
        %v4536 = vsel %vm4535, %v3890, %v4534
        %v4537 = vsel %vm4523, %v4048, %v3969
        %v4538 = vsel %vm4525, %v4127, %v4537
        %v4539 = vsel %vm4527, %v4206, %v4538
        %v4540 = vsel %vm4529, %v4285, %v4539
        %v4541 = vsel %vm4531, %v4364, %v4540
        %v4542 = vsel %vm4533, %v4443, %v4541
        %v4543 = vsel %vm4535, %v4522, %v4542
        %v4546 = vadd.f32 %v153, %v4536
        %v4547 = vadd.f32 %v154, %v4543
        %4548 = vst [vmem:[#allocation5] sm:$0xff] %v4546
        %4549 = vst [vmem:[#allocation5 + $0x8] sm:$0xff] %v4547
        %p4550 = scmp.eq.s32.totalorder %s21, 1
        // Predicated region
        $region33: #{tpu_custom_call.1} parent=23 // pred_check
          %p4551 = pneg %p4550
        $region34: #{tpu_custom_call.1} parent=23 // pred_check_branch
          %4553 = sbr.rel (%p4551) target = $region36
        $region35: #{tpu_custom_call.1} parent=23 // pred_region
          %v4554 = vld [vmem:[#allocation5] sm:$0xff]
          %v4555 = vld [vmem:[#allocation5 + $0x8] sm:$0xff]
          %v4556 = vmul.f32 %v4554, 0.0009765625
          %v4557 = vmul.f32 %v4555, 0.0009765625
          %4558 = vst [vmem:[#allocation5] sm:$0xff] %v4556
          %4559 = vst [vmem:[#allocation5 + $0x8] sm:$0xff] %v4557
        $region36: #{tpu_custom_call.1} parent=23 // pred_fallthru
          _
        // Predicated region
        $region37: #{tpu_custom_call.1} parent=23 // pred_check
          %p4560 = pneg %p74
        $region38: #{tpu_custom_call.1} parent=23 // pred_check_branch
          %4562 = sbr.rel (%p4560) target = $region40
        $region39: #{tpu_custom_call.1} parent=23 // pred_region
          %s4564 = ssub.s32 256, 256
          %4565 = vsyncadd [#allocation4], %s4564
          %s4566 = smul.addr %s20, 128
          %s4567 = scalar_lea.hbm %s1, %s4566
          %s4568 = sshll.u32 [#allocation5], 4
          %s4569 = int_to_ptr.vmem [resolvable:$true] %s4568
          %4574 = dma.vmem_to_hbm [thread:$0]  %s4569, 256, %s4567, [#allocation4], 128, 128, 8
        $region40: #{tpu_custom_call.1} parent=23 // pred_fallthru
          _
        // Predicated region
        $region41: #{tpu_custom_call.1} parent=23 // pred_check
          %p4575 = pneg %p74
        $region42: #{tpu_custom_call.1} parent=23 // pred_check_branch
          %4577 = sbr.rel (%p4575) target = $region44
        $region43: #{tpu_custom_call.1} parent=23 // pred_region
          %4578 = dma.done [#allocation4], 256
        $region44: #{tpu_custom_call.1} parent=23 // pred_fallthru
          _
      $region24: #{tpu_custom_call.1} parent=5 // pred_fallthru
        _
      %p4579 = scmp.le.s32.totalorder 2, %s11
      // Predicated region
      $region45: #{tpu_custom_call.1} parent=5 // pred_check
        %p4580 = pneg %p4579
      $region46: #{tpu_custom_call.1} parent=5 // pred_check_branch
        %4582 = sbr.rel (%p4580) target = $region48
      $region47: #{tpu_custom_call.1} parent=5 // pred_region
        %s4583 = ssub.s32 %s11, 2
      $region48: #{tpu_custom_call.1} parent=5 // pred_fallthru
        _
    $region6: #{tpu_custom_call.1} parent=1 // loop_footer
      %s15 = sadd.s32 1, %s11
    $region7: #{tpu_custom_call.1} parent=1 // loop_footer_branch
      %10 = sbr.rel target = $region3
    $region8: #{tpu_custom_call.1} parent=1 // loop_exit
      _
    %4584 = vsyncpa [#allocation3], 1
    %s4585 = scalar_lea.sflag [#allocation3], 1
    %4586 = vsyncpa %s4585, 1
    %4587 = vsyncpa [#allocation4], 1
    %s4588 = scalar_lea.sflag [#allocation4], 1
    %4589 = vsyncpa %s4588, 1

</llo_original>
